<compile_context>
chip_gen: v7x
topology: tpu7x:2x2x1
jax: 0.10.0
libtpu: 0.0.40
codegen_flags: <defaults>
</compile_context>

<pallas_src>
import functools

import jax
import jax.numpy as jnp
from jax.experimental import pallas as pl
from jax.experimental.pallas import tpu as pltpu


def _round_up(x, m):
    return ((x + m - 1) // m) * m


def seq_supervised_kernel(x_ref, pos_ref, y_ref, w1_ref, b1_ref, wch_ref, wcp_ref,
                          bc_ref, pred_ref, stats_ref, *, num_classes):
    # x_ref:    (TILE_N, E)   bf16   BERT hidden states (CLS/SEP already stripped)
    # pos_ref:  (TILE_N, P)   bf16   POS-tag embeddings
    # y_ref:    (TILE_N, 1)   int32  labels, -1 == ignore_index (also pad rows)
    # w1_ref:   (E, H)        bf16   learner Linear weight;  b1_ref: (1, H) f32
    # wch_ref:  (H, CP)       bf16   classifier weight rows for h (classes 0-padded)
    # wcp_ref:  (P, CP)       bf16   classifier weight rows for pos
    # bc_ref:   (1, CP)       f32    classifier bias (0-padded)
    # pred_ref: (TILE_N, 1)   int32  argmax over the real classes
    # stats_ref:(8, 128)      f32    [0,0] = loss_sum, [0,1] = valid_count

    # learner.linear: Linear + ReLU (dropout_ratio = 0 in eval).
    h = jnp.dot(x_ref[...], w1_ref[...],
                preferred_element_type=jnp.float32) + b1_ref[...]
    h = jnp.maximum(h, 0.0)

    # classifier over concat([h, pos]) == two dots summed in the f32 accumulator.
    logits = (jnp.dot(h.astype(jnp.bfloat16), wch_ref[...],
                      preferred_element_type=jnp.float32)
              + jnp.dot(pos_ref[...], wcp_ref[...],
                        preferred_element_type=jnp.float32)
              + bc_ref[...])

    n, cp = logits.shape
    col = jax.lax.broadcasted_iota(jnp.int32, (n, cp), 1)
    class_valid = col < num_classes
    masked = jnp.where(class_valid, logits, -jnp.inf)

    # make_prediction: argmax over the real classes (first max index on ties).
    mx = jnp.max(masked, axis=-1, keepdims=True)
    pred_ref[...] = jnp.min(jnp.where(masked == mx, col, cp), axis=-1,
                            keepdims=True).astype(jnp.int32)

    # CrossEntropyLoss(ignore_index=-1): stable LSE over the real classes (f32).
    lse = mx + jnp.log(jnp.sum(jnp.exp(masked - mx), axis=-1, keepdims=True))
    y = y_ref[...]                                     # (n, 1) int32
    onehot = (col == y).astype(jnp.float32)            # padded classes never selected
    logit_y = jnp.sum(logits * onehot, axis=-1, keepdims=True)
    valid = (y != -1).astype(jnp.float32)              # ignore_index / pad rows
    loss_sum = jnp.sum((lse - logit_y) * valid)
    cnt = jnp.sum(valid)

    row_i = jax.lax.broadcasted_iota(jnp.int32, (8, 128), 0)
    lane_i = jax.lax.broadcasted_iota(jnp.int32, (8, 128), 1)
    stats_ref[...] = jnp.where((row_i == 0) & (lane_i == 0), loss_sum,
                               jnp.where((row_i == 0) & (lane_i == 1), cnt, 0.0))


def seq_supervised_forward(x_feat, pos_emb, labels, w1, b1, wc, bc, *, tile_n=None):
    """x_feat: [N,E] BERT hidden states (special tokens stripped, flattened),
    ideally already bf16 (cast fused into the producer); pos_emb: [N,P];
    labels: [N,1] int32 (-1 = ignore). Linear weights stored [in,out]:
    w1: [E,H], b1: [1,H], wc: [H+P,C], bc: [1,C].  Returns (loss, preds[N])."""
    N, E = x_feat.shape
    P = pos_emb.shape[1]
    H = w1.shape[1]
    C = wc.shape[1]
    CP = _round_up(C, 128)              # padded class dim -> lane-dense logits math

    if tile_n is None:
        # 512 amortizes the ~0.35us/step pipeline overhead (multiple of 256 for the
        # v6e/v7x MXU, 128 for v5e); 256 when N is small so the grid can still have
        # more than one (ideally an even number of) steps for v7x's two TensorCores.
        tile_n = 512 if N > 512 else 256
    n_pad = _round_up(max(N, 1), tile_n)
    grid = n_pad // tile_n

    # Row-pad activations/labels to a whole number of tiles; casts are no-ops when
    # the producer already emits bf16.
    x = jnp.pad(x_feat.astype(jnp.bfloat16), ((0, n_pad - N), (0, 0)))
    pos = jnp.pad(pos_emb.astype(jnp.bfloat16), ((0, n_pad - N), (0, 0)))
    y = jnp.pad(labels.reshape(N, 1).astype(jnp.int32), ((0, n_pad - N), (0, 0)),
                constant_values=-1)

    # Parameters: bf16 matmul operands, f32 biases, classifier split by input rows.
    w1_b = w1.astype(jnp.bfloat16)
    b1_r = b1.reshape(1, H).astype(jnp.float32)
    wch = jnp.zeros((H, CP), jnp.float32).at[:, :C].set(wc[:H]).astype(jnp.bfloat16)
    wcp = jnp.zeros((P, CP), jnp.float32).at[:, :C].set(wc[H:H + P]).astype(jnp.bfloat16)
    bc_r = jnp.zeros((1, CP), jnp.float32).at[:, :C].set(bc.reshape(1, C))

    kernel = functools.partial(seq_supervised_kernel, num_classes=C)

    flops = 2 * n_pad * (E * H + H * CP + P * CP)
    transcendentals = n_pad * (CP + 1)
    bytes_accessed = (x.size * 2 + pos.size * 2 + y.size * 4
                      + w1_b.size * 2 + b1_r.size * 4 + wch.size * 2
                      + wcp.size * 2 + bc_r.size * 4
                      + n_pad * 4 + grid * 8 * 128 * 4)

    def build(single_buffer_weights):
        def wspec(shape):
            # Grid-invariant weights: single VMEM buffer when supported.
            if single_buffer_weights:
                return pl.BlockSpec(shape, lambda i: (0, 0),
                                    pipeline_mode=pl.Buffered(1))
            return pl.BlockSpec(shape, lambda i: (0, 0))

        return pl.pallas_call(
            kernel,
            out_shape=(
                jax.ShapeDtypeStruct((n_pad, 1), jnp.int32),        # preds
                jax.ShapeDtypeStruct((grid * 8, 128), jnp.float32),  # loss partials
            ),
            grid=(grid,),
            in_specs=[
                pl.BlockSpec((tile_n, E), lambda i: (i, 0)),   # x tile
                pl.BlockSpec((tile_n, P), lambda i: (i, 0)),   # pos tile
                pl.BlockSpec((tile_n, 1), lambda i: (i, 0)),   # labels tile
                wspec((E, H)),                                 # W1   (resident)
                wspec((1, H)),                                 # b1   (resident)
                wspec((H, CP)),                                # Wc_h (resident)
                wspec((P, CP)),                                # Wc_p (resident)
                wspec((1, CP)),                                # bc   (resident)
            ],
            out_specs=(
                pl.BlockSpec((tile_n, 1), lambda i: (i, 0)),
                pl.BlockSpec((8, 128), lambda i: (i, 0)),
            ),
            compiler_params=pltpu.CompilerParams(
                dimension_semantics=("parallel",),
                vmem_limit_bytes=32 * 1024 * 1024,
            ),
            cost_estimate=pl.CostEstimate(
                flops=flops, transcendentals=transcendentals,
                bytes_accessed=bytes_accessed),
        )

    args = (x, pos, y, w1_b, b1_r, wch, wcp, bc_r)
    try:
        preds_pad, stats = build(True)(*args)
    except Exception:
        # pipeline_mode=pl.Buffered(1) not supported by this jax/libtpu combo:
        # fall back to default double-buffered resident weights (VMEM-only cost).
        preds_pad, stats = build(False)(*args)

    preds = preds_pad[:N, 0]
    # CrossEntropyLoss reduction='mean' over non-ignored tokens.
    # NOTE: like PyTorch, an all-ignored batch yields 0/0 = NaN (no max() guard).
    loss = jnp.sum(stats[:, 0]) / jnp.sum(stats[:, 1])
    return loss, preds


if __name__ == "__main__":
    # Small shapes consistent with the module's forward.
    B, L = 2, 10           # batch, tokenized length incl. [CLS]/[SEP]
    S = L - 2              # learner strips first/last token -> seq positions
    E = 32                 # embed_dim (BERT hidden size, shrunk)
    H = 32                 # learner hidden_size
    P = 16                 # pos_dim
    C = 8                  # num_outputs['ner']
    V_POS = 20             # POSDICT.size()
    N = B * S

    key = jax.random.PRNGKey(0)
    k = iter(jax.random.split(key, 10))

    # TODO(synk): pretrained 'bert-base-cased' encoder + BertTokenizer are not
    # reproducible in-script; synthetic hidden states stand in for learner.bert output.
    bert_hidden = jax.random.normal(next(k), (B, L, E), dtype=jnp.float32)
    # Producer emits bf16 activations (cast fused upstream, not a standalone pass).
    x_feat = bert_hidden[:, 1:-1, :].reshape(N, E).astype(jnp.bfloat16)

    pos_table = 0.1 * jax.random.normal(next(k), (V_POS, P), dtype=jnp.float32)
    pos_ids = jax.random.randint(next(k), (B, S), 0, V_POS)
    pos_emb = jnp.take(pos_table, pos_ids, axis=0).reshape(N, P).astype(jnp.bfloat16)

    labels = jax.random.randint(next(k), (B, S), -1, C).astype(jnp.int32).reshape(N, 1)

    # Deterministic parameter init (Linear weights stored [in, out]).
    w1 = 0.05 * jax.random.normal(next(k), (E, H), dtype=jnp.float32)
    b1 = 0.01 * jax.random.normal(next(k), (1, H), dtype=jnp.float32)
    wc = 0.05 * jax.random.normal(next(k), (H + P, C), dtype=jnp.float32)
    bc = 0.01 * jax.random.normal(next(k), (1, C), dtype=jnp.float32)

    loss, preds = seq_supervised_forward(x_feat, pos_emb, labels, w1, b1, wc, bc)
    jax.block_until_ready((loss, preds))

    # Pure-JAX f32 reference over the same bf16 activations (bf16 MXU tolerance).
    xr = x_feat.astype(jnp.float32)
    pr = pos_emb.astype(jnp.float32)
    h_ref = jnp.maximum(xr @ w1 + b1, 0.0)
    logits_ref = jnp.concatenate([h_ref, pr], axis=-1) @ wc + bc
    mxr = jnp.max(logits_ref, axis=-1, keepdims=True)
    lse = (mxr + jnp.log(jnp.sum(jnp.exp(logits_ref - mxr), axis=-1, keepdims=True)))[:, 0]
    logit_y = jnp.take_along_axis(logits_ref, jnp.maximum(labels, 0), axis=-1)[:, 0]
    valid = (labels[:, 0] != -1).astype(jnp.float32)
    loss_ref = jnp.sum((lse - logit_y) * valid) / jnp.sum(valid)
    preds_ref = jnp.argmax(logits_ref, axis=-1).astype(jnp.int32)

    assert preds.shape == (N,)
    assert bool(jnp.isfinite(loss))
    assert float(jnp.abs(loss - loss_ref)) < 5e-2
    # Predictions must match wherever the reference top-2 margin exceeds bf16 noise.
    top2 = jnp.sort(logits_ref, axis=-1)
    confident = (top2[:, -1] - top2[:, -2]) > 5e-2
    assert bool(jnp.all((preds == preds_ref) | ~confident))
    print("KERNEL_OK")
</pallas_src>

<mosaic_0001>
module attributes {stable_mosaic.version = 11 : i64} {
  func.func @seq_supervised_kernel(%arg0: i32, %arg1: memref<256x32xbf16, #tpu.memory_space<vmem>>, %arg2: memref<256x16xbf16, #tpu.memory_space<vmem>>, %arg3: memref<256x1xi32, #tpu.memory_space<vmem>>, %arg4: memref<32x32xbf16, #tpu.memory_space<vmem>>, %arg5: memref<1x32xf32, #tpu.memory_space<vmem>>, %arg6: memref<32x128xbf16, #tpu.memory_space<vmem>>, %arg7: memref<16x128xbf16, #tpu.memory_space<vmem>>, %arg8: memref<1x128xf32, #tpu.memory_space<vmem>>, %arg9: memref<256x1xi32, #tpu.memory_space<vmem>>, %arg10: memref<8x128xf32, #tpu.memory_space<vmem>>) attributes {dimension_semantics = [#tpu.dimension_semantics<parallel>], iteration_bounds = array<i64: 1>, scalar_prefetch = 0 : i64, scratch_operands = 0 : i64, tpu.core_type = #tpu.core_type<tc>, window_params = [{transform_indices = @transform_0, window_bounds = array<i64: 256, 32>}, {transform_indices = @transform_1, window_bounds = array<i64: 256, 16>}, {transform_indices = @transform_2, window_bounds = array<i64: 256, 1>}, {pipeline_mode = #tpu.pipeline_mode<synchronous>, transform_indices = @transform_3, window_bounds = array<i64: 32, 32>}, {pipeline_mode = #tpu.pipeline_mode<synchronous>, transform_indices = @transform_4, window_bounds = array<i64: 1, 32>}, {pipeline_mode = #tpu.pipeline_mode<synchronous>, transform_indices = @transform_5, window_bounds = array<i64: 32, 128>}, {pipeline_mode = #tpu.pipeline_mode<synchronous>, transform_indices = @transform_6, window_bounds = array<i64: 16, 128>}, {pipeline_mode = #tpu.pipeline_mode<synchronous>, transform_indices = @transform_7, window_bounds = array<i64: 1, 128>}, {transform_indices = @transform_8, window_bounds = array<i64: 256, 1>}, {transform_indices = @transform_9, window_bounds = array<i64: 8, 128>}]} {
    %c0 = arith.constant 0 : index
    %c0_0 = arith.constant 0 : index
    %0 = vector.load %arg1[%c0, %c0_0] : memref<256x32xbf16, #tpu.memory_space<vmem>>, vector<256x32xbf16>
    %c0_1 = arith.constant 0 : index
    %c0_2 = arith.constant 0 : index
    %1 = vector.load %arg4[%c0_1, %c0_2] : memref<32x32xbf16, #tpu.memory_space<vmem>>, vector<32x32xbf16>
    %cst = arith.constant dense<0.000000e+00> : vector<256x32xf32>
    %2 = tpu.matmul %0, %1, %cst {dimension_numbers = #tpu.dot_dimension_numbers<[1], [0], [0], [1], [0, 0, 1, 1], [], []>} : vector<256x32xbf16>, vector<32x32xbf16>, vector<256x32xf32> -> vector<256x32xf32>
    %c0_3 = arith.constant 0 : index
    %c0_4 = arith.constant 0 : index
    %3 = vector.load %arg5[%c0_3, %c0_4] : memref<1x32xf32, #tpu.memory_space<vmem>>, vector<1x32xf32>
    %4 = vector.broadcast %3 : vector<1x32xf32> to vector<256x32xf32>
    %5 = arith.addf %2, %4 : vector<256x32xf32>
    %cst_5 = arith.constant 0.000000e+00 : f32
    %6 = vector.broadcast %cst_5 : f32 to vector<256x32xf32>
    %7 = arith.maximumf %5, %6 : vector<256x32xf32>
    %8 = arith.truncf %7 : vector<256x32xf32> to vector<256x32xbf16>
    %c0_6 = arith.constant 0 : index
    %c0_7 = arith.constant 0 : index
    %9 = vector.load %arg6[%c0_6, %c0_7] : memref<32x128xbf16, #tpu.memory_space<vmem>>, vector<32x128xbf16>
    %cst_8 = arith.constant dense<0.000000e+00> : vector<256x128xf32>
    %10 = tpu.matmul %8, %9, %cst_8 {dimension_numbers = #tpu.dot_dimension_numbers<[1], [0], [0], [1], [0, 0, 1, 1], [], []>} : vector<256x32xbf16>, vector<32x128xbf16>, vector<256x128xf32> -> vector<256x128xf32>
    %c0_9 = arith.constant 0 : index
    %c0_10 = arith.constant 0 : index
    %11 = vector.load %arg2[%c0_9, %c0_10] : memref<256x16xbf16, #tpu.memory_space<vmem>>, vector<256x16xbf16>
    %c0_11 = arith.constant 0 : index
    %c0_12 = arith.constant 0 : index
    %12 = vector.load %arg7[%c0_11, %c0_12] : memref<16x128xbf16, #tpu.memory_space<vmem>>, vector<16x128xbf16>
    %cst_13 = arith.constant dense<0.000000e+00> : vector<256x128xf32>
    %13 = tpu.matmul %11, %12, %cst_13 {dimension_numbers = #tpu.dot_dimension_numbers<[1], [0], [0], [1], [0, 0, 1, 1], [], []>} : vector<256x16xbf16>, vector<16x128xbf16>, vector<256x128xf32> -> vector<256x128xf32>
    %14 = arith.addf %10, %13 : vector<256x128xf32>
    %c0_14 = arith.constant 0 : index
    %c0_15 = arith.constant 0 : index
    %15 = vector.load %arg8[%c0_14, %c0_15] : memref<1x128xf32, #tpu.memory_space<vmem>>, vector<1x128xf32>
    %16 = vector.broadcast %15 : vector<1x128xf32> to vector<256x128xf32>
    %17 = arith.addf %14, %16 : vector<256x128xf32>
    %18 = tpu.iota {dimensions = array<i32: 1>} : vector<256x128xi32>
    %c8_i32 = arith.constant 8 : i32
    %19 = vector.broadcast %c8_i32 : i32 to vector<256x128xi32>
    %20 = arith.cmpi slt, %18, %19 : vector<256x128xi32>
    %cst_16 = arith.constant 0xFF800000 : f32
    %21 = vector.broadcast %cst_16 : f32 to vector<256x128xf32>
    %22 = arith.select %20, %17, %21 : vector<256x128xi1>, vector<256x128xf32>
    %cst_17 = arith.constant dense<0xFF800000> : vector<256xf32>
    %23 = vector.multi_reduction <maximumf>, %22, %cst_17 [1] : vector<256x128xf32> to vector<256xf32>
    %24 = vector.shape_cast %23 : vector<256xf32> to vector<256x1xf32>
    %25 = vector.broadcast %24 : vector<256x1xf32> to vector<256x128xf32>
    %26 = arith.cmpf oeq, %22, %25 : vector<256x128xf32>
    %c128_i32 = arith.constant 128 : i32
    %27 = vector.broadcast %c128_i32 : i32 to vector<256x128xi32>
    %28 = arith.select %26, %18, %27 : vector<256x128xi1>, vector<256x128xi32>
    %cst_18 = arith.constant dense<2147483647> : vector<256xi32>
    %29 = vector.multi_reduction <minsi>, %28, %cst_18 [1] : vector<256x128xi32> to vector<256xi32>
    %30 = vector.shape_cast %29 : vector<256xi32> to vector<256x1xi32>
    %c0_19 = arith.constant 0 : index
    %c0_20 = arith.constant 0 : index
    %31 = vector.load %arg9[%c0_19, %c0_20] : memref<256x1xi32, #tpu.memory_space<vmem>>, vector<256x1xi32>
    tpu.vector_store %arg9[%c0_19, %c0_20], %30 {strides = array<i32>} : memref<256x1xi32, #tpu.memory_space<vmem>>, vector<256x1xi32>,
    %32 = vector.broadcast %24 : vector<256x1xf32> to vector<256x128xf32>
    %33 = arith.subf %22, %32 : vector<256x128xf32>
    %34 = math.exp %33 : vector<256x128xf32>
    %cst_21 = arith.constant dense<0.000000e+00> : vector<256xf32>
    %35 = vector.multi_reduction <add>, %34, %cst_21 [1] : vector<256x128xf32> to vector<256xf32>
    %36 = vector.shape_cast %35 : vector<256xf32> to vector<256x1xf32>
    %37 = math.log %36 : vector<256x1xf32>
    %38 = arith.addf %24, %37 : vector<256x1xf32>
    %c0_22 = arith.constant 0 : index
    %c0_23 = arith.constant 0 : index
    %39 = vector.load %arg3[%c0_22, %c0_23] : memref<256x1xi32, #tpu.memory_space<vmem>>, vector<256x1xi32>
    %40 = vector.broadcast %39 : vector<256x1xi32> to vector<256x128xi32>
    %41 = arith.cmpi eq, %18, %40 : vector<256x128xi32>
    %42 = arith.extui %41 : vector<256x128xi1> to vector<256x128xi32>
    %43 = arith.sitofp %42 : vector<256x128xi32> to vector<256x128xf32>
    %44 = arith.mulf %17, %43 : vector<256x128xf32>
    %cst_24 = arith.constant dense<0.000000e+00> : vector<256xf32>
    %45 = vector.multi_reduction <add>, %44, %cst_24 [1] : vector<256x128xf32> to vector<256xf32>
    %46 = vector.shape_cast %45 : vector<256xf32> to vector<256x1xf32>
    %c-1_i32 = arith.constant -1 : i32
    %47 = vector.broadcast %c-1_i32 : i32 to vector<256x1xi32>
    %48 = arith.cmpi ne, %39, %47 : vector<256x1xi32>
    %49 = arith.extui %48 : vector<256x1xi1> to vector<256x1xi32>
    %50 = arith.sitofp %49 : vector<256x1xi32> to vector<256x1xf32>
    %51 = arith.subf %38, %46 : vector<256x1xf32>
    %52 = arith.mulf %51, %50 : vector<256x1xf32>
    %53 = vector.shape_cast %52 : vector<256x1xf32> to vector<1x256x1xf32>
    %cst_25 = arith.constant dense<0.000000e+00> : vector<1xf32>
    %54 = vector.multi_reduction <add>, %53, %cst_25 [1, 2] : vector<1x256x1xf32> to vector<1xf32>
    %55 = vector.shape_cast %54 : vector<1xf32> to vector<1x1x1xf32>
    %56 = vector.extract %55[0, 0, 0] : f32 from vector<1x1x1xf32>
    %57 = vector.shape_cast %50 : vector<256x1xf32> to vector<1x256x1xf32>
    %cst_26 = arith.constant dense<0.000000e+00> : vector<1xf32>
    %58 = vector.multi_reduction <add>, %57, %cst_26 [1, 2] : vector<1x256x1xf32> to vector<1xf32>
    %59 = vector.shape_cast %58 : vector<1xf32> to vector<1x1x1xf32>
    %60 = vector.extract %59[0, 0, 0] : f32 from vector<1x1x1xf32>
    %61 = tpu.iota {dimensions = array<i32: 0>} : vector<8x128xi32>
    %62 = tpu.iota {dimensions = array<i32: 1>} : vector<8x128xi32>
    %c0_i32 = arith.constant 0 : i32
    %63 = vector.broadcast %c0_i32 : i32 to vector<8x128xi32>
    %64 = arith.cmpi eq, %61, %63 : vector<8x128xi32>
    %c0_i32_27 = arith.constant 0 : i32
    %65 = vector.broadcast %c0_i32_27 : i32 to vector<8x128xi32>
    %66 = arith.cmpi eq, %62, %65 : vector<8x128xi32>
    %67 = arith.andi %64, %66 : vector<8x128xi1>
    %c0_i32_28 = arith.constant 0 : i32
    %68 = vector.broadcast %c0_i32_28 : i32 to vector<8x128xi32>
    %69 = arith.cmpi eq, %61, %68 : vector<8x128xi32>
    %c1_i32 = arith.constant 1 : i32
    %70 = vector.broadcast %c1_i32 : i32 to vector<8x128xi32>
    %71 = arith.cmpi eq, %62, %70 : vector<8x128xi32>
    %72 = arith.andi %69, %71 : vector<8x128xi1>
    %cst_29 = arith.constant 0.000000e+00 : f32
    %73 = vector.broadcast %60 : f32 to vector<8x128xf32>
    %74 = vector.broadcast %cst_29 : f32 to vector<8x128xf32>
    %75 = arith.select %72, %73, %74 : vector<8x128xi1>, vector<8x128xf32>
    %76 = vector.broadcast %56 : f32 to vector<8x128xf32>
    %77 = arith.select %67, %76, %75 : vector<8x128xi1>, vector<8x128xf32>
    %c0_30 = arith.constant 0 : index
    %c0_31 = arith.constant 0 : index
    %78 = vector.load %arg10[%c0_30, %c0_31] : memref<8x128xf32, #tpu.memory_space<vmem>>, vector<8x128xf32>
    tpu.vector_store %arg10[%c0_30, %c0_31], %77 {strides = array<i32>} : memref<8x128xf32, #tpu.memory_space<vmem>>, vector<8x128xf32>,
    return
  }
  func.func @transform_0(%arg0: i32) -> (i32, i32) {
    %c0_i32 = arith.constant 0 : i32
    %c0_i32_0 = arith.constant 0 : i32
    return %arg0, %c0_i32 : i32, i32
  }
  func.func @transform_1(%arg0: i32) -> (i32, i32) {
    %c0_i32 = arith.constant 0 : i32
    %c0_i32_0 = arith.constant 0 : i32
    return %arg0, %c0_i32 : i32, i32
  }
  func.func @transform_2(%arg0: i32) -> (i32, i32) {
    %c0_i32 = arith.constant 0 : i32
    %c0_i32_0 = arith.constant 0 : i32
    return %arg0, %c0_i32 : i32, i32
  }
  func.func @transform_3(%arg0: i32) -> (i32, i32) {
    %c0_i32 = arith.constant 0 : i32
    %c0_i32_0 = arith.constant 0 : i32
    %c0_i32_1 = arith.constant 0 : i32
    return %c0_i32, %c0_i32_0 : i32, i32
  }
  func.func @transform_4(%arg0: i32) -> (i32, i32) {
    %c0_i32 = arith.constant 0 : i32
    %c0_i32_0 = arith.constant 0 : i32
    %c0_i32_1 = arith.constant 0 : i32
    return %c0_i32, %c0_i32_0 : i32, i32
  }
  func.func @transform_5(%arg0: i32) -> (i32, i32) {
    %c0_i32 = arith.constant 0 : i32
    %c0_i32_0 = arith.constant 0 : i32
    %c0_i32_1 = arith.constant 0 : i32
    return %c0_i32, %c0_i32_0 : i32, i32
  }
  func.func @transform_6(%arg0: i32) -> (i32, i32) {
    %c0_i32 = arith.constant 0 : i32
    %c0_i32_0 = arith.constant 0 : i32
    %c0_i32_1 = arith.constant 0 : i32
    return %c0_i32, %c0_i32_0 : i32, i32
  }
  func.func @transform_7(%arg0: i32) -> (i32, i32) {
    %c0_i32 = arith.constant 0 : i32
    %c0_i32_0 = arith.constant 0 : i32
    %c0_i32_1 = arith.constant 0 : i32
    return %c0_i32, %c0_i32_0 : i32, i32
  }
  func.func @transform_8(%arg0: i32) -> (i32, i32) {
    %c0_i32 = arith.constant 0 : i32
    %c0_i32_0 = arith.constant 0 : i32
    return %arg0, %c0_i32 : i32, i32
  }
  func.func @transform_9(%arg0: i32) -> (i32, i32) {
    %c0_i32 = arith.constant 0 : i32
    %c0_i32_0 = arith.constant 0 : i32
    return %arg0, %c0_i32 : i32, i32
  }
}

module attributes {stable_mosaic.version = 11 : i64} {
  func.func @seq_supervised_kernel(%arg0: i32, %arg1: memref<256x32xbf16, #tpu.memory_space<vmem>>, %arg2: memref<256x16xbf16, #tpu.memory_space<vmem>>, %arg3: memref<256x1xi32, #tpu.memory_space<vmem>>, %arg4: memref<32x32xbf16, #tpu.memory_space<vmem>>, %arg5: memref<1x32xf32, #tpu.memory_space<vmem>>, %arg6: memref<32x128xbf16, #tpu.memory_space<vmem>>, %arg7: memref<16x128xbf16, #tpu.memory_space<vmem>>, %arg8: memref<1x128xf32, #tpu.memory_space<vmem>>, %arg9: memref<256x1xi32, #tpu.memory_space<vmem>>, %arg10: memref<8x128xf32, #tpu.memory_space<vmem>>) attributes {dimension_semantics = [#tpu.dimension_semantics<parallel>], iteration_bounds = array<i64: 1>, scalar_prefetch = 0 : i64, scratch_operands = 0 : i64, tpu.core_type = #tpu.core_type<tc>, window_params = [{transform_indices = @transform_0, window_bounds = array<i64: 256, 32>}, {transform_indices = @transform_1, window_bounds = array<i64: 256, 16>}, {transform_indices = @transform_2, window_bounds = array<i64: 256, 1>}, {pipeline_mode = #tpu.pipeline_mode<synchronous>, transform_indices = @transform_3, window_bounds = array<i64: 32, 32>}, {pipeline_mode = #tpu.pipeline_mode<synchronous>, transform_indices = @transform_4, window_bounds = array<i64: 1, 32>}, {pipeline_mode = #tpu.pipeline_mode<synchronous>, transform_indices = @transform_5, window_bounds = array<i64: 32, 128>}, {pipeline_mode = #tpu.pipeline_mode<synchronous>, transform_indices = @transform_6, window_bounds = array<i64: 16, 128>}, {pipeline_mode = #tpu.pipeline_mode<synchronous>, transform_indices = @transform_7, window_bounds = array<i64: 1, 128>}, {transform_indices = @transform_8, window_bounds = array<i64: 256, 1>}, {transform_indices = @transform_9, window_bounds = array<i64: 8, 128>}]} {
    %c0 = arith.constant 0 : index
    %c0_0 = arith.constant 0 : index
    %0 = vector.load %arg1[%c0, %c0_0] : memref<256x32xbf16, #tpu.memory_space<vmem>>, vector<256x32xbf16>
    %c0_1 = arith.constant 0 : index
    %c0_2 = arith.constant 0 : index
    %1 = vector.load %arg4[%c0_1, %c0_2] : memref<32x32xbf16, #tpu.memory_space<vmem>>, vector<32x32xbf16>
    %cst = arith.constant dense<0.000000e+00> : vector<256x32xf32>
    %2 = tpu.matmul %0, %1, %cst {dimension_numbers = #tpu.dot_dimension_numbers<[1], [0], [0], [1], [0, 0, 1, 1], [], []>} : vector<256x32xbf16>, vector<32x32xbf16>, vector<256x32xf32> -> vector<256x32xf32>
    %c0_3 = arith.constant 0 : index
    %c0_4 = arith.constant 0 : index
    %3 = vector.load %arg5[%c0_3, %c0_4] : memref<1x32xf32, #tpu.memory_space<vmem>>, vector<1x32xf32>
    %4 = vector.broadcast %3 : vector<1x32xf32> to vector<256x32xf32>
    %5 = arith.addf %2, %4 : vector<256x32xf32>
    %cst_5 = arith.constant 0.000000e+00 : f32
    %6 = vector.broadcast %cst_5 : f32 to vector<256x32xf32>
    %7 = arith.maximumf %5, %6 : vector<256x32xf32>
    %8 = arith.truncf %7 : vector<256x32xf32> to vector<256x32xbf16>
    %c0_6 = arith.constant 0 : index
    %c0_7 = arith.constant 0 : index
    %9 = vector.load %arg6[%c0_6, %c0_7] : memref<32x128xbf16, #tpu.memory_space<vmem>>, vector<32x128xbf16>
    %cst_8 = arith.constant dense<0.000000e+00> : vector<256x128xf32>
    %10 = tpu.matmul %8, %9, %cst_8 {dimension_numbers = #tpu.dot_dimension_numbers<[1], [0], [0], [1], [0, 0, 1, 1], [], []>} : vector<256x32xbf16>, vector<32x128xbf16>, vector<256x128xf32> -> vector<256x128xf32>
    %c0_9 = arith.constant 0 : index
    %c0_10 = arith.constant 0 : index
    %11 = vector.load %arg2[%c0_9, %c0_10] : memref<256x16xbf16, #tpu.memory_space<vmem>>, vector<256x16xbf16>
    %c0_11 = arith.constant 0 : index
    %c0_12 = arith.constant 0 : index
    %12 = vector.load %arg7[%c0_11, %c0_12] : memref<16x128xbf16, #tpu.memory_space<vmem>>, vector<16x128xbf16>
    %cst_13 = arith.constant dense<0.000000e+00> : vector<256x128xf32>
    %13 = tpu.matmul %11, %12, %cst_13 {dimension_numbers = #tpu.dot_dimension_numbers<[1], [0], [0], [1], [0, 0, 1, 1], [], []>} : vector<256x16xbf16>, vector<16x128xbf16>, vector<256x128xf32> -> vector<256x128xf32>
    %14 = arith.addf %10, %13 : vector<256x128xf32>
    %c0_14 = arith.constant 0 : index
    %c0_15 = arith.constant 0 : index
    %15 = vector.load %arg8[%c0_14, %c0_15] : memref<1x128xf32, #tpu.memory_space<vmem>>, vector<1x128xf32>
    %16 = vector.broadcast %15 : vector<1x128xf32> to vector<256x128xf32>
    %17 = arith.addf %14, %16 : vector<256x128xf32>
    %18 = tpu.iota {dimensions = array<i32: 1>} : vector<256x128xi32>
    %c8_i32 = arith.constant 8 : i32
    %19 = vector.broadcast %c8_i32 : i32 to vector<256x128xi32>
    %20 = arith.cmpi slt, %18, %19 : vector<256x128xi32>
    %cst_16 = arith.constant 0xFF800000 : f32
    %21 = vector.broadcast %cst_16 : f32 to vector<256x128xf32>
    %22 = arith.select %20, %17, %21 : vector<256x128xi1>, vector<256x128xf32>
    %cst_17 = arith.constant dense<0xFF800000> : vector<256xf32>
    %23 = vector.multi_reduction <maximumf>, %22, %cst_17 [1] : vector<256x128xf32> to vector<256xf32>
    %24 = vector.shape_cast %23 : vector<256xf32> to vector<256x1xf32>
    %25 = vector.broadcast %24 : vector<256x1xf32> to vector<256x128xf32>
    %26 = arith.cmpf oeq, %22, %25 : vector<256x128xf32>
    %c128_i32 = arith.constant 128 : i32
    %27 = vector.broadcast %c128_i32 : i32 to vector<256x128xi32>
    %28 = arith.select %26, %18, %27 : vector<256x128xi1>, vector<256x128xi32>
    %cst_18 = arith.constant dense<2147483647> : vector<256xi32>
    %29 = vector.multi_reduction <minsi>, %28, %cst_18 [1] : vector<256x128xi32> to vector<256xi32>
    %30 = vector.shape_cast %29 : vector<256xi32> to vector<256x1xi32>
    %c0_19 = arith.constant 0 : index
    %c0_20 = arith.constant 0 : index
    %31 = vector.load %arg9[%c0_19, %c0_20] : memref<256x1xi32, #tpu.memory_space<vmem>>, vector<256x1xi32>
    tpu.vector_store %arg9[%c0_19, %c0_20], %30 {strides = array<i32>} : memref<256x1xi32, #tpu.memory_space<vmem>>, vector<256x1xi32>,
    %32 = vector.broadcast %24 : vector<256x1xf32> to vector<256x128xf32>
    %33 = arith.subf %22, %32 : vector<256x128xf32>
    %34 = math.exp %33 : vector<256x128xf32>
    %cst_21 = arith.constant dense<0.000000e+00> : vector<256xf32>
    %35 = vector.multi_reduction <add>, %34, %cst_21 [1] : vector<256x128xf32> to vector<256xf32>
    %36 = vector.shape_cast %35 : vector<256xf32> to vector<256x1xf32>
    %37 = math.log %36 : vector<256x1xf32>
    %38 = arith.addf %24, %37 : vector<256x1xf32>
    %c0_22 = arith.constant 0 : index
    %c0_23 = arith.constant 0 : index
    %39 = vector.load %arg3[%c0_22, %c0_23] : memref<256x1xi32, #tpu.memory_space<vmem>>, vector<256x1xi32>
    %40 = vector.broadcast %39 : vector<256x1xi32> to vector<256x128xi32>
    %41 = arith.cmpi eq, %18, %40 : vector<256x128xi32>
    %42 = arith.extui %41 : vector<256x128xi1> to vector<256x128xi32>
    %43 = arith.sitofp %42 : vector<256x128xi32> to vector<256x128xf32>
    %44 = arith.mulf %17, %43 : vector<256x128xf32>
    %cst_24 = arith.constant dense<0.000000e+00> : vector<256xf32>
    %45 = vector.multi_reduction <add>, %44, %cst_24 [1] : vector<256x128xf32> to vector<256xf32>
    %46 = vector.shape_cast %45 : vector<256xf32> to vector<256x1xf32>
    %c-1_i32 = arith.constant -1 : i32
    %47 = vector.broadcast %c-1_i32 : i32 to vector<256x1xi32>
    %48 = arith.cmpi ne, %39, %47 : vector<256x1xi32>
    %49 = arith.extui %48 : vector<256x1xi1> to vector<256x1xi32>
    %50 = arith.sitofp %49 : vector<256x1xi32> to vector<256x1xf32>
    %51 = arith.subf %38, %46 : vector<256x1xf32>
    %52 = arith.mulf %51, %50 : vector<256x1xf32>
    %53 = vector.shape_cast %52 : vector<256x1xf32> to vector<1x256x1xf32>
    %cst_25 = arith.constant dense<0.000000e+00> : vector<1xf32>
    %54 = vector.multi_reduction <add>, %53, %cst_25 [1, 2] : vector<1x256x1xf32> to vector<1xf32>
    %55 = vector.shape_cast %54 : vector<1xf32> to vector<1x1x1xf32>
    %56 = vector.extract %55[0, 0, 0] : f32 from vector<1x1x1xf32>
    %57 = vector.shape_cast %50 : vector<256x1xf32> to vector<1x256x1xf32>
    %cst_26 = arith.constant dense<0.000000e+00> : vector<1xf32>
    %58 = vector.multi_reduction <add>, %57, %cst_26 [1, 2] : vector<1x256x1xf32> to vector<1xf32>
    %59 = vector.shape_cast %58 : vector<1xf32> to vector<1x1x1xf32>
    %60 = vector.extract %59[0, 0, 0] : f32 from vector<1x1x1xf32>
    %61 = tpu.iota {dimensions = array<i32: 0>} : vector<8x128xi32>
    %62 = tpu.iota {dimensions = array<i32: 1>} : vector<8x128xi32>
    %c0_i32 = arith.constant 0 : i32
    %63 = vector.broadcast %c0_i32 : i32 to vector<8x128xi32>
    %64 = arith.cmpi eq, %61, %63 : vector<8x128xi32>
    %c0_i32_27 = arith.constant 0 : i32
    %65 = vector.broadcast %c0_i32_27 : i32 to vector<8x128xi32>
    %66 = arith.cmpi eq, %62, %65 : vector<8x128xi32>
    %67 = arith.andi %64, %66 : vector<8x128xi1>
    %c0_i32_28 = arith.constant 0 : i32
    %68 = vector.broadcast %c0_i32_28 : i32 to vector<8x128xi32>
    %69 = arith.cmpi eq, %61, %68 : vector<8x128xi32>
    %c1_i32 = arith.constant 1 : i32
    %70 = vector.broadcast %c1_i32 : i32 to vector<8x128xi32>
    %71 = arith.cmpi eq, %62, %70 : vector<8x128xi32>
    %72 = arith.andi %69, %71 : vector<8x128xi1>
    %cst_29 = arith.constant 0.000000e+00 : f32
    %73 = vector.broadcast %60 : f32 to vector<8x128xf32>
    %74 = vector.broadcast %cst_29 : f32 to vector<8x128xf32>
    %75 = arith.select %72, %73, %74 : vector<8x128xi1>, vector<8x128xf32>
    %76 = vector.broadcast %56 : f32 to vector<8x128xf32>
    %77 = arith.select %67, %76, %75 : vector<8x128xi1>, vector<8x128xf32>
    %c0_30 = arith.constant 0 : index
    %c0_31 = arith.constant 0 : index
    %78 = vector.load %arg10[%c0_30, %c0_31] : memref<8x128xf32, #tpu.memory_space<vmem>>, vector<8x128xf32>
    tpu.vector_store %arg10[%c0_30, %c0_31], %77 {strides = array<i32>} : memref<8x128xf32, #tpu.memory_space<vmem>>, vector<8x128xf32>,
    return
  }
  func.func @transform_0(%arg0: i32) -> (i32, i32) {
    %c0_i32 = arith.constant 0 : i32
    %c0_i32_0 = arith.constant 0 : i32
    return %arg0, %c0_i32 : i32, i32
  }
  func.func @transform_1(%arg0: i32) -> (i32, i32) {
    %c0_i32 = arith.constant 0 : i32
    %c0_i32_0 = arith.constant 0 : i32
    return %arg0, %c0_i32 : i32, i32
  }
  func.func @transform_2(%arg0: i32) -> (i32, i32) {
    %c0_i32 = arith.constant 0 : i32
    %c0_i32_0 = arith.constant 0 : i32
    return %arg0, %c0_i32 : i32, i32
  }
  func.func @transform_3(%arg0: i32) -> (i32, i32) {
    %c0_i32 = arith.constant 0 : i32
    %c0_i32_0 = arith.constant 0 : i32
    %c0_i32_1 = arith.constant 0 : i32
    return %c0_i32, %c0_i32_0 : i32, i32
  }
  func.func @transform_4(%arg0: i32) -> (i32, i32) {
    %c0_i32 = arith.constant 0 : i32
    %c0_i32_0 = arith.constant 0 : i32
    %c0_i32_1 = arith.constant 0 : i32
    return %c0_i32, %c0_i32_0 : i32, i32
  }
  func.func @transform_5(%arg0: i32) -> (i32, i32) {
    %c0_i32 = arith.constant 0 : i32
    %c0_i32_0 = arith.constant 0 : i32
    %c0_i32_1 = arith.constant 0 : i32
    return %c0_i32, %c0_i32_0 : i32, i32
  }
  func.func @transform_6(%arg0: i32) -> (i32, i32) {
    %c0_i32 = arith.constant 0 : i32
    %c0_i32_0 = arith.constant 0 : i32
    %c0_i32_1 = arith.constant 0 : i32
    return %c0_i32, %c0_i32_0 : i32, i32
  }
  func.func @transform_7(%arg0: i32) -> (i32, i32) {
    %c0_i32 = arith.constant 0 : i32
    %c0_i32_0 = arith.constant 0 : i32
    %c0_i32_1 = arith.constant 0 : i32
    return %c0_i32, %c0_i32_0 : i32, i32
  }
  func.func @transform_8(%arg0: i32) -> (i32, i32) {
    %c0_i32 = arith.constant 0 : i32
    %c0_i32_0 = arith.constant 0 : i32
    return %arg0, %c0_i32 : i32, i32
  }
  func.func @transform_9(%arg0: i32) -> (i32, i32) {
    %c0_i32 = arith.constant 0 : i32
    %c0_i32_0 = arith.constant 0 : i32
    return %arg0, %c0_i32 : i32, i32
  }
}

</mosaic_0001>

<llo_original>
// kernel: tpu_custom_call.1
$region0: #{tpu_custom_call.1}
  #allocation0 [shape = 'u32[]', space=smem, size = 0x4, offset = 0x4, fixed_abs, tag = 'smem constant byte address 0x4 - core index']
  #allocation1 [shape = 'u32[144,128]{1,0:T(1,128)}', space=vmem, size = 0x12000, scoped, tag = 'internal scratch']
  %s0 = inlined_call_operand.vmem [shape: bf16[256,32], index: 0, kind: input, shape index: {}]
  %s1 = inlined_call_operand.vmem [shape: bf16[256,16], index: 1, kind: input, shape index: {}]
  %s2 = inlined_call_operand.vmem [shape: s32[256,1], index: 2, kind: input, shape index: {}]
  %s3 = inlined_call_operand.vmem [shape: bf16[32,32], index: 3, kind: input, shape index: {}]
  %s4 = inlined_call_operand.vmem [shape: f32[1,32], index: 4, kind: input, shape index: {}]
  %s5 = inlined_call_operand.vmem [shape: bf16[32,128], index: 5, kind: input, shape index: {}]
  %s6 = inlined_call_operand.vmem [shape: bf16[16,128], index: 6, kind: input, shape index: {}]
  %s7 = inlined_call_operand.vmem [shape: f32[1,128], index: 7, kind: input, shape index: {}]
  %s8 = inlined_call_operand.vmem [shape: s32[256,1], index: 8, kind: output, shape index: {0}]
  %s9 = inlined_call_operand.hbm [shape: f32[8,128], index: 9, kind: output, shape index: {1}]
  %10 = xla_tuple %s8, %s9
  %s11 = sld [smem:[#allocation0]]
  $region50: #{tpu_custom_call.1} parent=0
    _
  %s13 = ssub.s32 1, %s11
  %s14 = scalar_select 0, %s13, %s11
  $region1: #{tpu_custom_call.1} parent=0
    #allocation2 [shape = 'u8[4096]{0}', space=vmem, size = 0x1000, scoped, tag = 'output window, operand 1, single buffered']
    #allocation3 [shape = 's32[1]{0}', space=sflag, size = 0x4, scoped, tag = 'scoped memory for tpu_custom_call.1']
    %15 = vsyncpa [#allocation3], 0
    // Predicated region
    $region2: #{tpu_custom_call.1} parent=1 // pred_check
      _
    $region3: #{tpu_custom_call.1} parent=1 // pred_check_branch
      %17 = sbr.rel (0) target = $region5
    $region4: #{tpu_custom_call.1} parent=1 // pred_region
      _
    $region5: #{tpu_custom_call.1} parent=1 // pred_fallthru
      _
    // Predicated region
    $region6: #{tpu_custom_call.1} parent=1 // pred_check
      _
    $region7: #{tpu_custom_call.1} parent=1 // pred_check_branch
      %19 = sbr.rel (0) target = $region9
    $region8: #{tpu_custom_call.1} parent=1 // pred_region
      _
    $region9: #{tpu_custom_call.1} parent=1 // pred_fallthru
      _
    // Predicated region
    $region10: #{tpu_custom_call.1} parent=1 // pred_check
      _
    $region11: #{tpu_custom_call.1} parent=1 // pred_check_branch
      %21 = sbr.rel (0) target = $region13
    $region12: #{tpu_custom_call.1} parent=1 // pred_region
      _
    $region13: #{tpu_custom_call.1} parent=1 // pred_fallthru
      _
    // Predicated region
    $region14: #{tpu_custom_call.1} parent=1 // pred_check
      _
    $region15: #{tpu_custom_call.1} parent=1 // pred_check_branch
      %23 = sbr.rel (0) target = $region17
    $region16: #{tpu_custom_call.1} parent=1 // pred_region
      _
    $region17: #{tpu_custom_call.1} parent=1 // pred_fallthru
      _
    // Predicated region
    $region18: #{tpu_custom_call.1} parent=1 // pred_check
      _
    $region19: #{tpu_custom_call.1} parent=1 // pred_check_branch
      %25 = sbr.rel (0) target = $region21
    $region20: #{tpu_custom_call.1} parent=1 // pred_region
      _
    $region21: #{tpu_custom_call.1} parent=1 // pred_fallthru
      _
    // Predicated region
    $region22: #{tpu_custom_call.1} parent=1 // pred_check
      _
    $region23: #{tpu_custom_call.1} parent=1 // pred_check_branch
      %27 = sbr.rel (0) target = $region25
    $region24: #{tpu_custom_call.1} parent=1 // pred_region
      _
    $region25: #{tpu_custom_call.1} parent=1 // pred_fallthru
      _
    // Predicated region
    $region26: #{tpu_custom_call.1} parent=1 // pred_check
      _
    $region27: #{tpu_custom_call.1} parent=1 // pred_check_branch
      %29 = sbr.rel (0) target = $region29
    $region28: #{tpu_custom_call.1} parent=1 // pred_region
      _
    $region29: #{tpu_custom_call.1} parent=1 // pred_fallthru
      _
    // Predicated region
    $region30: #{tpu_custom_call.1} parent=1 // pred_check
      _
    $region31: #{tpu_custom_call.1} parent=1 // pred_check_branch
      %31 = sbr.rel (0) target = $region33
    $region32: #{tpu_custom_call.1} parent=1 // pred_region
      _
    $region33: #{tpu_custom_call.1} parent=1 // pred_fallthru
      _
    %v33 = vld [vmem:[%s0] sm:$0xf]
    %v34 = vld [vmem:[%s0 + $0x4] sm:$0xf]
    %v35 = vld [vmem:[%s0 + $0x8] sm:$0xf]
    %v36 = vld [vmem:[%s0 + $0xc] sm:$0xf]
    %v37 = vld [vmem:[%s0 + $0x10] sm:$0xf]
    %v38 = vld [vmem:[%s0 + $0x14] sm:$0xf]
    %v39 = vld [vmem:[%s0 + $0x18] sm:$0xf]
    %v40 = vld [vmem:[%s0 + $0x1c] sm:$0xf]
    %v41 = vld [vmem:[%s0 + $0x20] sm:$0xf]
    %v42 = vld [vmem:[%s0 + $0x24] sm:$0xf]
    %v43 = vld [vmem:[%s0 + $0x28] sm:$0xf]
    %v44 = vld [vmem:[%s0 + $0x2c] sm:$0xf]
    %v45 = vld [vmem:[%s0 + $0x30] sm:$0xf]
    %v46 = vld [vmem:[%s0 + $0x34] sm:$0xf]
    %v47 = vld [vmem:[%s0 + $0x38] sm:$0xf]
    %v48 = vld [vmem:[%s0 + $0x3c] sm:$0xf]
    %v49 = vld [vmem:[%s0 + $0x40] sm:$0xf]
    %v50 = vld [vmem:[%s0 + $0x44] sm:$0xf]
    %v51 = vld [vmem:[%s0 + $0x48] sm:$0xf]
    %v52 = vld [vmem:[%s0 + $0x4c] sm:$0xf]
    %v53 = vld [vmem:[%s0 + $0x50] sm:$0xf]
    %v54 = vld [vmem:[%s0 + $0x54] sm:$0xf]
    %v55 = vld [vmem:[%s0 + $0x58] sm:$0xf]
    %v56 = vld [vmem:[%s0 + $0x5c] sm:$0xf]
    %v57 = vld [vmem:[%s0 + $0x60] sm:$0xf]
    %v58 = vld [vmem:[%s0 + $0x64] sm:$0xf]
    %v59 = vld [vmem:[%s0 + $0x68] sm:$0xf]
    %v60 = vld [vmem:[%s0 + $0x6c] sm:$0xf]
    %v61 = vld [vmem:[%s0 + $0x70] sm:$0xf]
    %v62 = vld [vmem:[%s0 + $0x74] sm:$0xf]
    %v63 = vld [vmem:[%s0 + $0x78] sm:$0xf]
    %v64 = vld [vmem:[%s0 + $0x7c] sm:$0xf]
    %v65 = vld [vmem:[%s3] sm:$0xf]
    %v66 = vld [vmem:[%s3 + $0x4] sm:$0xf]
    %v67 = vld [vmem:[%s3 + $0x8] sm:$0xf]
    %v68 = vld [vmem:[%s3 + $0xc] sm:$0xf]
    %v69 = vld [vmem:[%s4] sm:$0x1]
    %v71 = vlaneseq
    %v72 = vshrl.u32 %v71, 7
    %v73 = vsub.s32 0, %v72
    %v74 = vrot.slane %v69, %v73
    %v108 = vunpack.c.l.b16 %v33
    %v109 = vunpack.c.l.b16 %v34
    %v110 = vunpack.c.l.b16 %v35
    %v111 = vunpack.c.l.b16 %v36
    %v112 = vunpack.c.l.b16 %v37
    %v113 = vunpack.c.l.b16 %v38
    %v114 = vunpack.c.l.b16 %v39
    %v115 = vunpack.c.l.b16 %v40
    %v116 = vunpack.c.l.b16 %v41
    %v117 = vunpack.c.l.b16 %v42
    %v118 = vunpack.c.l.b16 %v43
    %v119 = vunpack.c.l.b16 %v44
    %v120 = vunpack.c.l.b16 %v45
    %v121 = vunpack.c.l.b16 %v46
    %v122 = vunpack.c.l.b16 %v47
    %v123 = vunpack.c.l.b16 %v48
    %v124 = vunpack.c.l.b16 %v49
    %v125 = vunpack.c.l.b16 %v50
    %v126 = vunpack.c.l.b16 %v51
    %v127 = vunpack.c.l.b16 %v52
    %v128 = vunpack.c.l.b16 %v53
    %v129 = vunpack.c.l.b16 %v54
    %v130 = vunpack.c.l.b16 %v55
    %v131 = vunpack.c.l.b16 %v56
    %v132 = vunpack.c.l.b16 %v57
    %v133 = vunpack.c.l.b16 %v58
    %v134 = vunpack.c.l.b16 %v59
    %v135 = vunpack.c.l.b16 %v60
    %v136 = vunpack.c.l.b16 %v61
    %v137 = vunpack.c.l.b16 %v62
    %v138 = vunpack.c.l.b16 %v63
    %v139 = vunpack.c.l.b16 %v64
    %v140 = vpack.c.b16 %v109, %v108
    %v141 = vpack.c.b16 %v111, %v110
    %v142 = vpack.c.b16 %v113, %v112
    %v143 = vpack.c.b16 %v115, %v114
    %v144 = vpack.c.b16 %v117, %v116
    %v145 = vpack.c.b16 %v119, %v118
    %v146 = vpack.c.b16 %v121, %v120
    %v147 = vpack.c.b16 %v123, %v122
    %v148 = vpack.c.b16 %v125, %v124
    %v149 = vpack.c.b16 %v127, %v126
    %v150 = vpack.c.b16 %v129, %v128
    %v151 = vpack.c.b16 %v131, %v130
    %v152 = vpack.c.b16 %v133, %v132
    %v153 = vpack.c.b16 %v135, %v134
    %v154 = vpack.c.b16 %v137, %v136
    %v155 = vpack.c.b16 %v139, %v138
    %v160 = vunpack.c.l.b16 %v65
    %v161 = vunpack.c.l.b16 %v66
    %v162 = vunpack.c.l.b16 %v67
    %v163 = vunpack.c.l.b16 %v68
    %v164 = vpack.c.b16 %v161, %v160
    %v165 = vpack.c.b16 %v163, %v162
    %vm168 = vcmask 261120
    %v170 = vsel %vm168, %v140, 0
    %v173 = vsel %vm168, %v141, 0
    %v176 = vsel %vm168, %v142, 0
    %v179 = vsel %vm168, %v143, 0
    %v182 = vsel %vm168, %v144, 0
    %v185 = vsel %vm168, %v145, 0
    %v188 = vsel %vm168, %v146, 0
    %v191 = vsel %vm168, %v147, 0
    %v194 = vsel %vm168, %v148, 0
    %v197 = vsel %vm168, %v149, 0
    %v200 = vsel %vm168, %v150, 0
    %v203 = vsel %vm168, %v151, 0
    %v206 = vsel %vm168, %v152, 0
    %v209 = vsel %vm168, %v153, 0
    %v212 = vsel %vm168, %v154, 0
    %v215 = vsel %vm168, %v155, 0
    %217 = vmatprep.subr.bf16.mxu0 0
    %218 = vmatpush1.bf16.msra.mxu0 %v164
    %219 = vmatprep.subr.bf16.mxu0 0
    %220 = vmatpush1.bf16.msra.mxu0 %v165
    %221 = vmatprep.subr.bf16.mxu0 0
    %222 = vmatpush1.bf16.msra.mxu0 0
    %223 = vmatprep.subr.bf16.mxu0 0
    %224 = vmatpush1.bf16.msra.mxu0 0
    %225 = vmatprep.subr.bf16.mxu0 0
    %226 = vmatpush1.bf16.msra.mxu0 0
    %227 = vmatprep.subr.bf16.mxu0 0
    %228 = vmatpush1.bf16.msra.mxu0 0
    %229 = vmatprep.subr.bf16.mxu0 0
    %230 = vmatpush1.bf16.msra.mxu0 0
    %231 = vmatprep.subr.bf16.mxu0 0
    %232 = vmatpush1.bf16.msra.mxu0 0
    %233 = vmatprep.subr.bf16.mxu0 0
    %234 = vmatpush1.bf16.msra.mxu0 0
    %235 = vmatprep.subr.bf16.mxu0 0
    %236 = vmatpush1.bf16.msra.mxu0 0
    %237 = vmatprep.subr.bf16.mxu0 0
    %238 = vmatpush1.bf16.msra.mxu0 0
    %239 = vmatprep.subr.bf16.mxu0 0
    %240 = vmatpush1.bf16.msra.mxu0 0
    %241 = vmatprep.subr.bf16.mxu0 0
    %242 = vmatpush1.bf16.msra.mxu0 0
    %243 = vmatprep.subr.bf16.mxu0 0
    %244 = vmatpush1.bf16.msra.mxu0 0
    %245 = vmatprep.subr.bf16.mxu0 0
    %246 = vmatpush1.bf16.msra.mxu0 0
    %247 = vmatprep.subr.bf16.mxu0 0
    %248 = vmatpush1.bf16.msra.mxu0 0
    %249 = vmatprep.mubr.bf16.mxu0 0
    %250 = vmatmul.mubr.bf16.gmra.mrb[0].mxu0 %v170
    %v251 = vpop.f32.mrb[0].mxu0
    %v252 = vadd.f32 %v74, %v251
    %v253 = vpop.f32.mrb[0].mxu0
    %v254 = vpop.f32.mrb[0].mxu0
    %v255 = vadd.f32 %v74, %v254
    %v256 = vpop.f32.mrb[0].mxu0
    %257 = vmatprep.mubr.bf16.mxu0 0
    %258 = vmatmul.mubr.bf16.gmra.mrb[0].mxu0 %v173
    %v259 = vpop.f32.mrb[0].mxu0
    %v260 = vadd.f32 %v74, %v259
    %v261 = vpop.f32.mrb[0].mxu0
    %v262 = vpop.f32.mrb[0].mxu0
    %v263 = vadd.f32 %v74, %v262
    %v264 = vpop.f32.mrb[0].mxu0
    %265 = vmatprep.mubr.bf16.mxu0 0
    %266 = vmatmul.mubr.bf16.gmra.mrb[0].mxu0 %v176
    %v267 = vpop.f32.mrb[0].mxu0
    %v268 = vadd.f32 %v74, %v267
    %v269 = vpop.f32.mrb[0].mxu0
    %v270 = vpop.f32.mrb[0].mxu0
    %v271 = vadd.f32 %v74, %v270
    %v272 = vpop.f32.mrb[0].mxu0
    %273 = vmatprep.mubr.bf16.mxu0 0
    %274 = vmatmul.mubr.bf16.gmra.mrb[0].mxu0 %v179
    %v275 = vpop.f32.mrb[0].mxu0
    %v276 = vadd.f32 %v74, %v275
    %v277 = vpop.f32.mrb[0].mxu0
    %v278 = vpop.f32.mrb[0].mxu0
    %v279 = vadd.f32 %v74, %v278
    %v280 = vpop.f32.mrb[0].mxu0
    %281 = vmatprep.mubr.bf16.mxu0 0
    %282 = vmatmul.mubr.bf16.gmra.mrb[0].mxu0 %v182
    %v283 = vpop.f32.mrb[0].mxu0
    %v284 = vadd.f32 %v74, %v283
    %v285 = vpop.f32.mrb[0].mxu0
    %v286 = vpop.f32.mrb[0].mxu0
    %v287 = vadd.f32 %v74, %v286
    %v288 = vpop.f32.mrb[0].mxu0
    %289 = vmatprep.mubr.bf16.mxu0 0
    %290 = vmatmul.mubr.bf16.gmra.mrb[0].mxu0 %v185
    %v291 = vpop.f32.mrb[0].mxu0
    %v292 = vadd.f32 %v74, %v291
    %v293 = vpop.f32.mrb[0].mxu0
    %v294 = vpop.f32.mrb[0].mxu0
    %v295 = vadd.f32 %v74, %v294
    %v296 = vpop.f32.mrb[0].mxu0
    %297 = vmatprep.mubr.bf16.mxu0 0
    %298 = vmatmul.mubr.bf16.gmra.mrb[0].mxu0 %v188
    %v299 = vpop.f32.mrb[0].mxu0
    %v300 = vadd.f32 %v74, %v299
    %v301 = vpop.f32.mrb[0].mxu0
    %v302 = vpop.f32.mrb[0].mxu0
    %v303 = vadd.f32 %v74, %v302
    %v304 = vpop.f32.mrb[0].mxu0
    %305 = vmatprep.mubr.bf16.mxu0 0
    %306 = vmatmul.mubr.bf16.gmra.mrb[0].mxu0 %v191
    %v307 = vpop.f32.mrb[0].mxu0
    %v308 = vadd.f32 %v74, %v307
    %v309 = vpop.f32.mrb[0].mxu0
    %v310 = vpop.f32.mrb[0].mxu0
    %v311 = vadd.f32 %v74, %v310
    %v312 = vpop.f32.mrb[0].mxu0
    %313 = vmatprep.mubr.bf16.mxu0 0
    %314 = vmatmul.mubr.bf16.gmra.mrb[0].mxu0 %v194
    %v315 = vpop.f32.mrb[0].mxu0
    %v316 = vadd.f32 %v74, %v315
    %v317 = vpop.f32.mrb[0].mxu0
    %v318 = vpop.f32.mrb[0].mxu0
    %v319 = vadd.f32 %v74, %v318
    %v320 = vpop.f32.mrb[0].mxu0
    %321 = vmatprep.mubr.bf16.mxu0 0
    %322 = vmatmul.mubr.bf16.gmra.mrb[0].mxu0 %v197
    %v323 = vpop.f32.mrb[0].mxu0
    %v324 = vadd.f32 %v74, %v323
    %v325 = vpop.f32.mrb[0].mxu0
    %v326 = vpop.f32.mrb[0].mxu0
    %v327 = vadd.f32 %v74, %v326
    %v328 = vpop.f32.mrb[0].mxu0
    %329 = vmatprep.mubr.bf16.mxu0 0
    %330 = vmatmul.mubr.bf16.gmra.mrb[0].mxu0 %v200
    %v331 = vpop.f32.mrb[0].mxu0
    %v332 = vadd.f32 %v74, %v331
    %v333 = vpop.f32.mrb[0].mxu0
    %v334 = vpop.f32.mrb[0].mxu0
    %v335 = vadd.f32 %v74, %v334
    %v336 = vpop.f32.mrb[0].mxu0
    %337 = vmatprep.mubr.bf16.mxu0 0
    %338 = vmatmul.mubr.bf16.gmra.mrb[0].mxu0 %v203
    %v339 = vpop.f32.mrb[0].mxu0
    %v340 = vadd.f32 %v74, %v339
    %v341 = vpop.f32.mrb[0].mxu0
    %v342 = vpop.f32.mrb[0].mxu0
    %v343 = vadd.f32 %v74, %v342
    %v344 = vpop.f32.mrb[0].mxu0
    %345 = vmatprep.mubr.bf16.mxu0 0
    %346 = vmatmul.mubr.bf16.gmra.mrb[0].mxu0 %v206
    %v347 = vpop.f32.mrb[0].mxu0
    %v348 = vadd.f32 %v74, %v347
    %v349 = vpop.f32.mrb[0].mxu0
    %v350 = vpop.f32.mrb[0].mxu0
    %v351 = vadd.f32 %v74, %v350
    %v352 = vpop.f32.mrb[0].mxu0
    %353 = vmatprep.mubr.bf16.mxu0 0
    %354 = vmatmul.mubr.bf16.gmra.mrb[0].mxu0 %v209
    %v355 = vpop.f32.mrb[0].mxu0
    %v356 = vadd.f32 %v74, %v355
    %v357 = vpop.f32.mrb[0].mxu0
    %v358 = vpop.f32.mrb[0].mxu0
    %v359 = vadd.f32 %v74, %v358
    %v360 = vpop.f32.mrb[0].mxu0
    %361 = vmatprep.mubr.bf16.mxu0 0
    %362 = vmatmul.mubr.bf16.gmra.mrb[0].mxu0 %v212
    %v363 = vpop.f32.mrb[0].mxu0
    %v364 = vadd.f32 %v74, %v363
    %v365 = vpop.f32.mrb[0].mxu0
    %v366 = vpop.f32.mrb[0].mxu0
    %v367 = vadd.f32 %v74, %v366
    %v368 = vpop.f32.mrb[0].mxu0
    %369 = vmatprep.mubr.bf16.mxu0 0
    %370 = vmatmul.mubr.bf16.gmra.mrb[0].mxu0 %v215
    %v371 = vpop.f32.mrb[0].mxu0
    %v372 = vadd.f32 %v74, %v371
    %v373 = vpop.f32.mrb[0].mxu0
    %v374 = vpop.f32.mrb[0].mxu0
    %v375 = vadd.f32 %v74, %v374
    %v376 = vpop.f32.mrb[0].mxu0
    %377 = vdwg.mxu0
    %v378 = vmax.f32 %v252, 0.0
    %v379 = vmax.f32 %v255, 0.0
    %v380 = vmax.f32 %v260, 0.0
    %v381 = vmax.f32 %v263, 0.0
    %v382 = vmax.f32 %v268, 0.0
    %v383 = vmax.f32 %v271, 0.0
    %v384 = vmax.f32 %v276, 0.0
    %v385 = vmax.f32 %v279, 0.0
    %v386 = vmax.f32 %v284, 0.0
    %v387 = vmax.f32 %v287, 0.0
    %v388 = vmax.f32 %v292, 0.0
    %v389 = vmax.f32 %v295, 0.0
    %v390 = vmax.f32 %v300, 0.0
    %v391 = vmax.f32 %v303, 0.0
    %v392 = vmax.f32 %v308, 0.0
    %v393 = vmax.f32 %v311, 0.0
    %v394 = vmax.f32 %v316, 0.0
    %v395 = vmax.f32 %v319, 0.0
    %v396 = vmax.f32 %v324, 0.0
    %v397 = vmax.f32 %v327, 0.0
    %v398 = vmax.f32 %v332, 0.0
    %v399 = vmax.f32 %v335, 0.0
    %v400 = vmax.f32 %v340, 0.0
    %v401 = vmax.f32 %v343, 0.0
    %v402 = vmax.f32 %v348, 0.0
    %v403 = vmax.f32 %v351, 0.0
    %v404 = vmax.f32 %v356, 0.0
    %v405 = vmax.f32 %v359, 0.0
    %v406 = vmax.f32 %v364, 0.0
    %v407 = vmax.f32 %v367, 0.0
    %v408 = vmax.f32 %v372, 0.0
    %v409 = vmax.f32 %v375, 0.0
    %v410 = vpack.c.bf16 %v379, %v378
    %v411 = vpack.c.bf16 %v381, %v380
    %v412 = vpack.c.bf16 %v383, %v382
    %v413 = vpack.c.bf16 %v385, %v384
    %v414 = vpack.c.bf16 %v387, %v386
    %v415 = vpack.c.bf16 %v389, %v388
    %v416 = vpack.c.bf16 %v391, %v390
    %v417 = vpack.c.bf16 %v393, %v392
    %v418 = vpack.c.bf16 %v395, %v394
    %v419 = vpack.c.bf16 %v397, %v396
    %v420 = vpack.c.bf16 %v399, %v398
    %v421 = vpack.c.bf16 %v401, %v400
    %v422 = vpack.c.bf16 %v403, %v402
    %v423 = vpack.c.bf16 %v405, %v404
    %v424 = vpack.c.bf16 %v407, %v406
    %v425 = vpack.c.bf16 %v409, %v408
    %v426 = vld [vmem:[%s5] sm:$0xf]
    %v427 = vld [vmem:[%s5 + $0x4] sm:$0xf]
    %v428 = vld [vmem:[%s5 + $0x8] sm:$0xf]
    %v429 = vld [vmem:[%s5 + $0xc] sm:$0xf]
    %v430 = vld [vmem:[%s1] sm:$0xf]
    %v431 = vld [vmem:[%s1 + $0x4] sm:$0xf]
    %v432 = vld [vmem:[%s1 + $0x8] sm:$0xf]
    %v433 = vld [vmem:[%s1 + $0xc] sm:$0xf]
    %v434 = vld [vmem:[%s1 + $0x10] sm:$0xf]
    %v435 = vld [vmem:[%s1 + $0x14] sm:$0xf]
    %v436 = vld [vmem:[%s1 + $0x18] sm:$0xf]
    %v437 = vld [vmem:[%s1 + $0x1c] sm:$0xf]
    %v438 = vld [vmem:[%s1 + $0x20] sm:$0xf]
    %v439 = vld [vmem:[%s1 + $0x24] sm:$0xf]
    %v440 = vld [vmem:[%s1 + $0x28] sm:$0xf]
    %v441 = vld [vmem:[%s1 + $0x2c] sm:$0xf]
    %v442 = vld [vmem:[%s1 + $0x30] sm:$0xf]
    %v443 = vld [vmem:[%s1 + $0x34] sm:$0xf]
    %v444 = vld [vmem:[%s1 + $0x38] sm:$0xf]
    %v445 = vld [vmem:[%s1 + $0x3c] sm:$0xf]
    %v446 = vld [vmem:[%s1 + $0x40] sm:$0xf]
    %v447 = vld [vmem:[%s1 + $0x44] sm:$0xf]
    %v448 = vld [vmem:[%s1 + $0x48] sm:$0xf]
    %v449 = vld [vmem:[%s1 + $0x4c] sm:$0xf]
    %v450 = vld [vmem:[%s1 + $0x50] sm:$0xf]
    %v451 = vld [vmem:[%s1 + $0x54] sm:$0xf]
    %v452 = vld [vmem:[%s1 + $0x58] sm:$0xf]
    %v453 = vld [vmem:[%s1 + $0x5c] sm:$0xf]
    %v454 = vld [vmem:[%s1 + $0x60] sm:$0xf]
    %v455 = vld [vmem:[%s1 + $0x64] sm:$0xf]
    %v456 = vld [vmem:[%s1 + $0x68] sm:$0xf]
    %v457 = vld [vmem:[%s1 + $0x6c] sm:$0xf]
    %v458 = vld [vmem:[%s1 + $0x70] sm:$0xf]
    %v459 = vld [vmem:[%s1 + $0x74] sm:$0xf]
    %v460 = vld [vmem:[%s1 + $0x78] sm:$0xf]
    %v461 = vld [vmem:[%s1 + $0x7c] sm:$0xf]
    %v462 = vld [vmem:[%s6] sm:$0xf]
    %v463 = vld [vmem:[%s6 + $0x4] sm:$0xf]
    %v496 = vunpack.c.l.b16 %v430
    %v497 = vunpack.c.l.b16 %v431
    %v498 = vunpack.c.l.b16 %v432
    %v499 = vunpack.c.l.b16 %v433
    %v500 = vunpack.c.l.b16 %v434
    %v501 = vunpack.c.l.b16 %v435
    %v502 = vunpack.c.l.b16 %v436
    %v503 = vunpack.c.l.b16 %v437
    %v504 = vunpack.c.l.b16 %v438
    %v505 = vunpack.c.l.b16 %v439
    %v506 = vunpack.c.l.b16 %v440
    %v507 = vunpack.c.l.b16 %v441
    %v508 = vunpack.c.l.b16 %v442
    %v509 = vunpack.c.l.b16 %v443
    %v510 = vunpack.c.l.b16 %v444
    %v511 = vunpack.c.l.b16 %v445
    %v512 = vunpack.c.l.b16 %v446
    %v513 = vunpack.c.l.b16 %v447
    %v514 = vunpack.c.l.b16 %v448
    %v515 = vunpack.c.l.b16 %v449
    %v516 = vunpack.c.l.b16 %v450
    %v517 = vunpack.c.l.b16 %v451
    %v518 = vunpack.c.l.b16 %v452
    %v519 = vunpack.c.l.b16 %v453
    %v520 = vunpack.c.l.b16 %v454
    %v521 = vunpack.c.l.b16 %v455
    %v522 = vunpack.c.l.b16 %v456
    %v523 = vunpack.c.l.b16 %v457
    %v524 = vunpack.c.l.b16 %v458
    %v525 = vunpack.c.l.b16 %v459
    %v526 = vunpack.c.l.b16 %v460
    %v527 = vunpack.c.l.b16 %v461
    %v528 = vpack.c.b16 %v497, %v496
    %v529 = vpack.c.b16 %v499, %v498
    %v530 = vpack.c.b16 %v501, %v500
    %v531 = vpack.c.b16 %v503, %v502
    %v532 = vpack.c.b16 %v505, %v504
    %v533 = vpack.c.b16 %v507, %v506
    %v534 = vpack.c.b16 %v509, %v508
    %v535 = vpack.c.b16 %v511, %v510
    %v536 = vpack.c.b16 %v513, %v512
    %v537 = vpack.c.b16 %v515, %v514
    %v538 = vpack.c.b16 %v517, %v516
    %v539 = vpack.c.b16 %v519, %v518
    %v540 = vpack.c.b16 %v521, %v520
    %v541 = vpack.c.b16 %v523, %v522
    %v542 = vpack.c.b16 %v525, %v524
    %v543 = vpack.c.b16 %v527, %v526
    %v546 = vunpack.c.l.b16 %v462
    %v547 = vunpack.c.l.b16 %v463
    %v548 = vpack.c.b16 %v547, %v546
    %vm550 = vcmask 130048
    %v552 = vsel %vm550, %v528, 0
    %v555 = vsel %vm550, %v529, 0
    %v558 = vsel %vm550, %v530, 0
    %v561 = vsel %vm550, %v531, 0
    %v564 = vsel %vm550, %v532, 0
    %v567 = vsel %vm550, %v533, 0
    %v570 = vsel %vm550, %v534, 0
    %v573 = vsel %vm550, %v535, 0
    %v576 = vsel %vm550, %v536, 0
    %v579 = vsel %vm550, %v537, 0
    %v582 = vsel %vm550, %v538, 0
    %v585 = vsel %vm550, %v539, 0
    %v588 = vsel %vm550, %v540, 0
    %v591 = vsel %vm550, %v541, 0
    %v594 = vsel %vm550, %v542, 0
    %v597 = vsel %vm550, %v543, 0
    %599 = vmatprep.subr.bf16.mxu0 0
    %600 = vmatpush1.bf16.msra.mxu0 %v548
    %601 = vmatprep.subr.bf16.mxu0 0
    %602 = vmatpush1.bf16.msra.mxu0 0
    %603 = vmatprep.subr.bf16.mxu0 0
    %604 = vmatpush1.bf16.msra.mxu0 0
    %605 = vmatprep.subr.bf16.mxu0 0
    %606 = vmatpush1.bf16.msra.mxu0 0
    %607 = vmatprep.subr.bf16.mxu0 0
    %608 = vmatpush1.bf16.msra.mxu0 0
    %609 = vmatprep.subr.bf16.mxu0 0
    %610 = vmatpush1.bf16.msra.mxu0 0
    %611 = vmatprep.subr.bf16.mxu0 0
    %612 = vmatpush1.bf16.msra.mxu0 0
    %613 = vmatprep.subr.bf16.mxu0 0
    %614 = vmatpush1.bf16.msra.mxu0 0
    %615 = vmatprep.subr.bf16.mxu0 0
    %616 = vmatpush1.bf16.msra.mxu0 0
    %617 = vmatprep.subr.bf16.mxu0 0
    %618 = vmatpush1.bf16.msra.mxu0 0
    %619 = vmatprep.subr.bf16.mxu0 0
    %620 = vmatpush1.bf16.msra.mxu0 0
    %621 = vmatprep.subr.bf16.mxu0 0
    %622 = vmatpush1.bf16.msra.mxu0 0
    %623 = vmatprep.subr.bf16.mxu0 0
    %624 = vmatpush1.bf16.msra.mxu0 0
    %625 = vmatprep.subr.bf16.mxu0 0
    %626 = vmatpush1.bf16.msra.mxu0 0
    %627 = vmatprep.subr.bf16.mxu0 0
    %628 = vmatpush1.bf16.msra.mxu0 0
    %629 = vmatprep.subr.bf16.mxu0 0
    %630 = vmatpush1.bf16.msra.mxu0 0
    %631 = vmatprep.mubr.bf16.mxu0 0
    %632 = vmatmul.mubr.bf16.gmra.mrb[0].mxu0 %v552
    %v633 = vpop.f32.mrb[0].mxu0
    %v634 = vadd.f32 0.0, %v633
    %v635 = vpop.f32.mrb[0].mxu0
    %v636 = vpop.f32.mrb[0].mxu0
    %v637 = vadd.f32 0.0, %v636
    %v638 = vpop.f32.mrb[0].mxu0
    %639 = vmatprep.mubr.bf16.mxu0 0
    %640 = vmatmul.mubr.bf16.gmra.mrb[0].mxu0 %v555
    %v641 = vpop.f32.mrb[0].mxu0
    %v642 = vadd.f32 0.0, %v641
    %v643 = vpop.f32.mrb[0].mxu0
    %v644 = vpop.f32.mrb[0].mxu0
    %v645 = vadd.f32 0.0, %v644
    %v646 = vpop.f32.mrb[0].mxu0
    %647 = vmatprep.mubr.bf16.mxu0 0
    %648 = vmatmul.mubr.bf16.gmra.mrb[0].mxu0 %v558
    %v649 = vpop.f32.mrb[0].mxu0
    %v650 = vadd.f32 0.0, %v649
    %v651 = vpop.f32.mrb[0].mxu0
    %v652 = vpop.f32.mrb[0].mxu0
    %v653 = vadd.f32 0.0, %v652
    %v654 = vpop.f32.mrb[0].mxu0
    %655 = vmatprep.mubr.bf16.mxu0 0
    %656 = vmatmul.mubr.bf16.gmra.mrb[0].mxu0 %v561
    %v657 = vpop.f32.mrb[0].mxu0
    %v658 = vadd.f32 0.0, %v657
    %v659 = vpop.f32.mrb[0].mxu0
    %v660 = vpop.f32.mrb[0].mxu0
    %v661 = vadd.f32 0.0, %v660
    %v662 = vpop.f32.mrb[0].mxu0
    %663 = vmatprep.mubr.bf16.mxu0 0
    %664 = vmatmul.mubr.bf16.gmra.mrb[0].mxu0 %v564
    %v665 = vpop.f32.mrb[0].mxu0
    %v666 = vadd.f32 0.0, %v665
    %v667 = vpop.f32.mrb[0].mxu0
    %v668 = vpop.f32.mrb[0].mxu0
    %v669 = vadd.f32 0.0, %v668
    %v670 = vpop.f32.mrb[0].mxu0
    %671 = vmatprep.mubr.bf16.mxu0 0
    %672 = vmatmul.mubr.bf16.gmra.mrb[0].mxu0 %v567
    %v673 = vpop.f32.mrb[0].mxu0
    %v674 = vadd.f32 0.0, %v673
    %v675 = vpop.f32.mrb[0].mxu0
    %v676 = vpop.f32.mrb[0].mxu0
    %v677 = vadd.f32 0.0, %v676
    %v678 = vpop.f32.mrb[0].mxu0
    %679 = vmatprep.mubr.bf16.mxu0 0
    %680 = vmatmul.mubr.bf16.gmra.mrb[0].mxu0 %v570
    %v681 = vpop.f32.mrb[0].mxu0
    %v682 = vadd.f32 0.0, %v681
    %v683 = vpop.f32.mrb[0].mxu0
    %v684 = vpop.f32.mrb[0].mxu0
    %v685 = vadd.f32 0.0, %v684
    %v686 = vpop.f32.mrb[0].mxu0
    %687 = vmatprep.mubr.bf16.mxu0 0
    %688 = vmatmul.mubr.bf16.gmra.mrb[0].mxu0 %v573
    %v689 = vpop.f32.mrb[0].mxu0
    %v690 = vadd.f32 0.0, %v689
    %v691 = vpop.f32.mrb[0].mxu0
    %v692 = vpop.f32.mrb[0].mxu0
    %v693 = vadd.f32 0.0, %v692
    %v694 = vpop.f32.mrb[0].mxu0
    %695 = vmatprep.mubr.bf16.mxu0 0
    %696 = vmatmul.mubr.bf16.gmra.mrb[0].mxu0 %v576
    %v697 = vpop.f32.mrb[0].mxu0
    %v698 = vadd.f32 0.0, %v697
    %v699 = vpop.f32.mrb[0].mxu0
    %v700 = vpop.f32.mrb[0].mxu0
    %v701 = vadd.f32 0.0, %v700
    %v702 = vpop.f32.mrb[0].mxu0
    %703 = vmatprep.mubr.bf16.mxu0 0
    %704 = vmatmul.mubr.bf16.gmra.mrb[0].mxu0 %v579
    %v705 = vpop.f32.mrb[0].mxu0
    %v706 = vadd.f32 0.0, %v705
    %v707 = vpop.f32.mrb[0].mxu0
    %v708 = vpop.f32.mrb[0].mxu0
    %v709 = vadd.f32 0.0, %v708
    %v710 = vpop.f32.mrb[0].mxu0
    %711 = vmatprep.mubr.bf16.mxu0 0
    %712 = vmatmul.mubr.bf16.gmra.mrb[0].mxu0 %v582
    %v713 = vpop.f32.mrb[0].mxu0
    %v714 = vadd.f32 0.0, %v713
    %v715 = vpop.f32.mrb[0].mxu0
    %v716 = vpop.f32.mrb[0].mxu0
    %v717 = vadd.f32 0.0, %v716
    %v718 = vpop.f32.mrb[0].mxu0
    %719 = vmatprep.mubr.bf16.mxu0 0
    %720 = vmatmul.mubr.bf16.gmra.mrb[0].mxu0 %v585
    %v721 = vpop.f32.mrb[0].mxu0
    %v722 = vadd.f32 0.0, %v721
    %v723 = vpop.f32.mrb[0].mxu0
    %v724 = vpop.f32.mrb[0].mxu0
    %v725 = vadd.f32 0.0, %v724
    %v726 = vpop.f32.mrb[0].mxu0
    %727 = vmatprep.mubr.bf16.mxu0 0
    %728 = vmatmul.mubr.bf16.gmra.mrb[0].mxu0 %v588
    %v729 = vpop.f32.mrb[0].mxu0
    %v730 = vadd.f32 0.0, %v729
    %v731 = vpop.f32.mrb[0].mxu0
    %v732 = vpop.f32.mrb[0].mxu0
    %v733 = vadd.f32 0.0, %v732
    %v734 = vpop.f32.mrb[0].mxu0
    %735 = vmatprep.mubr.bf16.mxu0 0
    %736 = vmatmul.mubr.bf16.gmra.mrb[0].mxu0 %v591
    %v737 = vpop.f32.mrb[0].mxu0
    %v738 = vadd.f32 0.0, %v737
    %v739 = vpop.f32.mrb[0].mxu0
    %v740 = vpop.f32.mrb[0].mxu0
    %v741 = vadd.f32 0.0, %v740
    %v742 = vpop.f32.mrb[0].mxu0
    %743 = vmatprep.mubr.bf16.mxu0 0
    %744 = vmatmul.mubr.bf16.gmra.mrb[0].mxu0 %v594
    %v745 = vpop.f32.mrb[0].mxu0
    %v746 = vadd.f32 0.0, %v745
    %v747 = vpop.f32.mrb[0].mxu0
    %v748 = vpop.f32.mrb[0].mxu0
    %v749 = vadd.f32 0.0, %v748
    %v750 = vpop.f32.mrb[0].mxu0
    %751 = vmatprep.mubr.bf16.mxu0 0
    %752 = vmatmul.mubr.bf16.gmra.mrb[0].mxu0 %v597
    %v753 = vpop.f32.mrb[0].mxu0
    %v754 = vadd.f32 0.0, %v753
    %v755 = vpop.f32.mrb[0].mxu0
    %v756 = vpop.f32.mrb[0].mxu0
    %v757 = vadd.f32 0.0, %v756
    %v758 = vpop.f32.mrb[0].mxu0
    %759 = vdwg.mxu0
    %v764 = vunpack.c.l.b16 %v426
    %v765 = vunpack.c.l.b16 %v427
    %v766 = vunpack.c.l.b16 %v428
    %v767 = vunpack.c.l.b16 %v429
    %v768 = vpack.c.b16 %v765, %v764
    %v769 = vpack.c.b16 %v767, %v766
    %v773 = vsel %vm168, %v410, 0
    %v776 = vsel %vm168, %v411, 0
    %v779 = vsel %vm168, %v412, 0
    %v782 = vsel %vm168, %v413, 0
    %v785 = vsel %vm168, %v414, 0
    %v788 = vsel %vm168, %v415, 0
    %v791 = vsel %vm168, %v416, 0
    %v794 = vsel %vm168, %v417, 0
    %v797 = vsel %vm168, %v418, 0
    %v800 = vsel %vm168, %v419, 0
    %v803 = vsel %vm168, %v420, 0
    %v806 = vsel %vm168, %v421, 0
    %v809 = vsel %vm168, %v422, 0
    %v812 = vsel %vm168, %v423, 0
    %v815 = vsel %vm168, %v424, 0
    %v818 = vsel %vm168, %v425, 0
    %820 = vmatprep.subr.bf16.mxu0 0
    %821 = vmatpush1.bf16.msra.mxu0 %v768
    %822 = vmatprep.subr.bf16.mxu0 0
    %823 = vmatpush1.bf16.msra.mxu0 %v769
    %824 = vmatprep.subr.bf16.mxu0 0
    %825 = vmatpush1.bf16.msra.mxu0 0
    %826 = vmatprep.subr.bf16.mxu0 0
    %827 = vmatpush1.bf16.msra.mxu0 0
    %828 = vmatprep.subr.bf16.mxu0 0
    %829 = vmatpush1.bf16.msra.mxu0 0
    %830 = vmatprep.subr.bf16.mxu0 0
    %831 = vmatpush1.bf16.msra.mxu0 0
    %832 = vmatprep.subr.bf16.mxu0 0
    %833 = vmatpush1.bf16.msra.mxu0 0
    %834 = vmatprep.subr.bf16.mxu0 0
    %835 = vmatpush1.bf16.msra.mxu0 0
    %836 = vmatprep.subr.bf16.mxu0 0
    %837 = vmatpush1.bf16.msra.mxu0 0
    %838 = vmatprep.subr.bf16.mxu0 0
    %839 = vmatpush1.bf16.msra.mxu0 0
    %840 = vmatprep.subr.bf16.mxu0 0
    %841 = vmatpush1.bf16.msra.mxu0 0
    %842 = vmatprep.subr.bf16.mxu0 0
    %843 = vmatpush1.bf16.msra.mxu0 0
    %844 = vmatprep.subr.bf16.mxu0 0
    %845 = vmatpush1.bf16.msra.mxu0 0
    %846 = vmatprep.subr.bf16.mxu0 0
    %847 = vmatpush1.bf16.msra.mxu0 0
    %848 = vmatprep.subr.bf16.mxu0 0
    %849 = vmatpush1.bf16.msra.mxu0 0
    %850 = vmatprep.subr.bf16.mxu0 0
    %851 = vmatpush1.bf16.msra.mxu0 0
    %852 = vmatprep.mubr.bf16.mxu0 0
    %853 = vmatmul.mubr.bf16.gmra.mrb[0].mxu0 %v773
    %v854 = vpop.f32.mrb[0].mxu0
    %v855 = vadd.f32 %v634, %v854
    %v856 = vpop.f32.mrb[0].mxu0
    %v857 = vpop.f32.mrb[0].mxu0
    %v858 = vadd.f32 %v637, %v857
    %v859 = vpop.f32.mrb[0].mxu0
    %860 = vmatprep.mubr.bf16.mxu0 0
    %861 = vmatmul.mubr.bf16.gmra.mrb[0].mxu0 %v776
    %v862 = vpop.f32.mrb[0].mxu0
    %v863 = vadd.f32 %v642, %v862
    %v864 = vpop.f32.mrb[0].mxu0
    %v865 = vpop.f32.mrb[0].mxu0
    %v866 = vadd.f32 %v645, %v865
    %v867 = vpop.f32.mrb[0].mxu0
    %868 = vmatprep.mubr.bf16.mxu0 0
    %869 = vmatmul.mubr.bf16.gmra.mrb[0].mxu0 %v779
    %v870 = vpop.f32.mrb[0].mxu0
    %v871 = vadd.f32 %v650, %v870
    %v872 = vpop.f32.mrb[0].mxu0
    %v873 = vpop.f32.mrb[0].mxu0
    %v874 = vadd.f32 %v653, %v873
    %v875 = vpop.f32.mrb[0].mxu0
    %876 = vmatprep.mubr.bf16.mxu0 0
    %877 = vmatmul.mubr.bf16.gmra.mrb[0].mxu0 %v782
    %v878 = vpop.f32.mrb[0].mxu0
    %v879 = vadd.f32 %v658, %v878
    %v880 = vpop.f32.mrb[0].mxu0
    %v881 = vpop.f32.mrb[0].mxu0
    %v882 = vadd.f32 %v661, %v881
    %v883 = vpop.f32.mrb[0].mxu0
    %884 = vmatprep.mubr.bf16.mxu0 0
    %885 = vmatmul.mubr.bf16.gmra.mrb[0].mxu0 %v785
    %v886 = vpop.f32.mrb[0].mxu0
    %v887 = vadd.f32 %v666, %v886
    %v888 = vpop.f32.mrb[0].mxu0
    %v889 = vpop.f32.mrb[0].mxu0
    %v890 = vadd.f32 %v669, %v889
    %v891 = vpop.f32.mrb[0].mxu0
    %892 = vmatprep.mubr.bf16.mxu0 0
    %893 = vmatmul.mubr.bf16.gmra.mrb[0].mxu0 %v788
    %v894 = vpop.f32.mrb[0].mxu0
    %v895 = vadd.f32 %v674, %v894
    %v896 = vpop.f32.mrb[0].mxu0
    %v897 = vpop.f32.mrb[0].mxu0
    %v898 = vadd.f32 %v677, %v897
    %v899 = vpop.f32.mrb[0].mxu0
    %900 = vmatprep.mubr.bf16.mxu0 0
    %901 = vmatmul.mubr.bf16.gmra.mrb[0].mxu0 %v791
    %v902 = vpop.f32.mrb[0].mxu0
    %v903 = vadd.f32 %v682, %v902
    %v904 = vpop.f32.mrb[0].mxu0
    %v905 = vpop.f32.mrb[0].mxu0
    %v906 = vadd.f32 %v685, %v905
    %v907 = vpop.f32.mrb[0].mxu0
    %908 = vmatprep.mubr.bf16.mxu0 0
    %909 = vmatmul.mubr.bf16.gmra.mrb[0].mxu0 %v794
    %v910 = vpop.f32.mrb[0].mxu0
    %v911 = vadd.f32 %v690, %v910
    %v912 = vpop.f32.mrb[0].mxu0
    %v913 = vpop.f32.mrb[0].mxu0
    %v914 = vadd.f32 %v693, %v913
    %v915 = vpop.f32.mrb[0].mxu0
    %916 = vmatprep.mubr.bf16.mxu0 0
    %917 = vmatmul.mubr.bf16.gmra.mrb[0].mxu0 %v797
    %v918 = vpop.f32.mrb[0].mxu0
    %v919 = vadd.f32 %v698, %v918
    %v920 = vpop.f32.mrb[0].mxu0
    %v921 = vpop.f32.mrb[0].mxu0
    %v922 = vadd.f32 %v701, %v921
    %v923 = vpop.f32.mrb[0].mxu0
    %924 = vmatprep.mubr.bf16.mxu0 0
    %925 = vmatmul.mubr.bf16.gmra.mrb[0].mxu0 %v800
    %v926 = vpop.f32.mrb[0].mxu0
    %v927 = vadd.f32 %v706, %v926
    %v928 = vpop.f32.mrb[0].mxu0
    %v929 = vpop.f32.mrb[0].mxu0
    %v930 = vadd.f32 %v709, %v929
    %v931 = vpop.f32.mrb[0].mxu0
    %932 = vmatprep.mubr.bf16.mxu0 0
    %933 = vmatmul.mubr.bf16.gmra.mrb[0].mxu0 %v803
    %v934 = vpop.f32.mrb[0].mxu0
    %v935 = vadd.f32 %v714, %v934
    %v936 = vpop.f32.mrb[0].mxu0
    %v937 = vpop.f32.mrb[0].mxu0
    %v938 = vadd.f32 %v717, %v937
    %v939 = vpop.f32.mrb[0].mxu0
    %940 = vmatprep.mubr.bf16.mxu0 0
    %941 = vmatmul.mubr.bf16.gmra.mrb[0].mxu0 %v806
    %v942 = vpop.f32.mrb[0].mxu0
    %v943 = vadd.f32 %v722, %v942
    %v944 = vpop.f32.mrb[0].mxu0
    %v945 = vpop.f32.mrb[0].mxu0
    %v946 = vadd.f32 %v725, %v945
    %v947 = vpop.f32.mrb[0].mxu0
    %948 = vmatprep.mubr.bf16.mxu0 0
    %949 = vmatmul.mubr.bf16.gmra.mrb[0].mxu0 %v809
    %v950 = vpop.f32.mrb[0].mxu0
    %v951 = vadd.f32 %v730, %v950
    %v952 = vpop.f32.mrb[0].mxu0
    %v953 = vpop.f32.mrb[0].mxu0
    %v954 = vadd.f32 %v733, %v953
    %v955 = vpop.f32.mrb[0].mxu0
    %956 = vmatprep.mubr.bf16.mxu0 0
    %957 = vmatmul.mubr.bf16.gmra.mrb[0].mxu0 %v812
    %v958 = vpop.f32.mrb[0].mxu0
    %v959 = vadd.f32 %v738, %v958
    %v960 = vpop.f32.mrb[0].mxu0
    %v961 = vpop.f32.mrb[0].mxu0
    %v962 = vadd.f32 %v741, %v961
    %v963 = vpop.f32.mrb[0].mxu0
    %964 = vmatprep.mubr.bf16.mxu0 0
    %965 = vmatmul.mubr.bf16.gmra.mrb[0].mxu0 %v815
    %v966 = vpop.f32.mrb[0].mxu0
    %v967 = vadd.f32 %v746, %v966
    %v968 = vpop.f32.mrb[0].mxu0
    %v969 = vpop.f32.mrb[0].mxu0
    %v970 = vadd.f32 %v749, %v969
    %v971 = vpop.f32.mrb[0].mxu0
    %972 = vmatprep.mubr.bf16.mxu0 0
    %973 = vmatmul.mubr.bf16.gmra.mrb[0].mxu0 %v818
    %v974 = vpop.f32.mrb[0].mxu0
    %v975 = vadd.f32 %v754, %v974
    %v976 = vpop.f32.mrb[0].mxu0
    %v977 = vpop.f32.mrb[0].mxu0
    %v978 = vadd.f32 %v757, %v977
    %v979 = vpop.f32.mrb[0].mxu0
    %980 = vdwg.mxu0
    %v981 = vld [vmem:[%s7] sm:$0x1]
    %v983 = vlaneseq
    %v984 = vshrl.u32 %v983, 7
    %v985 = vsub.s32 0, %v984
    %v986 = vrot.slane %v981, %v985
    %v988 = vadd.f32 %v855, %v986
    %v989 = vadd.f32 %v858, %v986
    %v990 = vadd.f32 %v863, %v986
    %v991 = vadd.f32 %v866, %v986
    %v992 = vadd.f32 %v871, %v986
    %v993 = vadd.f32 %v874, %v986
    %v994 = vadd.f32 %v879, %v986
    %v995 = vadd.f32 %v882, %v986
    %v996 = vadd.f32 %v887, %v986
    %v997 = vadd.f32 %v890, %v986
    %v998 = vadd.f32 %v895, %v986
    %v999 = vadd.f32 %v898, %v986
    %v1000 = vadd.f32 %v903, %v986
    %v1001 = vadd.f32 %v906, %v986
    %v1002 = vadd.f32 %v911, %v986
    %v1003 = vadd.f32 %v914, %v986
    %v1004 = vadd.f32 %v919, %v986
    %v1005 = vadd.f32 %v922, %v986
    %v1006 = vadd.f32 %v927, %v986
    %v1007 = vadd.f32 %v930, %v986
    %v1008 = vadd.f32 %v935, %v986
    %v1009 = vadd.f32 %v938, %v986
    %v1010 = vadd.f32 %v943, %v986
    %v1011 = vadd.f32 %v946, %v986
    %v1012 = vadd.f32 %v951, %v986
    %v1013 = vadd.f32 %v954, %v986
    %v1014 = vadd.f32 %v959, %v986
    %v1015 = vadd.f32 %v962, %v986
    %v1016 = vadd.f32 %v967, %v986
    %v1017 = vadd.f32 %v970, %v986
    %v1018 = vadd.f32 %v975, %v986
    %v1019 = vadd.f32 %v978, %v986
    %v1020 = vlaneseq
    %v1021 = vand.u32 %v1020, 127
    %vm1022 = vcmp.lt.s32.totalorder %v1021, 8
    %v1023 = vsel %vm1022, %v988, -inf
    %v1024 = vsel %vm1022, %v989, -inf
    %v1025 = vsel %vm1022, %v990, -inf
    %v1026 = vsel %vm1022, %v991, -inf
    %v1027 = vsel %vm1022, %v992, -inf
    %v1028 = vsel %vm1022, %v993, -inf
    %v1029 = vsel %vm1022, %v994, -inf
    %v1030 = vsel %vm1022, %v995, -inf
    %v1031 = vsel %vm1022, %v996, -inf
    %v1032 = vsel %vm1022, %v997, -inf
    %v1033 = vsel %vm1022, %v998, -inf
    %v1034 = vsel %vm1022, %v999, -inf
    %v1035 = vsel %vm1022, %v1000, -inf
    %v1036 = vsel %vm1022, %v1001, -inf
    %v1037 = vsel %vm1022, %v1002, -inf
    %v1038 = vsel %vm1022, %v1003, -inf
    %v1039 = vsel %vm1022, %v1004, -inf
    %v1040 = vsel %vm1022, %v1005, -inf
    %v1041 = vsel %vm1022, %v1006, -inf
    %v1042 = vsel %vm1022, %v1007, -inf
    %v1043 = vsel %vm1022, %v1008, -inf
    %v1044 = vsel %vm1022, %v1009, -inf
    %v1045 = vsel %vm1022, %v1010, -inf
    %v1046 = vsel %vm1022, %v1011, -inf
    %v1047 = vsel %vm1022, %v1012, -inf
    %v1048 = vsel %vm1022, %v1013, -inf
    %v1049 = vsel %vm1022, %v1014, -inf
    %v1050 = vsel %vm1022, %v1015, -inf
    %v1051 = vsel %vm1022, %v1016, -inf
    %v1052 = vsel %vm1022, %v1017, -inf
    %v1053 = vsel %vm1022, %v1018, -inf
    %v1054 = vsel %vm1022, %v1019, -inf
    %1055 = vmax.xlane.f32.xlu0 %v1023
    %v1056 = vpop.xlane.xlu0 %1055
    %1057 = vmax.xlane.f32.xlu0 %v1024
    %v1058 = vpop.xlane.xlu0 %1057
    %1059 = vmax.xlane.f32.xlu0 %v1025
    %v1060 = vpop.xlane.xlu0 %1059
    %1061 = vmax.xlane.f32.xlu0 %v1026
    %v1062 = vpop.xlane.xlu0 %1061
    %1063 = vmax.xlane.f32.xlu0 %v1027
    %v1064 = vpop.xlane.xlu0 %1063
    %1065 = vmax.xlane.f32.xlu0 %v1028
    %v1066 = vpop.xlane.xlu0 %1065
    %1067 = vmax.xlane.f32.xlu0 %v1029
    %v1068 = vpop.xlane.xlu0 %1067
    %1069 = vmax.xlane.f32.xlu0 %v1030
    %v1070 = vpop.xlane.xlu0 %1069
    %1071 = vmax.xlane.f32.xlu0 %v1031
    %v1072 = vpop.xlane.xlu0 %1071
    %1073 = vmax.xlane.f32.xlu0 %v1032
    %v1074 = vpop.xlane.xlu0 %1073
    %1075 = vmax.xlane.f32.xlu0 %v1033
    %v1076 = vpop.xlane.xlu0 %1075
    %1077 = vmax.xlane.f32.xlu0 %v1034
    %v1078 = vpop.xlane.xlu0 %1077
    %1079 = vmax.xlane.f32.xlu0 %v1035
    %v1080 = vpop.xlane.xlu0 %1079
    %1081 = vmax.xlane.f32.xlu0 %v1036
    %v1082 = vpop.xlane.xlu0 %1081
    %1083 = vmax.xlane.f32.xlu0 %v1037
    %v1084 = vpop.xlane.xlu0 %1083
    %1085 = vmax.xlane.f32.xlu0 %v1038
    %v1086 = vpop.xlane.xlu0 %1085
    %1087 = vmax.xlane.f32.xlu0 %v1039
    %v1088 = vpop.xlane.xlu0 %1087
    %1089 = vmax.xlane.f32.xlu0 %v1040
    %v1090 = vpop.xlane.xlu0 %1089
    %1091 = vmax.xlane.f32.xlu0 %v1041
    %v1092 = vpop.xlane.xlu0 %1091
    %1093 = vmax.xlane.f32.xlu0 %v1042
    %v1094 = vpop.xlane.xlu0 %1093
    %1095 = vmax.xlane.f32.xlu0 %v1043
    %v1096 = vpop.xlane.xlu0 %1095
    %1097 = vmax.xlane.f32.xlu0 %v1044
    %v1098 = vpop.xlane.xlu0 %1097
    %1099 = vmax.xlane.f32.xlu0 %v1045
    %v1100 = vpop.xlane.xlu0 %1099
    %1101 = vmax.xlane.f32.xlu0 %v1046
    %v1102 = vpop.xlane.xlu0 %1101
    %1103 = vmax.xlane.f32.xlu0 %v1047
    %v1104 = vpop.xlane.xlu0 %1103
    %1105 = vmax.xlane.f32.xlu0 %v1048
    %v1106 = vpop.xlane.xlu0 %1105
    %1107 = vmax.xlane.f32.xlu0 %v1049
    %v1108 = vpop.xlane.xlu0 %1107
    %1109 = vmax.xlane.f32.xlu0 %v1050
    %v1110 = vpop.xlane.xlu0 %1109
    %1111 = vmax.xlane.f32.xlu0 %v1051
    %v1112 = vpop.xlane.xlu0 %1111
    %1113 = vmax.xlane.f32.xlu0 %v1052
    %v1114 = vpop.xlane.xlu0 %1113
    %1115 = vmax.xlane.f32.xlu0 %v1053
    %v1116 = vpop.xlane.xlu0 %1115
    %1117 = vmax.xlane.f32.xlu0 %v1054
    %v1118 = vpop.xlane.xlu0 %1117
    %vm1119 = vcmp.eq.f32.partialorder %v1023, %v1056
    %vm1120 = vcmp.eq.f32.partialorder %v1024, %v1058
    %vm1121 = vcmp.eq.f32.partialorder %v1025, %v1060
    %vm1122 = vcmp.eq.f32.partialorder %v1026, %v1062
    %vm1123 = vcmp.eq.f32.partialorder %v1027, %v1064
    %vm1124 = vcmp.eq.f32.partialorder %v1028, %v1066
    %vm1125 = vcmp.eq.f32.partialorder %v1029, %v1068
    %vm1126 = vcmp.eq.f32.partialorder %v1030, %v1070
    %vm1127 = vcmp.eq.f32.partialorder %v1031, %v1072
    %vm1128 = vcmp.eq.f32.partialorder %v1032, %v1074
    %vm1129 = vcmp.eq.f32.partialorder %v1033, %v1076
    %vm1130 = vcmp.eq.f32.partialorder %v1034, %v1078
    %vm1131 = vcmp.eq.f32.partialorder %v1035, %v1080
    %vm1132 = vcmp.eq.f32.partialorder %v1036, %v1082
    %vm1133 = vcmp.eq.f32.partialorder %v1037, %v1084
    %vm1134 = vcmp.eq.f32.partialorder %v1038, %v1086
    %vm1135 = vcmp.eq.f32.partialorder %v1039, %v1088
    %vm1136 = vcmp.eq.f32.partialorder %v1040, %v1090
    %vm1137 = vcmp.eq.f32.partialorder %v1041, %v1092
    %vm1138 = vcmp.eq.f32.partialorder %v1042, %v1094
    %vm1139 = vcmp.eq.f32.partialorder %v1043, %v1096
    %vm1140 = vcmp.eq.f32.partialorder %v1044, %v1098
    %vm1141 = vcmp.eq.f32.partialorder %v1045, %v1100
    %vm1142 = vcmp.eq.f32.partialorder %v1046, %v1102
    %vm1143 = vcmp.eq.f32.partialorder %v1047, %v1104
    %vm1144 = vcmp.eq.f32.partialorder %v1048, %v1106
    %vm1145 = vcmp.eq.f32.partialorder %v1049, %v1108
    %vm1146 = vcmp.eq.f32.partialorder %v1050, %v1110
    %vm1147 = vcmp.eq.f32.partialorder %v1051, %v1112
    %vm1148 = vcmp.eq.f32.partialorder %v1052, %v1114
    %vm1149 = vcmp.eq.f32.partialorder %v1053, %v1116
    %vm1150 = vcmp.eq.f32.partialorder %v1054, %v1118
    %v1151 = vsel %vm1119, %v1021, 128
    %v1152 = vsel %vm1120, %v1021, 128
    %v1153 = vsel %vm1121, %v1021, 128
    %v1154 = vsel %vm1122, %v1021, 128
    %v1155 = vsel %vm1123, %v1021, 128
    %v1156 = vsel %vm1124, %v1021, 128
    %v1157 = vsel %vm1125, %v1021, 128
    %v1158 = vsel %vm1126, %v1021, 128
    %v1159 = vsel %vm1127, %v1021, 128
    %v1160 = vsel %vm1128, %v1021, 128
    %v1161 = vsel %vm1129, %v1021, 128
    %v1162 = vsel %vm1130, %v1021, 128
    %v1163 = vsel %vm1131, %v1021, 128
    %v1164 = vsel %vm1132, %v1021, 128
    %v1165 = vsel %vm1133, %v1021, 128
    %v1166 = vsel %vm1134, %v1021, 128
    %v1167 = vsel %vm1135, %v1021, 128
    %v1168 = vsel %vm1136, %v1021, 128
    %v1169 = vsel %vm1137, %v1021, 128
    %v1170 = vsel %vm1138, %v1021, 128
    %v1171 = vsel %vm1139, %v1021, 128
    %v1172 = vsel %vm1140, %v1021, 128
    %v1173 = vsel %vm1141, %v1021, 128
    %v1174 = vsel %vm1142, %v1021, 128
    %v1175 = vsel %vm1143, %v1021, 128
    %v1176 = vsel %vm1144, %v1021, 128
    %v1177 = vsel %vm1145, %v1021, 128
    %v1178 = vsel %vm1146, %v1021, 128
    %v1179 = vsel %vm1147, %v1021, 128
    %v1180 = vsel %vm1148, %v1021, 128
    %v1181 = vsel %vm1149, %v1021, 128
    %v1182 = vsel %vm1150, %v1021, 128
    %v1183 = vand.u32 %v1151, 65535
    %v1184 = vshra.s32 %v1151, 16
    %v1185 = vcvt.s32.f32 %v1183
    %v1186 = vcvt.s32.f32 %v1184
    %1187 = vmin.xlane.f32.xlu0 %v1186
    %v1188 = vpop.xlane.xlu0 %1187
    %vm1189 = vcmp.eq.f32.partialorder %v1186, %v1188
    %v1190 = vsel %vm1189, %v1185, inf
    %1191 = vmin.xlane.f32.xlu0 %v1190
    %v1192 = vpop.xlane.xlu0 %1191
    %v1193 = vcvt.f32.s32 %v1192
    %v1194 = vcvt.f32.s32 %v1188
    %v1195 = vshll.u32 %v1194, 16
    %v1196 = vadd.s32 %v1195, %v1193
    %v1197 = vand.u32 %v1152, 65535
    %v1198 = vshra.s32 %v1152, 16
    %v1199 = vcvt.s32.f32 %v1197
    %v1200 = vcvt.s32.f32 %v1198
    %1201 = vmin.xlane.f32.xlu0 %v1200
    %v1202 = vpop.xlane.xlu0 %1201
    %vm1203 = vcmp.eq.f32.partialorder %v1200, %v1202
    %v1204 = vsel %vm1203, %v1199, inf
    %1205 = vmin.xlane.f32.xlu0 %v1204
    %v1206 = vpop.xlane.xlu0 %1205
    %v1207 = vcvt.f32.s32 %v1206
    %v1208 = vcvt.f32.s32 %v1202
    %v1209 = vshll.u32 %v1208, 16
    %v1210 = vadd.s32 %v1209, %v1207
    %v1211 = vand.u32 %v1153, 65535
    %v1212 = vshra.s32 %v1153, 16
    %v1213 = vcvt.s32.f32 %v1211
    %v1214 = vcvt.s32.f32 %v1212
    %1215 = vmin.xlane.f32.xlu0 %v1214
    %v1216 = vpop.xlane.xlu0 %1215
    %vm1217 = vcmp.eq.f32.partialorder %v1214, %v1216
    %v1218 = vsel %vm1217, %v1213, inf
    %1219 = vmin.xlane.f32.xlu0 %v1218
    %v1220 = vpop.xlane.xlu0 %1219
    %v1221 = vcvt.f32.s32 %v1220
    %v1222 = vcvt.f32.s32 %v1216
    %v1223 = vshll.u32 %v1222, 16
    %v1224 = vadd.s32 %v1223, %v1221
    %v1225 = vand.u32 %v1154, 65535
    %v1226 = vshra.s32 %v1154, 16
    %v1227 = vcvt.s32.f32 %v1225
    %v1228 = vcvt.s32.f32 %v1226
    %1229 = vmin.xlane.f32.xlu0 %v1228
    %v1230 = vpop.xlane.xlu0 %1229
    %vm1231 = vcmp.eq.f32.partialorder %v1228, %v1230
    %v1232 = vsel %vm1231, %v1227, inf
    %1233 = vmin.xlane.f32.xlu0 %v1232
    %v1234 = vpop.xlane.xlu0 %1233
    %v1235 = vcvt.f32.s32 %v1234
    %v1236 = vcvt.f32.s32 %v1230
    %v1237 = vshll.u32 %v1236, 16
    %v1238 = vadd.s32 %v1237, %v1235
    %v1239 = vand.u32 %v1155, 65535
    %v1240 = vshra.s32 %v1155, 16
    %v1241 = vcvt.s32.f32 %v1239
    %v1242 = vcvt.s32.f32 %v1240
    %1243 = vmin.xlane.f32.xlu0 %v1242
    %v1244 = vpop.xlane.xlu0 %1243
    %vm1245 = vcmp.eq.f32.partialorder %v1242, %v1244
    %v1246 = vsel %vm1245, %v1241, inf
    %1247 = vmin.xlane.f32.xlu0 %v1246
    %v1248 = vpop.xlane.xlu0 %1247
    %v1249 = vcvt.f32.s32 %v1248
    %v1250 = vcvt.f32.s32 %v1244
    %v1251 = vshll.u32 %v1250, 16
    %v1252 = vadd.s32 %v1251, %v1249
    %v1253 = vand.u32 %v1156, 65535
    %v1254 = vshra.s32 %v1156, 16
    %v1255 = vcvt.s32.f32 %v1253
    %v1256 = vcvt.s32.f32 %v1254
    %1257 = vmin.xlane.f32.xlu0 %v1256
    %v1258 = vpop.xlane.xlu0 %1257
    %vm1259 = vcmp.eq.f32.partialorder %v1256, %v1258
    %v1260 = vsel %vm1259, %v1255, inf
    %1261 = vmin.xlane.f32.xlu0 %v1260
    %v1262 = vpop.xlane.xlu0 %1261
    %v1263 = vcvt.f32.s32 %v1262
    %v1264 = vcvt.f32.s32 %v1258
    %v1265 = vshll.u32 %v1264, 16
    %v1266 = vadd.s32 %v1265, %v1263
    %v1267 = vand.u32 %v1157, 65535
    %v1268 = vshra.s32 %v1157, 16
    %v1269 = vcvt.s32.f32 %v1267
    %v1270 = vcvt.s32.f32 %v1268
    %1271 = vmin.xlane.f32.xlu0 %v1270
    %v1272 = vpop.xlane.xlu0 %1271
    %vm1273 = vcmp.eq.f32.partialorder %v1270, %v1272
    %v1274 = vsel %vm1273, %v1269, inf
    %1275 = vmin.xlane.f32.xlu0 %v1274
    %v1276 = vpop.xlane.xlu0 %1275
    %v1277 = vcvt.f32.s32 %v1276
    %v1278 = vcvt.f32.s32 %v1272
    %v1279 = vshll.u32 %v1278, 16
    %v1280 = vadd.s32 %v1279, %v1277
    %v1281 = vand.u32 %v1158, 65535
    %v1282 = vshra.s32 %v1158, 16
    %v1283 = vcvt.s32.f32 %v1281
    %v1284 = vcvt.s32.f32 %v1282
    %1285 = vmin.xlane.f32.xlu0 %v1284
    %v1286 = vpop.xlane.xlu0 %1285
    %vm1287 = vcmp.eq.f32.partialorder %v1284, %v1286
    %v1288 = vsel %vm1287, %v1283, inf
    %1289 = vmin.xlane.f32.xlu0 %v1288
    %v1290 = vpop.xlane.xlu0 %1289
    %v1291 = vcvt.f32.s32 %v1290
    %v1292 = vcvt.f32.s32 %v1286
    %v1293 = vshll.u32 %v1292, 16
    %v1294 = vadd.s32 %v1293, %v1291
    %v1295 = vand.u32 %v1159, 65535
    %v1296 = vshra.s32 %v1159, 16
    %v1297 = vcvt.s32.f32 %v1295
    %v1298 = vcvt.s32.f32 %v1296
    %1299 = vmin.xlane.f32.xlu0 %v1298
    %v1300 = vpop.xlane.xlu0 %1299
    %vm1301 = vcmp.eq.f32.partialorder %v1298, %v1300
    %v1302 = vsel %vm1301, %v1297, inf
    %1303 = vmin.xlane.f32.xlu0 %v1302
    %v1304 = vpop.xlane.xlu0 %1303
    %v1305 = vcvt.f32.s32 %v1304
    %v1306 = vcvt.f32.s32 %v1300
    %v1307 = vshll.u32 %v1306, 16
    %v1308 = vadd.s32 %v1307, %v1305
    %v1309 = vand.u32 %v1160, 65535
    %v1310 = vshra.s32 %v1160, 16
    %v1311 = vcvt.s32.f32 %v1309
    %v1312 = vcvt.s32.f32 %v1310
    %1313 = vmin.xlane.f32.xlu0 %v1312
    %v1314 = vpop.xlane.xlu0 %1313
    %vm1315 = vcmp.eq.f32.partialorder %v1312, %v1314
    %v1316 = vsel %vm1315, %v1311, inf
    %1317 = vmin.xlane.f32.xlu0 %v1316
    %v1318 = vpop.xlane.xlu0 %1317
    %v1319 = vcvt.f32.s32 %v1318
    %v1320 = vcvt.f32.s32 %v1314
    %v1321 = vshll.u32 %v1320, 16
    %v1322 = vadd.s32 %v1321, %v1319
    %v1323 = vand.u32 %v1161, 65535
    %v1324 = vshra.s32 %v1161, 16
    %v1325 = vcvt.s32.f32 %v1323
    %v1326 = vcvt.s32.f32 %v1324
    %1327 = vmin.xlane.f32.xlu0 %v1326
    %v1328 = vpop.xlane.xlu0 %1327
    %vm1329 = vcmp.eq.f32.partialorder %v1326, %v1328
    %v1330 = vsel %vm1329, %v1325, inf
    %1331 = vmin.xlane.f32.xlu0 %v1330
    %v1332 = vpop.xlane.xlu0 %1331
    %v1333 = vcvt.f32.s32 %v1332
    %v1334 = vcvt.f32.s32 %v1328
    %v1335 = vshll.u32 %v1334, 16
    %v1336 = vadd.s32 %v1335, %v1333
    %v1337 = vand.u32 %v1162, 65535
    %v1338 = vshra.s32 %v1162, 16
    %v1339 = vcvt.s32.f32 %v1337
    %v1340 = vcvt.s32.f32 %v1338
    %1341 = vmin.xlane.f32.xlu0 %v1340
    %v1342 = vpop.xlane.xlu0 %1341
    %vm1343 = vcmp.eq.f32.partialorder %v1340, %v1342
    %v1344 = vsel %vm1343, %v1339, inf
    %1345 = vmin.xlane.f32.xlu0 %v1344
    %v1346 = vpop.xlane.xlu0 %1345
    %v1347 = vcvt.f32.s32 %v1346
    %v1348 = vcvt.f32.s32 %v1342
    %v1349 = vshll.u32 %v1348, 16
    %v1350 = vadd.s32 %v1349, %v1347
    %v1351 = vand.u32 %v1163, 65535
    %v1352 = vshra.s32 %v1163, 16
    %v1353 = vcvt.s32.f32 %v1351
    %v1354 = vcvt.s32.f32 %v1352
    %1355 = vmin.xlane.f32.xlu0 %v1354
    %v1356 = vpop.xlane.xlu0 %1355
    %vm1357 = vcmp.eq.f32.partialorder %v1354, %v1356
    %v1358 = vsel %vm1357, %v1353, inf
    %1359 = vmin.xlane.f32.xlu0 %v1358
    %v1360 = vpop.xlane.xlu0 %1359
    %v1361 = vcvt.f32.s32 %v1360
    %v1362 = vcvt.f32.s32 %v1356
    %v1363 = vshll.u32 %v1362, 16
    %v1364 = vadd.s32 %v1363, %v1361
    %v1365 = vand.u32 %v1164, 65535
    %v1366 = vshra.s32 %v1164, 16
    %v1367 = vcvt.s32.f32 %v1365
    %v1368 = vcvt.s32.f32 %v1366
    %1369 = vmin.xlane.f32.xlu0 %v1368
    %v1370 = vpop.xlane.xlu0 %1369
    %vm1371 = vcmp.eq.f32.partialorder %v1368, %v1370
    %v1372 = vsel %vm1371, %v1367, inf
    %1373 = vmin.xlane.f32.xlu0 %v1372
    %v1374 = vpop.xlane.xlu0 %1373
    %v1375 = vcvt.f32.s32 %v1374
    %v1376 = vcvt.f32.s32 %v1370
    %v1377 = vshll.u32 %v1376, 16
    %v1378 = vadd.s32 %v1377, %v1375
    %v1379 = vand.u32 %v1165, 65535
    %v1380 = vshra.s32 %v1165, 16
    %v1381 = vcvt.s32.f32 %v1379
    %v1382 = vcvt.s32.f32 %v1380
    %1383 = vmin.xlane.f32.xlu0 %v1382
    %v1384 = vpop.xlane.xlu0 %1383
    %vm1385 = vcmp.eq.f32.partialorder %v1382, %v1384
    %v1386 = vsel %vm1385, %v1381, inf
    %1387 = vmin.xlane.f32.xlu0 %v1386
    %v1388 = vpop.xlane.xlu0 %1387
    %v1389 = vcvt.f32.s32 %v1388
    %v1390 = vcvt.f32.s32 %v1384
    %v1391 = vshll.u32 %v1390, 16
    %v1392 = vadd.s32 %v1391, %v1389
    %v1393 = vand.u32 %v1166, 65535
    %v1394 = vshra.s32 %v1166, 16
    %v1395 = vcvt.s32.f32 %v1393
    %v1396 = vcvt.s32.f32 %v1394
    %1397 = vmin.xlane.f32.xlu0 %v1396
    %v1398 = vpop.xlane.xlu0 %1397
    %vm1399 = vcmp.eq.f32.partialorder %v1396, %v1398
    %v1400 = vsel %vm1399, %v1395, inf
    %1401 = vmin.xlane.f32.xlu0 %v1400
    %v1402 = vpop.xlane.xlu0 %1401
    %v1403 = vcvt.f32.s32 %v1402
    %v1404 = vcvt.f32.s32 %v1398
    %v1405 = vshll.u32 %v1404, 16
    %v1406 = vadd.s32 %v1405, %v1403
    %v1407 = vand.u32 %v1167, 65535
    %v1408 = vshra.s32 %v1167, 16
    %v1409 = vcvt.s32.f32 %v1407
    %v1410 = vcvt.s32.f32 %v1408
    %1411 = vmin.xlane.f32.xlu0 %v1410
    %v1412 = vpop.xlane.xlu0 %1411
    %vm1413 = vcmp.eq.f32.partialorder %v1410, %v1412
    %v1414 = vsel %vm1413, %v1409, inf
    %1415 = vmin.xlane.f32.xlu0 %v1414
    %v1416 = vpop.xlane.xlu0 %1415
    %v1417 = vcvt.f32.s32 %v1416
    %v1418 = vcvt.f32.s32 %v1412
    %v1419 = vshll.u32 %v1418, 16
    %v1420 = vadd.s32 %v1419, %v1417
    %v1421 = vand.u32 %v1168, 65535
    %v1422 = vshra.s32 %v1168, 16
    %v1423 = vcvt.s32.f32 %v1421
    %v1424 = vcvt.s32.f32 %v1422
    %1425 = vmin.xlane.f32.xlu0 %v1424
    %v1426 = vpop.xlane.xlu0 %1425
    %vm1427 = vcmp.eq.f32.partialorder %v1424, %v1426
    %v1428 = vsel %vm1427, %v1423, inf
    %1429 = vmin.xlane.f32.xlu0 %v1428
    %v1430 = vpop.xlane.xlu0 %1429
    %v1431 = vcvt.f32.s32 %v1430
    %v1432 = vcvt.f32.s32 %v1426
    %v1433 = vshll.u32 %v1432, 16
    %v1434 = vadd.s32 %v1433, %v1431
    %v1435 = vand.u32 %v1169, 65535
    %v1436 = vshra.s32 %v1169, 16
    %v1437 = vcvt.s32.f32 %v1435
    %v1438 = vcvt.s32.f32 %v1436
    %1439 = vmin.xlane.f32.xlu0 %v1438
    %v1440 = vpop.xlane.xlu0 %1439
    %vm1441 = vcmp.eq.f32.partialorder %v1438, %v1440
    %v1442 = vsel %vm1441, %v1437, inf
    %1443 = vmin.xlane.f32.xlu0 %v1442
    %v1444 = vpop.xlane.xlu0 %1443
    %v1445 = vcvt.f32.s32 %v1444
    %v1446 = vcvt.f32.s32 %v1440
    %v1447 = vshll.u32 %v1446, 16
    %v1448 = vadd.s32 %v1447, %v1445
    %v1449 = vand.u32 %v1170, 65535
    %v1450 = vshra.s32 %v1170, 16
    %v1451 = vcvt.s32.f32 %v1449
    %v1452 = vcvt.s32.f32 %v1450
    %1453 = vmin.xlane.f32.xlu0 %v1452
    %v1454 = vpop.xlane.xlu0 %1453
    %vm1455 = vcmp.eq.f32.partialorder %v1452, %v1454
    %v1456 = vsel %vm1455, %v1451, inf
    %1457 = vmin.xlane.f32.xlu0 %v1456
    %v1458 = vpop.xlane.xlu0 %1457
    %v1459 = vcvt.f32.s32 %v1458
    %v1460 = vcvt.f32.s32 %v1454
    %v1461 = vshll.u32 %v1460, 16
    %v1462 = vadd.s32 %v1461, %v1459
    %v1463 = vand.u32 %v1171, 65535
    %v1464 = vshra.s32 %v1171, 16
    %v1465 = vcvt.s32.f32 %v1463
    %v1466 = vcvt.s32.f32 %v1464
    %1467 = vmin.xlane.f32.xlu0 %v1466
    %v1468 = vpop.xlane.xlu0 %1467
    %vm1469 = vcmp.eq.f32.partialorder %v1466, %v1468
    %v1470 = vsel %vm1469, %v1465, inf
    %1471 = vmin.xlane.f32.xlu0 %v1470
    %v1472 = vpop.xlane.xlu0 %1471
    %v1473 = vcvt.f32.s32 %v1472
    %v1474 = vcvt.f32.s32 %v1468
    %v1475 = vshll.u32 %v1474, 16
    %v1476 = vadd.s32 %v1475, %v1473
    %v1477 = vand.u32 %v1172, 65535
    %v1478 = vshra.s32 %v1172, 16
    %v1479 = vcvt.s32.f32 %v1477
    %v1480 = vcvt.s32.f32 %v1478
    %1481 = vmin.xlane.f32.xlu0 %v1480
    %v1482 = vpop.xlane.xlu0 %1481
    %vm1483 = vcmp.eq.f32.partialorder %v1480, %v1482
    %v1484 = vsel %vm1483, %v1479, inf
    %1485 = vmin.xlane.f32.xlu0 %v1484
    %v1486 = vpop.xlane.xlu0 %1485
    %v1487 = vcvt.f32.s32 %v1486
    %v1488 = vcvt.f32.s32 %v1482
    %v1489 = vshll.u32 %v1488, 16
    %v1490 = vadd.s32 %v1489, %v1487
    %v1491 = vand.u32 %v1173, 65535
    %v1492 = vshra.s32 %v1173, 16
    %v1493 = vcvt.s32.f32 %v1491
    %v1494 = vcvt.s32.f32 %v1492
    %1495 = vmin.xlane.f32.xlu0 %v1494
    %v1496 = vpop.xlane.xlu0 %1495
    %vm1497 = vcmp.eq.f32.partialorder %v1494, %v1496
    %v1498 = vsel %vm1497, %v1493, inf
    %1499 = vmin.xlane.f32.xlu0 %v1498
    %v1500 = vpop.xlane.xlu0 %1499
    %v1501 = vcvt.f32.s32 %v1500
    %v1502 = vcvt.f32.s32 %v1496
    %v1503 = vshll.u32 %v1502, 16
    %v1504 = vadd.s32 %v1503, %v1501
    %v1505 = vand.u32 %v1174, 65535
    %v1506 = vshra.s32 %v1174, 16
    %v1507 = vcvt.s32.f32 %v1505
    %v1508 = vcvt.s32.f32 %v1506
    %1509 = vmin.xlane.f32.xlu0 %v1508
    %v1510 = vpop.xlane.xlu0 %1509
    %vm1511 = vcmp.eq.f32.partialorder %v1508, %v1510
    %v1512 = vsel %vm1511, %v1507, inf
    %1513 = vmin.xlane.f32.xlu0 %v1512
    %v1514 = vpop.xlane.xlu0 %1513
    %v1515 = vcvt.f32.s32 %v1514
    %v1516 = vcvt.f32.s32 %v1510
    %v1517 = vshll.u32 %v1516, 16
    %v1518 = vadd.s32 %v1517, %v1515
    %v1519 = vand.u32 %v1175, 65535
    %v1520 = vshra.s32 %v1175, 16
    %v1521 = vcvt.s32.f32 %v1519
    %v1522 = vcvt.s32.f32 %v1520
    %1523 = vmin.xlane.f32.xlu0 %v1522
    %v1524 = vpop.xlane.xlu0 %1523
    %vm1525 = vcmp.eq.f32.partialorder %v1522, %v1524
    %v1526 = vsel %vm1525, %v1521, inf
    %1527 = vmin.xlane.f32.xlu0 %v1526
    %v1528 = vpop.xlane.xlu0 %1527
    %v1529 = vcvt.f32.s32 %v1528
    %v1530 = vcvt.f32.s32 %v1524
    %v1531 = vshll.u32 %v1530, 16
    %v1532 = vadd.s32 %v1531, %v1529
    %v1533 = vand.u32 %v1176, 65535
    %v1534 = vshra.s32 %v1176, 16
    %v1535 = vcvt.s32.f32 %v1533
    %v1536 = vcvt.s32.f32 %v1534
    %1537 = vmin.xlane.f32.xlu0 %v1536
    %v1538 = vpop.xlane.xlu0 %1537
    %vm1539 = vcmp.eq.f32.partialorder %v1536, %v1538
    %v1540 = vsel %vm1539, %v1535, inf
    %1541 = vmin.xlane.f32.xlu0 %v1540
    %v1542 = vpop.xlane.xlu0 %1541
    %v1543 = vcvt.f32.s32 %v1542
    %v1544 = vcvt.f32.s32 %v1538
    %v1545 = vshll.u32 %v1544, 16
    %v1546 = vadd.s32 %v1545, %v1543
    %v1547 = vand.u32 %v1177, 65535
    %v1548 = vshra.s32 %v1177, 16
    %v1549 = vcvt.s32.f32 %v1547
    %v1550 = vcvt.s32.f32 %v1548
    %1551 = vmin.xlane.f32.xlu0 %v1550
    %v1552 = vpop.xlane.xlu0 %1551
    %vm1553 = vcmp.eq.f32.partialorder %v1550, %v1552
    %v1554 = vsel %vm1553, %v1549, inf
    %1555 = vmin.xlane.f32.xlu0 %v1554
    %v1556 = vpop.xlane.xlu0 %1555
    %v1557 = vcvt.f32.s32 %v1556
    %v1558 = vcvt.f32.s32 %v1552
    %v1559 = vshll.u32 %v1558, 16
    %v1560 = vadd.s32 %v1559, %v1557
    %v1561 = vand.u32 %v1178, 65535
    %v1562 = vshra.s32 %v1178, 16
    %v1563 = vcvt.s32.f32 %v1561
    %v1564 = vcvt.s32.f32 %v1562
    %1565 = vmin.xlane.f32.xlu0 %v1564
    %v1566 = vpop.xlane.xlu0 %1565
    %vm1567 = vcmp.eq.f32.partialorder %v1564, %v1566
    %v1568 = vsel %vm1567, %v1563, inf
    %1569 = vmin.xlane.f32.xlu0 %v1568
    %v1570 = vpop.xlane.xlu0 %1569
    %v1571 = vcvt.f32.s32 %v1570
    %v1572 = vcvt.f32.s32 %v1566
    %v1573 = vshll.u32 %v1572, 16
    %v1574 = vadd.s32 %v1573, %v1571
    %v1575 = vand.u32 %v1179, 65535
    %v1576 = vshra.s32 %v1179, 16
    %v1577 = vcvt.s32.f32 %v1575
    %v1578 = vcvt.s32.f32 %v1576
    %1579 = vmin.xlane.f32.xlu0 %v1578
    %v1580 = vpop.xlane.xlu0 %1579
    %vm1581 = vcmp.eq.f32.partialorder %v1578, %v1580
    %v1582 = vsel %vm1581, %v1577, inf
    %1583 = vmin.xlane.f32.xlu0 %v1582
    %v1584 = vpop.xlane.xlu0 %1583
    %v1585 = vcvt.f32.s32 %v1584
    %v1586 = vcvt.f32.s32 %v1580
    %v1587 = vshll.u32 %v1586, 16
    %v1588 = vadd.s32 %v1587, %v1585
    %v1589 = vand.u32 %v1180, 65535
    %v1590 = vshra.s32 %v1180, 16
    %v1591 = vcvt.s32.f32 %v1589
    %v1592 = vcvt.s32.f32 %v1590
    %1593 = vmin.xlane.f32.xlu0 %v1592
    %v1594 = vpop.xlane.xlu0 %1593
    %vm1595 = vcmp.eq.f32.partialorder %v1592, %v1594
    %v1596 = vsel %vm1595, %v1591, inf
    %1597 = vmin.xlane.f32.xlu0 %v1596
    %v1598 = vpop.xlane.xlu0 %1597
    %v1599 = vcvt.f32.s32 %v1598
    %v1600 = vcvt.f32.s32 %v1594
    %v1601 = vshll.u32 %v1600, 16
    %v1602 = vadd.s32 %v1601, %v1599
    %v1603 = vand.u32 %v1181, 65535
    %v1604 = vshra.s32 %v1181, 16
    %v1605 = vcvt.s32.f32 %v1603
    %v1606 = vcvt.s32.f32 %v1604
    %1607 = vmin.xlane.f32.xlu0 %v1606
    %v1608 = vpop.xlane.xlu0 %1607
    %vm1609 = vcmp.eq.f32.partialorder %v1606, %v1608
    %v1610 = vsel %vm1609, %v1605, inf
    %1611 = vmin.xlane.f32.xlu0 %v1610
    %v1612 = vpop.xlane.xlu0 %1611
    %v1613 = vcvt.f32.s32 %v1612
    %v1614 = vcvt.f32.s32 %v1608
    %v1615 = vshll.u32 %v1614, 16
    %v1616 = vadd.s32 %v1615, %v1613
    %v1617 = vand.u32 %v1182, 65535
    %v1618 = vshra.s32 %v1182, 16
    %v1619 = vcvt.s32.f32 %v1617
    %v1620 = vcvt.s32.f32 %v1618
    %1621 = vmin.xlane.f32.xlu0 %v1620
    %v1622 = vpop.xlane.xlu0 %1621
    %vm1623 = vcmp.eq.f32.partialorder %v1620, %v1622
    %v1624 = vsel %vm1623, %v1619, inf
    %1625 = vmin.xlane.f32.xlu0 %v1624
    %v1626 = vpop.xlane.xlu0 %1625
    %v1627 = vcvt.f32.s32 %v1626
    %v1628 = vcvt.f32.s32 %v1622
    %v1629 = vshll.u32 %v1628, 16
    %v1630 = vadd.s32 %v1629, %v1627
    %vm1631 = vcmask 7168
    %1632 = vst.msk [vmem:[%s8] sm:$0xff] %vm1631, %v1196
    %1633 = vst.msk [vmem:[%s8 + $0x8] sm:$0xff] %vm1631, %v1210
    %1634 = vst.msk [vmem:[%s8 + $0x10] sm:$0xff] %vm1631, %v1224
    %1635 = vst.msk [vmem:[%s8 + $0x18] sm:$0xff] %vm1631, %v1238
    %1636 = vst.msk [vmem:[%s8 + $0x20] sm:$0xff] %vm1631, %v1252
    %1637 = vst.msk [vmem:[%s8 + $0x28] sm:$0xff] %vm1631, %v1266
    %1638 = vst.msk [vmem:[%s8 + $0x30] sm:$0xff] %vm1631, %v1280
    %1639 = vst.msk [vmem:[%s8 + $0x38] sm:$0xff] %vm1631, %v1294
    %1640 = vst.msk [vmem:[%s8 + $0x40] sm:$0xff] %vm1631, %v1308
    %1641 = vst.msk [vmem:[%s8 + $0x48] sm:$0xff] %vm1631, %v1322
    %1642 = vst.msk [vmem:[%s8 + $0x50] sm:$0xff] %vm1631, %v1336
    %1643 = vst.msk [vmem:[%s8 + $0x58] sm:$0xff] %vm1631, %v1350
    %1644 = vst.msk [vmem:[%s8 + $0x60] sm:$0xff] %vm1631, %v1364
    %1645 = vst.msk [vmem:[%s8 + $0x68] sm:$0xff] %vm1631, %v1378
    %1646 = vst.msk [vmem:[%s8 + $0x70] sm:$0xff] %vm1631, %v1392
    %1647 = vst.msk [vmem:[%s8 + $0x78] sm:$0xff] %vm1631, %v1406
    %1648 = vst.msk [vmem:[%s8 + $0x80] sm:$0xff] %vm1631, %v1420
    %1649 = vst.msk [vmem:[%s8 + $0x88] sm:$0xff] %vm1631, %v1434
    %1650 = vst.msk [vmem:[%s8 + $0x90] sm:$0xff] %vm1631, %v1448
    %1651 = vst.msk [vmem:[%s8 + $0x98] sm:$0xff] %vm1631, %v1462
    %1652 = vst.msk [vmem:[%s8 + $0xa0] sm:$0xff] %vm1631, %v1476
    %1653 = vst.msk [vmem:[%s8 + $0xa8] sm:$0xff] %vm1631, %v1490
    %1654 = vst.msk [vmem:[%s8 + $0xb0] sm:$0xff] %vm1631, %v1504
    %1655 = vst.msk [vmem:[%s8 + $0xb8] sm:$0xff] %vm1631, %v1518
    %1656 = vst.msk [vmem:[%s8 + $0xc0] sm:$0xff] %vm1631, %v1532
    %1657 = vst.msk [vmem:[%s8 + $0xc8] sm:$0xff] %vm1631, %v1546
    %1658 = vst.msk [vmem:[%s8 + $0xd0] sm:$0xff] %vm1631, %v1560
    %1659 = vst.msk [vmem:[%s8 + $0xd8] sm:$0xff] %vm1631, %v1574
    %1660 = vst.msk [vmem:[%s8 + $0xe0] sm:$0xff] %vm1631, %v1588
    %1661 = vst.msk [vmem:[%s8 + $0xe8] sm:$0xff] %vm1631, %v1602
    %1662 = vst.msk [vmem:[%s8 + $0xf0] sm:$0xff] %vm1631, %v1616
    %1663 = vst.msk [vmem:[%s8 + $0xf8] sm:$0xff] %vm1631, %v1630
    %v1664 = vsub.f32 %v1023, %v1056
    %v1665 = vsub.f32 %v1024, %v1058
    %v1666 = vsub.f32 %v1025, %v1060
    %v1667 = vsub.f32 %v1026, %v1062
    %v1668 = vsub.f32 %v1027, %v1064
    %v1669 = vsub.f32 %v1028, %v1066
    %v1670 = vsub.f32 %v1029, %v1068
    %v1671 = vsub.f32 %v1030, %v1070
    %v1672 = vsub.f32 %v1031, %v1072
    %v1673 = vsub.f32 %v1032, %v1074
    %v1674 = vsub.f32 %v1033, %v1076
    %v1675 = vsub.f32 %v1034, %v1078
    %v1676 = vsub.f32 %v1035, %v1080
    %v1677 = vsub.f32 %v1036, %v1082
    %v1678 = vsub.f32 %v1037, %v1084
    %v1679 = vsub.f32 %v1038, %v1086
    %v1680 = vsub.f32 %v1039, %v1088
    %v1681 = vsub.f32 %v1040, %v1090
    %v1682 = vsub.f32 %v1041, %v1092
    %v1683 = vsub.f32 %v1042, %v1094
    %v1684 = vsub.f32 %v1043, %v1096
    %v1685 = vsub.f32 %v1044, %v1098
    %v1686 = vsub.f32 %v1045, %v1100
    %v1687 = vsub.f32 %v1046, %v1102
    %v1688 = vsub.f32 %v1047, %v1104
    %v1689 = vsub.f32 %v1048, %v1106
    %v1690 = vsub.f32 %v1049, %v1108
    %v1691 = vsub.f32 %v1050, %v1110
    %v1692 = vsub.f32 %v1051, %v1112
    %v1693 = vsub.f32 %v1052, %v1114
    %v1694 = vsub.f32 %v1053, %v1116
    %v1695 = vsub.f32 %v1054, %v1118
    %v1696 = vmul.f32 %v1664, 1.442695
    %v1697 = vpow.pop %v1696
    %v1698 = vmul.f32 %v1665, 1.442695
    %v1699 = vpow.pop %v1698
    %v1700 = vmul.f32 %v1666, 1.442695
    %v1701 = vpow.pop %v1700
    %v1702 = vmul.f32 %v1667, 1.442695
    %v1703 = vpow.pop %v1702
    %v1704 = vmul.f32 %v1668, 1.442695
    %v1705 = vpow.pop %v1704
    %v1706 = vmul.f32 %v1669, 1.442695
    %v1707 = vpow.pop %v1706
    %v1708 = vmul.f32 %v1670, 1.442695
    %v1709 = vpow.pop %v1708
    %v1710 = vmul.f32 %v1671, 1.442695
    %v1711 = vpow.pop %v1710
    %v1712 = vmul.f32 %v1672, 1.442695
    %v1713 = vpow.pop %v1712
    %v1714 = vmul.f32 %v1673, 1.442695
    %v1715 = vpow.pop %v1714
    %v1716 = vmul.f32 %v1674, 1.442695
    %v1717 = vpow.pop %v1716
    %v1718 = vmul.f32 %v1675, 1.442695
    %v1719 = vpow.pop %v1718
    %v1720 = vmul.f32 %v1676, 1.442695
    %v1721 = vpow.pop %v1720
    %v1722 = vmul.f32 %v1677, 1.442695
    %v1723 = vpow.pop %v1722
    %v1724 = vmul.f32 %v1678, 1.442695
    %v1725 = vpow.pop %v1724
    %v1726 = vmul.f32 %v1679, 1.442695
    %v1727 = vpow.pop %v1726
    %v1728 = vmul.f32 %v1680, 1.442695
    %v1729 = vpow.pop %v1728
    %v1730 = vmul.f32 %v1681, 1.442695
    %v1731 = vpow.pop %v1730
    %v1732 = vmul.f32 %v1682, 1.442695
    %v1733 = vpow.pop %v1732
    %v1734 = vmul.f32 %v1683, 1.442695
    %v1735 = vpow.pop %v1734
    %v1736 = vmul.f32 %v1684, 1.442695
    %v1737 = vpow.pop %v1736
    %v1738 = vmul.f32 %v1685, 1.442695
    %v1739 = vpow.pop %v1738
    %v1740 = vmul.f32 %v1686, 1.442695
    %v1741 = vpow.pop %v1740
    %v1742 = vmul.f32 %v1687, 1.442695
    %v1743 = vpow.pop %v1742
    %v1744 = vmul.f32 %v1688, 1.442695
    %v1745 = vpow.pop %v1744
    %v1746 = vmul.f32 %v1689, 1.442695
    %v1747 = vpow.pop %v1746
    %v1748 = vmul.f32 %v1690, 1.442695
    %v1749 = vpow.pop %v1748
    %v1750 = vmul.f32 %v1691, 1.442695
    %v1751 = vpow.pop %v1750
    %v1752 = vmul.f32 %v1692, 1.442695
    %v1753 = vpow.pop %v1752
    %v1754 = vmul.f32 %v1693, 1.442695
    %v1755 = vpow.pop %v1754
    %v1756 = vmul.f32 %v1694, 1.442695
    %v1757 = vpow.pop %v1756
    %v1758 = vmul.f32 %v1695, 1.442695
    %v1759 = vpow.pop %v1758
    %1760 = vadd.xlane.f32.xlu0 %v1697
    %v1761 = vpop.xlane.xlu0 %1760
    %1762 = vadd.xlane.f32.xlu0 %v1699
    %v1763 = vpop.xlane.xlu0 %1762
    %1764 = vadd.xlane.f32.xlu0 %v1701
    %v1765 = vpop.xlane.xlu0 %1764
    %1766 = vadd.xlane.f32.xlu0 %v1703
    %v1767 = vpop.xlane.xlu0 %1766
    %1768 = vadd.xlane.f32.xlu0 %v1705
    %v1769 = vpop.xlane.xlu0 %1768
    %1770 = vadd.xlane.f32.xlu0 %v1707
    %v1771 = vpop.xlane.xlu0 %1770
    %1772 = vadd.xlane.f32.xlu0 %v1709
    %v1773 = vpop.xlane.xlu0 %1772
    %1774 = vadd.xlane.f32.xlu0 %v1711
    %v1775 = vpop.xlane.xlu0 %1774
    %1776 = vadd.xlane.f32.xlu0 %v1713
    %v1777 = vpop.xlane.xlu0 %1776
    %1778 = vadd.xlane.f32.xlu0 %v1715
    %v1779 = vpop.xlane.xlu0 %1778
    %1780 = vadd.xlane.f32.xlu0 %v1717
    %v1781 = vpop.xlane.xlu0 %1780
    %1782 = vadd.xlane.f32.xlu0 %v1719
    %v1783 = vpop.xlane.xlu0 %1782
    %1784 = vadd.xlane.f32.xlu0 %v1721
    %v1785 = vpop.xlane.xlu0 %1784
    %1786 = vadd.xlane.f32.xlu0 %v1723
    %v1787 = vpop.xlane.xlu0 %1786
    %1788 = vadd.xlane.f32.xlu0 %v1725
    %v1789 = vpop.xlane.xlu0 %1788
    %1790 = vadd.xlane.f32.xlu0 %v1727
    %v1791 = vpop.xlane.xlu0 %1790
    %1792 = vadd.xlane.f32.xlu0 %v1729
    %v1793 = vpop.xlane.xlu0 %1792
    %1794 = vadd.xlane.f32.xlu0 %v1731
    %v1795 = vpop.xlane.xlu0 %1794
    %1796 = vadd.xlane.f32.xlu0 %v1733
    %v1797 = vpop.xlane.xlu0 %1796
    %1798 = vadd.xlane.f32.xlu0 %v1735
    %v1799 = vpop.xlane.xlu0 %1798
    %1800 = vadd.xlane.f32.xlu0 %v1737
    %v1801 = vpop.xlane.xlu0 %1800
    %1802 = vadd.xlane.f32.xlu0 %v1739
    %v1803 = vpop.xlane.xlu0 %1802
    %1804 = vadd.xlane.f32.xlu0 %v1741
    %v1805 = vpop.xlane.xlu0 %1804
    %1806 = vadd.xlane.f32.xlu0 %v1743
    %v1807 = vpop.xlane.xlu0 %1806
    %1808 = vadd.xlane.f32.xlu0 %v1745
    %v1809 = vpop.xlane.xlu0 %1808
    %1810 = vadd.xlane.f32.xlu0 %v1747
    %v1811 = vpop.xlane.xlu0 %1810
    %1812 = vadd.xlane.f32.xlu0 %v1749
    %v1813 = vpop.xlane.xlu0 %1812
    %1814 = vadd.xlane.f32.xlu0 %v1751
    %v1815 = vpop.xlane.xlu0 %1814
    %1816 = vadd.xlane.f32.xlu0 %v1753
    %v1817 = vpop.xlane.xlu0 %1816
    %1818 = vadd.xlane.f32.xlu0 %v1755
    %v1819 = vpop.xlane.xlu0 %1818
    %1820 = vadd.xlane.f32.xlu0 %v1757
    %v1821 = vpop.xlane.xlu0 %1820
    %1822 = vadd.xlane.f32.xlu0 %v1759
    %v1823 = vpop.xlane.xlu0 %1822
    %v1824 = vlog2.pop %v1761
    %v1825 = vmul.f32 %v1824, 0.6931472
    %v1826 = vlog2.pop %v1763
    %v1827 = vmul.f32 %v1826, 0.6931472
    %v1828 = vlog2.pop %v1765
    %v1829 = vmul.f32 %v1828, 0.6931472
    %v1830 = vlog2.pop %v1767
    %v1831 = vmul.f32 %v1830, 0.6931472
    %v1832 = vlog2.pop %v1769
    %v1833 = vmul.f32 %v1832, 0.6931472
    %v1834 = vlog2.pop %v1771
    %v1835 = vmul.f32 %v1834, 0.6931472
    %v1836 = vlog2.pop %v1773
    %v1837 = vmul.f32 %v1836, 0.6931472
    %v1838 = vlog2.pop %v1775
    %v1839 = vmul.f32 %v1838, 0.6931472
    %v1840 = vlog2.pop %v1777
    %v1841 = vmul.f32 %v1840, 0.6931472
    %v1842 = vlog2.pop %v1779
    %v1843 = vmul.f32 %v1842, 0.6931472
    %v1844 = vlog2.pop %v1781
    %v1845 = vmul.f32 %v1844, 0.6931472
    %v1846 = vlog2.pop %v1783
    %v1847 = vmul.f32 %v1846, 0.6931472
    %v1848 = vlog2.pop %v1785
    %v1849 = vmul.f32 %v1848, 0.6931472
    %v1850 = vlog2.pop %v1787
    %v1851 = vmul.f32 %v1850, 0.6931472
    %v1852 = vlog2.pop %v1789
    %v1853 = vmul.f32 %v1852, 0.6931472
    %v1854 = vlog2.pop %v1791
    %v1855 = vmul.f32 %v1854, 0.6931472
    %v1856 = vlog2.pop %v1793
    %v1857 = vmul.f32 %v1856, 0.6931472
    %v1858 = vlog2.pop %v1795
    %v1859 = vmul.f32 %v1858, 0.6931472
    %v1860 = vlog2.pop %v1797
    %v1861 = vmul.f32 %v1860, 0.6931472
    %v1862 = vlog2.pop %v1799
    %v1863 = vmul.f32 %v1862, 0.6931472
    %v1864 = vlog2.pop %v1801
    %v1865 = vmul.f32 %v1864, 0.6931472
    %v1866 = vlog2.pop %v1803
    %v1867 = vmul.f32 %v1866, 0.6931472
    %v1868 = vlog2.pop %v1805
    %v1869 = vmul.f32 %v1868, 0.6931472
    %v1870 = vlog2.pop %v1807
    %v1871 = vmul.f32 %v1870, 0.6931472
    %v1872 = vlog2.pop %v1809
    %v1873 = vmul.f32 %v1872, 0.6931472
    %v1874 = vlog2.pop %v1811
    %v1875 = vmul.f32 %v1874, 0.6931472
    %v1876 = vlog2.pop %v1813
    %v1877 = vmul.f32 %v1876, 0.6931472
    %v1878 = vlog2.pop %v1815
    %v1879 = vmul.f32 %v1878, 0.6931472
    %v1880 = vlog2.pop %v1817
    %v1881 = vmul.f32 %v1880, 0.6931472
    %v1882 = vlog2.pop %v1819
    %v1883 = vmul.f32 %v1882, 0.6931472
    %v1884 = vlog2.pop %v1821
    %v1885 = vmul.f32 %v1884, 0.6931472
    %v1886 = vlog2.pop %v1823
    %v1887 = vmul.f32 %v1886, 0.6931472
    %v1888 = vadd.f32 %v1056, %v1825
    %v1889 = vadd.f32 %v1058, %v1827
    %v1890 = vadd.f32 %v1060, %v1829
    %v1891 = vadd.f32 %v1062, %v1831
    %v1892 = vadd.f32 %v1064, %v1833
    %v1893 = vadd.f32 %v1066, %v1835
    %v1894 = vadd.f32 %v1068, %v1837
    %v1895 = vadd.f32 %v1070, %v1839
    %v1896 = vadd.f32 %v1072, %v1841
    %v1897 = vadd.f32 %v1074, %v1843
    %v1898 = vadd.f32 %v1076, %v1845
    %v1899 = vadd.f32 %v1078, %v1847
    %v1900 = vadd.f32 %v1080, %v1849
    %v1901 = vadd.f32 %v1082, %v1851
    %v1902 = vadd.f32 %v1084, %v1853
    %v1903 = vadd.f32 %v1086, %v1855
    %v1904 = vadd.f32 %v1088, %v1857
    %v1905 = vadd.f32 %v1090, %v1859
    %v1906 = vadd.f32 %v1092, %v1861
    %v1907 = vadd.f32 %v1094, %v1863
    %v1908 = vadd.f32 %v1096, %v1865
    %v1909 = vadd.f32 %v1098, %v1867
    %v1910 = vadd.f32 %v1100, %v1869
    %v1911 = vadd.f32 %v1102, %v1871
    %v1912 = vadd.f32 %v1104, %v1873
    %v1913 = vadd.f32 %v1106, %v1875
    %v1914 = vadd.f32 %v1108, %v1877
    %v1915 = vadd.f32 %v1110, %v1879
    %v1916 = vadd.f32 %v1112, %v1881
    %v1917 = vadd.f32 %v1114, %v1883
    %v1918 = vadd.f32 %v1116, %v1885
    %v1919 = vadd.f32 %v1118, %v1887
    %v1920 = vld [vmem:[%s2] sm:$0xff]
    %v1921 = vld [vmem:[%s2 + $0x8] sm:$0xff]
    %v1922 = vld [vmem:[%s2 + $0x10] sm:$0xff]
    %v1923 = vld [vmem:[%s2 + $0x18] sm:$0xff]
    %v1924 = vld [vmem:[%s2 + $0x20] sm:$0xff]
    %v1925 = vld [vmem:[%s2 + $0x28] sm:$0xff]
    %v1926 = vld [vmem:[%s2 + $0x30] sm:$0xff]
    %v1927 = vld [vmem:[%s2 + $0x38] sm:$0xff]
    %v1928 = vld [vmem:[%s2 + $0x40] sm:$0xff]
    %v1929 = vld [vmem:[%s2 + $0x48] sm:$0xff]
    %v1930 = vld [vmem:[%s2 + $0x50] sm:$0xff]
    %v1931 = vld [vmem:[%s2 + $0x58] sm:$0xff]
    %v1932 = vld [vmem:[%s2 + $0x60] sm:$0xff]
    %v1933 = vld [vmem:[%s2 + $0x68] sm:$0xff]
    %v1934 = vld [vmem:[%s2 + $0x70] sm:$0xff]
    %v1935 = vld [vmem:[%s2 + $0x78] sm:$0xff]
    %v1936 = vld [vmem:[%s2 + $0x80] sm:$0xff]
    %v1937 = vld [vmem:[%s2 + $0x88] sm:$0xff]
    %v1938 = vld [vmem:[%s2 + $0x90] sm:$0xff]
    %v1939 = vld [vmem:[%s2 + $0x98] sm:$0xff]
    %v1940 = vld [vmem:[%s2 + $0xa0] sm:$0xff]
    %v1941 = vld [vmem:[%s2 + $0xa8] sm:$0xff]
    %v1942 = vld [vmem:[%s2 + $0xb0] sm:$0xff]
    %v1943 = vld [vmem:[%s2 + $0xb8] sm:$0xff]
    %v1944 = vld [vmem:[%s2 + $0xc0] sm:$0xff]
    %v1945 = vld [vmem:[%s2 + $0xc8] sm:$0xff]
    %v1946 = vld [vmem:[%s2 + $0xd0] sm:$0xff]
    %v1947 = vld [vmem:[%s2 + $0xd8] sm:$0xff]
    %v1948 = vld [vmem:[%s2 + $0xe0] sm:$0xff]
    %v1949 = vld [vmem:[%s2 + $0xe8] sm:$0xff]
    %v1950 = vld [vmem:[%s2 + $0xf0] sm:$0xff]
    %v1951 = vld [vmem:[%s2 + $0xf8] sm:$0xff]
    %1952 = vset.pattern.permute.xlu0 0
    %1953 = vperm.xlu0 %1952, %v1920
    %v1954 = vpop.permute.xlu0 %1953
    %1955 = vset.pattern.permute.xlu0 0
    %1956 = vperm.xlu0 %1955, %v1921
    %v1957 = vpop.permute.xlu0 %1956
    %1958 = vset.pattern.permute.xlu0 0
    %1959 = vperm.xlu0 %1958, %v1922
    %v1960 = vpop.permute.xlu0 %1959
    %1961 = vset.pattern.permute.xlu0 0
    %1962 = vperm.xlu0 %1961, %v1923
    %v1963 = vpop.permute.xlu0 %1962
    %1964 = vset.pattern.permute.xlu0 0
    %1965 = vperm.xlu0 %1964, %v1924
    %v1966 = vpop.permute.xlu0 %1965
    %1967 = vset.pattern.permute.xlu0 0
    %1968 = vperm.xlu0 %1967, %v1925
    %v1969 = vpop.permute.xlu0 %1968
    %1970 = vset.pattern.permute.xlu0 0
    %1971 = vperm.xlu0 %1970, %v1926
    %v1972 = vpop.permute.xlu0 %1971
    %1973 = vset.pattern.permute.xlu0 0
    %1974 = vperm.xlu0 %1973, %v1927
    %v1975 = vpop.permute.xlu0 %1974
    %1976 = vset.pattern.permute.xlu0 0
    %1977 = vperm.xlu0 %1976, %v1928
    %v1978 = vpop.permute.xlu0 %1977
    %1979 = vset.pattern.permute.xlu0 0
    %1980 = vperm.xlu0 %1979, %v1929
    %v1981 = vpop.permute.xlu0 %1980
    %1982 = vset.pattern.permute.xlu0 0
    %1983 = vperm.xlu0 %1982, %v1930
    %v1984 = vpop.permute.xlu0 %1983
    %1985 = vset.pattern.permute.xlu0 0
    %1986 = vperm.xlu0 %1985, %v1931
    %v1987 = vpop.permute.xlu0 %1986
    %1988 = vset.pattern.permute.xlu0 0
    %1989 = vperm.xlu0 %1988, %v1932
    %v1990 = vpop.permute.xlu0 %1989
    %1991 = vset.pattern.permute.xlu0 0
    %1992 = vperm.xlu0 %1991, %v1933
    %v1993 = vpop.permute.xlu0 %1992
    %1994 = vset.pattern.permute.xlu0 0
    %1995 = vperm.xlu0 %1994, %v1934
    %v1996 = vpop.permute.xlu0 %1995
    %1997 = vset.pattern.permute.xlu0 0
    %1998 = vperm.xlu0 %1997, %v1935
    %v1999 = vpop.permute.xlu0 %1998
    %2000 = vset.pattern.permute.xlu0 0
    %2001 = vperm.xlu0 %2000, %v1936
    %v2002 = vpop.permute.xlu0 %2001
    %2003 = vset.pattern.permute.xlu0 0
    %2004 = vperm.xlu0 %2003, %v1937
    %v2005 = vpop.permute.xlu0 %2004
    %2006 = vset.pattern.permute.xlu0 0
    %2007 = vperm.xlu0 %2006, %v1938
    %v2008 = vpop.permute.xlu0 %2007
    %2009 = vset.pattern.permute.xlu0 0
    %2010 = vperm.xlu0 %2009, %v1939
    %v2011 = vpop.permute.xlu0 %2010
    %2012 = vset.pattern.permute.xlu0 0
    %2013 = vperm.xlu0 %2012, %v1940
    %v2014 = vpop.permute.xlu0 %2013
    %2015 = vset.pattern.permute.xlu0 0
    %2016 = vperm.xlu0 %2015, %v1941
    %v2017 = vpop.permute.xlu0 %2016
    %2018 = vset.pattern.permute.xlu0 0
    %2019 = vperm.xlu0 %2018, %v1942
    %v2020 = vpop.permute.xlu0 %2019
    %2021 = vset.pattern.permute.xlu0 0
    %2022 = vperm.xlu0 %2021, %v1943
    %v2023 = vpop.permute.xlu0 %2022
    %2024 = vset.pattern.permute.xlu0 0
    %2025 = vperm.xlu0 %2024, %v1944
    %v2026 = vpop.permute.xlu0 %2025
    %2027 = vset.pattern.permute.xlu0 0
    %2028 = vperm.xlu0 %2027, %v1945
    %v2029 = vpop.permute.xlu0 %2028
    %2030 = vset.pattern.permute.xlu0 0
    %2031 = vperm.xlu0 %2030, %v1946
    %v2032 = vpop.permute.xlu0 %2031
    %2033 = vset.pattern.permute.xlu0 0
    %2034 = vperm.xlu0 %2033, %v1947
    %v2035 = vpop.permute.xlu0 %2034
    %2036 = vset.pattern.permute.xlu0 0
    %2037 = vperm.xlu0 %2036, %v1948
    %v2038 = vpop.permute.xlu0 %2037
    %2039 = vset.pattern.permute.xlu0 0
    %2040 = vperm.xlu0 %2039, %v1949
    %v2041 = vpop.permute.xlu0 %2040
    %2042 = vset.pattern.permute.xlu0 0
    %2043 = vperm.xlu0 %2042, %v1950
    %v2044 = vpop.permute.xlu0 %2043
    %2045 = vset.pattern.permute.xlu0 0
    %2046 = vperm.xlu0 %2045, %v1951
    %v2047 = vpop.permute.xlu0 %2046
    %vm2048 = vcmp.eq.s32.totalorder %v1021, %v1954
    %vm2049 = vcmp.eq.s32.totalorder %v1021, %v1957
    %vm2050 = vcmp.eq.s32.totalorder %v1021, %v1960
    %vm2051 = vcmp.eq.s32.totalorder %v1021, %v1963
    %vm2052 = vcmp.eq.s32.totalorder %v1021, %v1966
    %vm2053 = vcmp.eq.s32.totalorder %v1021, %v1969
    %vm2054 = vcmp.eq.s32.totalorder %v1021, %v1972
    %vm2055 = vcmp.eq.s32.totalorder %v1021, %v1975
    %vm2056 = vcmp.eq.s32.totalorder %v1021, %v1978
    %vm2057 = vcmp.eq.s32.totalorder %v1021, %v1981
    %vm2058 = vcmp.eq.s32.totalorder %v1021, %v1984
    %vm2059 = vcmp.eq.s32.totalorder %v1021, %v1987
    %vm2060 = vcmp.eq.s32.totalorder %v1021, %v1990
    %vm2061 = vcmp.eq.s32.totalorder %v1021, %v1993
    %vm2062 = vcmp.eq.s32.totalorder %v1021, %v1996
    %vm2063 = vcmp.eq.s32.totalorder %v1021, %v1999
    %vm2064 = vcmp.eq.s32.totalorder %v1021, %v2002
    %vm2065 = vcmp.eq.s32.totalorder %v1021, %v2005
    %vm2066 = vcmp.eq.s32.totalorder %v1021, %v2008
    %vm2067 = vcmp.eq.s32.totalorder %v1021, %v2011
    %vm2068 = vcmp.eq.s32.totalorder %v1021, %v2014
    %vm2069 = vcmp.eq.s32.totalorder %v1021, %v2017
    %vm2070 = vcmp.eq.s32.totalorder %v1021, %v2020
    %vm2071 = vcmp.eq.s32.totalorder %v1021, %v2023
    %vm2072 = vcmp.eq.s32.totalorder %v1021, %v2026
    %vm2073 = vcmp.eq.s32.totalorder %v1021, %v2029
    %vm2074 = vcmp.eq.s32.totalorder %v1021, %v2032
    %vm2075 = vcmp.eq.s32.totalorder %v1021, %v2035
    %vm2076 = vcmp.eq.s32.totalorder %v1021, %v2038
    %vm2077 = vcmp.eq.s32.totalorder %v1021, %v2041
    %vm2078 = vcmp.eq.s32.totalorder %v1021, %v2044
    %vm2079 = vcmp.eq.s32.totalorder %v1021, %v2047
    %v2080 = vsel %vm2048, 1, 0
    %v2081 = vsel %vm2049, 1, 0
    %v2082 = vsel %vm2050, 1, 0
    %v2083 = vsel %vm2051, 1, 0
    %v2084 = vsel %vm2052, 1, 0
    %v2085 = vsel %vm2053, 1, 0
    %v2086 = vsel %vm2054, 1, 0
    %v2087 = vsel %vm2055, 1, 0
    %v2088 = vsel %vm2056, 1, 0
    %v2089 = vsel %vm2057, 1, 0
    %v2090 = vsel %vm2058, 1, 0
    %v2091 = vsel %vm2059, 1, 0
    %v2092 = vsel %vm2060, 1, 0
    %v2093 = vsel %vm2061, 1, 0
    %v2094 = vsel %vm2062, 1, 0
    %v2095 = vsel %vm2063, 1, 0
    %v2096 = vsel %vm2064, 1, 0
    %v2097 = vsel %vm2065, 1, 0
    %v2098 = vsel %vm2066, 1, 0
    %v2099 = vsel %vm2067, 1, 0
    %v2100 = vsel %vm2068, 1, 0
    %v2101 = vsel %vm2069, 1, 0
    %v2102 = vsel %vm2070, 1, 0
    %v2103 = vsel %vm2071, 1, 0
    %v2104 = vsel %vm2072, 1, 0
    %v2105 = vsel %vm2073, 1, 0
    %v2106 = vsel %vm2074, 1, 0
    %v2107 = vsel %vm2075, 1, 0
    %v2108 = vsel %vm2076, 1, 0
    %v2109 = vsel %vm2077, 1, 0
    %v2110 = vsel %vm2078, 1, 0
    %v2111 = vsel %vm2079, 1, 0
    %v2112 = vcvt.s32.f32 %v2080
    %v2113 = vcvt.s32.f32 %v2081
    %v2114 = vcvt.s32.f32 %v2082
    %v2115 = vcvt.s32.f32 %v2083
    %v2116 = vcvt.s32.f32 %v2084
    %v2117 = vcvt.s32.f32 %v2085
    %v2118 = vcvt.s32.f32 %v2086
    %v2119 = vcvt.s32.f32 %v2087
    %v2120 = vcvt.s32.f32 %v2088
    %v2121 = vcvt.s32.f32 %v2089
    %v2122 = vcvt.s32.f32 %v2090
    %v2123 = vcvt.s32.f32 %v2091
    %v2124 = vcvt.s32.f32 %v2092
    %v2125 = vcvt.s32.f32 %v2093
    %v2126 = vcvt.s32.f32 %v2094
    %v2127 = vcvt.s32.f32 %v2095
    %v2128 = vcvt.s32.f32 %v2096
    %v2129 = vcvt.s32.f32 %v2097
    %v2130 = vcvt.s32.f32 %v2098
    %v2131 = vcvt.s32.f32 %v2099
    %v2132 = vcvt.s32.f32 %v2100
    %v2133 = vcvt.s32.f32 %v2101
    %v2134 = vcvt.s32.f32 %v2102
    %v2135 = vcvt.s32.f32 %v2103
    %v2136 = vcvt.s32.f32 %v2104
    %v2137 = vcvt.s32.f32 %v2105
    %v2138 = vcvt.s32.f32 %v2106
    %v2139 = vcvt.s32.f32 %v2107
    %v2140 = vcvt.s32.f32 %v2108
    %v2141 = vcvt.s32.f32 %v2109
    %v2142 = vcvt.s32.f32 %v2110
    %v2143 = vcvt.s32.f32 %v2111
    %v2144 = vmul.f32 %v988, %v2112
    %v2145 = vmul.f32 %v989, %v2113
    %v2146 = vmul.f32 %v990, %v2114
    %v2147 = vmul.f32 %v991, %v2115
    %v2148 = vmul.f32 %v992, %v2116
    %v2149 = vmul.f32 %v993, %v2117
    %v2150 = vmul.f32 %v994, %v2118
    %v2151 = vmul.f32 %v995, %v2119
    %v2152 = vmul.f32 %v996, %v2120
    %v2153 = vmul.f32 %v997, %v2121
    %v2154 = vmul.f32 %v998, %v2122
    %v2155 = vmul.f32 %v999, %v2123
    %v2156 = vmul.f32 %v1000, %v2124
    %v2157 = vmul.f32 %v1001, %v2125
    %v2158 = vmul.f32 %v1002, %v2126
    %v2159 = vmul.f32 %v1003, %v2127
    %v2160 = vmul.f32 %v1004, %v2128
    %v2161 = vmul.f32 %v1005, %v2129
    %v2162 = vmul.f32 %v1006, %v2130
    %v2163 = vmul.f32 %v1007, %v2131
    %v2164 = vmul.f32 %v1008, %v2132
    %v2165 = vmul.f32 %v1009, %v2133
    %v2166 = vmul.f32 %v1010, %v2134
    %v2167 = vmul.f32 %v1011, %v2135
    %v2168 = vmul.f32 %v1012, %v2136
    %v2169 = vmul.f32 %v1013, %v2137
    %v2170 = vmul.f32 %v1014, %v2138
    %v2171 = vmul.f32 %v1015, %v2139
    %v2172 = vmul.f32 %v1016, %v2140
    %v2173 = vmul.f32 %v1017, %v2141
    %v2174 = vmul.f32 %v1018, %v2142
    %v2175 = vmul.f32 %v1019, %v2143
    %2176 = vadd.xlane.f32.xlu0 %v2144
    %v2177 = vpop.xlane.xlu0 %2176
    %2178 = vadd.xlane.f32.xlu0 %v2145
    %v2179 = vpop.xlane.xlu0 %2178
    %2180 = vadd.xlane.f32.xlu0 %v2146
    %v2181 = vpop.xlane.xlu0 %2180
    %2182 = vadd.xlane.f32.xlu0 %v2147
    %v2183 = vpop.xlane.xlu0 %2182
    %2184 = vadd.xlane.f32.xlu0 %v2148
    %v2185 = vpop.xlane.xlu0 %2184
    %2186 = vadd.xlane.f32.xlu0 %v2149
    %v2187 = vpop.xlane.xlu0 %2186
    %2188 = vadd.xlane.f32.xlu0 %v2150
    %v2189 = vpop.xlane.xlu0 %2188
    %2190 = vadd.xlane.f32.xlu0 %v2151
    %v2191 = vpop.xlane.xlu0 %2190
    %2192 = vadd.xlane.f32.xlu0 %v2152
    %v2193 = vpop.xlane.xlu0 %2192
    %2194 = vadd.xlane.f32.xlu0 %v2153
    %v2195 = vpop.xlane.xlu0 %2194
    %2196 = vadd.xlane.f32.xlu0 %v2154
    %v2197 = vpop.xlane.xlu0 %2196
    %2198 = vadd.xlane.f32.xlu0 %v2155
    %v2199 = vpop.xlane.xlu0 %2198
    %2200 = vadd.xlane.f32.xlu0 %v2156
    %v2201 = vpop.xlane.xlu0 %2200
    %2202 = vadd.xlane.f32.xlu0 %v2157
    %v2203 = vpop.xlane.xlu0 %2202
    %2204 = vadd.xlane.f32.xlu0 %v2158
    %v2205 = vpop.xlane.xlu0 %2204
    %2206 = vadd.xlane.f32.xlu0 %v2159
    %v2207 = vpop.xlane.xlu0 %2206
    %2208 = vadd.xlane.f32.xlu0 %v2160
    %v2209 = vpop.xlane.xlu0 %2208
    %2210 = vadd.xlane.f32.xlu0 %v2161
    %v2211 = vpop.xlane.xlu0 %2210
    %2212 = vadd.xlane.f32.xlu0 %v2162
    %v2213 = vpop.xlane.xlu0 %2212
    %2214 = vadd.xlane.f32.xlu0 %v2163
    %v2215 = vpop.xlane.xlu0 %2214
    %2216 = vadd.xlane.f32.xlu0 %v2164
    %v2217 = vpop.xlane.xlu0 %2216
    %2218 = vadd.xlane.f32.xlu0 %v2165
    %v2219 = vpop.xlane.xlu0 %2218
    %2220 = vadd.xlane.f32.xlu0 %v2166
    %v2221 = vpop.xlane.xlu0 %2220
    %2222 = vadd.xlane.f32.xlu0 %v2167
    %v2223 = vpop.xlane.xlu0 %2222
    %2224 = vadd.xlane.f32.xlu0 %v2168
    %v2225 = vpop.xlane.xlu0 %2224
    %2226 = vadd.xlane.f32.xlu0 %v2169
    %v2227 = vpop.xlane.xlu0 %2226
    %2228 = vadd.xlane.f32.xlu0 %v2170
    %v2229 = vpop.xlane.xlu0 %2228
    %2230 = vadd.xlane.f32.xlu0 %v2171
    %v2231 = vpop.xlane.xlu0 %2230
    %2232 = vadd.xlane.f32.xlu0 %v2172
    %v2233 = vpop.xlane.xlu0 %2232
    %2234 = vadd.xlane.f32.xlu0 %v2173
    %v2235 = vpop.xlane.xlu0 %2234
    %2236 = vadd.xlane.f32.xlu0 %v2174
    %v2237 = vpop.xlane.xlu0 %2236
    %2238 = vadd.xlane.f32.xlu0 %v2175
    %v2239 = vpop.xlane.xlu0 %2238
    %vm2240 = vcmp.ne.s32.totalorder %v1920, 4294967295
    %vm2241 = vcmp.ne.s32.totalorder %v1921, 4294967295
    %vm2242 = vcmp.ne.s32.totalorder %v1922, 4294967295
    %vm2243 = vcmp.ne.s32.totalorder %v1923, 4294967295
    %vm2244 = vcmp.ne.s32.totalorder %v1924, 4294967295
    %vm2245 = vcmp.ne.s32.totalorder %v1925, 4294967295
    %vm2246 = vcmp.ne.s32.totalorder %v1926, 4294967295
    %vm2247 = vcmp.ne.s32.totalorder %v1927, 4294967295
    %vm2248 = vcmp.ne.s32.totalorder %v1928, 4294967295
    %vm2249 = vcmp.ne.s32.totalorder %v1929, 4294967295
    %vm2250 = vcmp.ne.s32.totalorder %v1930, 4294967295
    %vm2251 = vcmp.ne.s32.totalorder %v1931, 4294967295
    %vm2252 = vcmp.ne.s32.totalorder %v1932, 4294967295
    %vm2253 = vcmp.ne.s32.totalorder %v1933, 4294967295
    %vm2254 = vcmp.ne.s32.totalorder %v1934, 4294967295
    %vm2255 = vcmp.ne.s32.totalorder %v1935, 4294967295
    %vm2256 = vcmp.ne.s32.totalorder %v1936, 4294967295
    %vm2257 = vcmp.ne.s32.totalorder %v1937, 4294967295
    %vm2258 = vcmp.ne.s32.totalorder %v1938, 4294967295
    %vm2259 = vcmp.ne.s32.totalorder %v1939, 4294967295
    %vm2260 = vcmp.ne.s32.totalorder %v1940, 4294967295
    %vm2261 = vcmp.ne.s32.totalorder %v1941, 4294967295
    %vm2262 = vcmp.ne.s32.totalorder %v1942, 4294967295
    %vm2263 = vcmp.ne.s32.totalorder %v1943, 4294967295
    %vm2264 = vcmp.ne.s32.totalorder %v1944, 4294967295
    %vm2265 = vcmp.ne.s32.totalorder %v1945, 4294967295
    %vm2266 = vcmp.ne.s32.totalorder %v1946, 4294967295
    %vm2267 = vcmp.ne.s32.totalorder %v1947, 4294967295
    %vm2268 = vcmp.ne.s32.totalorder %v1948, 4294967295
    %vm2269 = vcmp.ne.s32.totalorder %v1949, 4294967295
    %vm2270 = vcmp.ne.s32.totalorder %v1950, 4294967295
    %vm2271 = vcmp.ne.s32.totalorder %v1951, 4294967295
    %v2272 = vsel %vm2240, 1, 0
    %v2273 = vsel %vm2241, 1, 0
    %v2274 = vsel %vm2242, 1, 0
    %v2275 = vsel %vm2243, 1, 0
    %v2276 = vsel %vm2244, 1, 0
    %v2277 = vsel %vm2245, 1, 0
    %v2278 = vsel %vm2246, 1, 0
    %v2279 = vsel %vm2247, 1, 0
    %v2280 = vsel %vm2248, 1, 0
    %v2281 = vsel %vm2249, 1, 0
    %v2282 = vsel %vm2250, 1, 0
    %v2283 = vsel %vm2251, 1, 0
    %v2284 = vsel %vm2252, 1, 0
    %v2285 = vsel %vm2253, 1, 0
    %v2286 = vsel %vm2254, 1, 0
    %v2287 = vsel %vm2255, 1, 0
    %v2288 = vsel %vm2256, 1, 0
    %v2289 = vsel %vm2257, 1, 0
    %v2290 = vsel %vm2258, 1, 0
    %v2291 = vsel %vm2259, 1, 0
    %v2292 = vsel %vm2260, 1, 0
    %v2293 = vsel %vm2261, 1, 0
    %v2294 = vsel %vm2262, 1, 0
    %v2295 = vsel %vm2263, 1, 0
    %v2296 = vsel %vm2264, 1, 0
    %v2297 = vsel %vm2265, 1, 0
    %v2298 = vsel %vm2266, 1, 0
    %v2299 = vsel %vm2267, 1, 0
    %v2300 = vsel %vm2268, 1, 0
    %v2301 = vsel %vm2269, 1, 0
    %v2302 = vsel %vm2270, 1, 0
    %v2303 = vsel %vm2271, 1, 0
    %v2304 = vcvt.s32.f32 %v2272
    %v2305 = vcvt.s32.f32 %v2273
    %v2306 = vcvt.s32.f32 %v2274
    %v2307 = vcvt.s32.f32 %v2275
    %v2308 = vcvt.s32.f32 %v2276
    %v2309 = vcvt.s32.f32 %v2277
    %v2310 = vcvt.s32.f32 %v2278
    %v2311 = vcvt.s32.f32 %v2279
    %v2312 = vcvt.s32.f32 %v2280
    %v2313 = vcvt.s32.f32 %v2281
    %v2314 = vcvt.s32.f32 %v2282
    %v2315 = vcvt.s32.f32 %v2283
    %v2316 = vcvt.s32.f32 %v2284
    %v2317 = vcvt.s32.f32 %v2285
    %v2318 = vcvt.s32.f32 %v2286
    %v2319 = vcvt.s32.f32 %v2287
    %v2320 = vcvt.s32.f32 %v2288
    %v2321 = vcvt.s32.f32 %v2289
    %v2322 = vcvt.s32.f32 %v2290
    %v2323 = vcvt.s32.f32 %v2291
    %v2324 = vcvt.s32.f32 %v2292
    %v2325 = vcvt.s32.f32 %v2293
    %v2326 = vcvt.s32.f32 %v2294
    %v2327 = vcvt.s32.f32 %v2295
    %v2328 = vcvt.s32.f32 %v2296
    %v2329 = vcvt.s32.f32 %v2297
    %v2330 = vcvt.s32.f32 %v2298
    %v2331 = vcvt.s32.f32 %v2299
    %v2332 = vcvt.s32.f32 %v2300
    %v2333 = vcvt.s32.f32 %v2301
    %v2334 = vcvt.s32.f32 %v2302
    %v2335 = vcvt.s32.f32 %v2303
    %v2336 = vsub.f32 %v1888, %v2177
    %v2337 = vsub.f32 %v1889, %v2179
    %v2338 = vsub.f32 %v1890, %v2181
    %v2339 = vsub.f32 %v1891, %v2183
    %v2340 = vsub.f32 %v1892, %v2185
    %v2341 = vsub.f32 %v1893, %v2187
    %v2342 = vsub.f32 %v1894, %v2189
    %v2343 = vsub.f32 %v1895, %v2191
    %v2344 = vsub.f32 %v1896, %v2193
    %v2345 = vsub.f32 %v1897, %v2195
    %v2346 = vsub.f32 %v1898, %v2197
    %v2347 = vsub.f32 %v1899, %v2199
    %v2348 = vsub.f32 %v1900, %v2201
    %v2349 = vsub.f32 %v1901, %v2203
    %v2350 = vsub.f32 %v1902, %v2205
    %v2351 = vsub.f32 %v1903, %v2207
    %v2352 = vsub.f32 %v1904, %v2209
    %v2353 = vsub.f32 %v1905, %v2211
    %v2354 = vsub.f32 %v1906, %v2213
    %v2355 = vsub.f32 %v1907, %v2215
    %v2356 = vsub.f32 %v1908, %v2217
    %v2357 = vsub.f32 %v1909, %v2219
    %v2358 = vsub.f32 %v1910, %v2221
    %v2359 = vsub.f32 %v1911, %v2223
    %v2360 = vsub.f32 %v1912, %v2225
    %v2361 = vsub.f32 %v1913, %v2227
    %v2362 = vsub.f32 %v1914, %v2229
    %v2363 = vsub.f32 %v1915, %v2231
    %v2364 = vsub.f32 %v1916, %v2233
    %v2365 = vsub.f32 %v1917, %v2235
    %v2366 = vsub.f32 %v1918, %v2237
    %v2367 = vsub.f32 %v1919, %v2239
    %v2368 = vmul.f32 %v2336, %v2304
    %v2369 = vmul.f32 %v2337, %v2305
    %v2370 = vmul.f32 %v2338, %v2306
    %v2371 = vmul.f32 %v2339, %v2307
    %v2372 = vmul.f32 %v2340, %v2308
    %v2373 = vmul.f32 %v2341, %v2309
    %v2374 = vmul.f32 %v2342, %v2310
    %v2375 = vmul.f32 %v2343, %v2311
    %v2376 = vmul.f32 %v2344, %v2312
    %v2377 = vmul.f32 %v2345, %v2313
    %v2378 = vmul.f32 %v2346, %v2314
    %v2379 = vmul.f32 %v2347, %v2315
    %v2380 = vmul.f32 %v2348, %v2316
    %v2381 = vmul.f32 %v2349, %v2317
    %v2382 = vmul.f32 %v2350, %v2318
    %v2383 = vmul.f32 %v2351, %v2319
    %v2384 = vmul.f32 %v2352, %v2320
    %v2385 = vmul.f32 %v2353, %v2321
    %v2386 = vmul.f32 %v2354, %v2322
    %v2387 = vmul.f32 %v2355, %v2323
    %v2388 = vmul.f32 %v2356, %v2324
    %v2389 = vmul.f32 %v2357, %v2325
    %v2390 = vmul.f32 %v2358, %v2326
    %v2391 = vmul.f32 %v2359, %v2327
    %v2392 = vmul.f32 %v2360, %v2328
    %v2393 = vmul.f32 %v2361, %v2329
    %v2394 = vmul.f32 %v2362, %v2330
    %v2395 = vmul.f32 %v2363, %v2331
    %v2396 = vmul.f32 %v2364, %v2332
    %v2397 = vmul.f32 %v2365, %v2333
    %v2398 = vmul.f32 %v2366, %v2334
    %v2399 = vmul.f32 %v2367, %v2335
    %v2400 = vsel %vm1631, %v2368, 0.0
    %v2401 = vsel %vm1631, %v2369, 0.0
    %v2402 = vadd.f32 %v2400, %v2401
    %v2403 = vsel %vm1631, %v2370, 0.0
    %v2404 = vadd.f32 %v2402, %v2403
    %v2405 = vsel %vm1631, %v2371, 0.0
    %v2406 = vadd.f32 %v2404, %v2405
    %v2407 = vsel %vm1631, %v2372, 0.0
    %v2408 = vadd.f32 %v2406, %v2407
    %v2409 = vsel %vm1631, %v2373, 0.0
    %v2410 = vadd.f32 %v2408, %v2409
    %v2411 = vsel %vm1631, %v2374, 0.0
    %v2412 = vadd.f32 %v2410, %v2411
    %v2413 = vsel %vm1631, %v2375, 0.0
    %v2414 = vadd.f32 %v2412, %v2413
    %v2415 = vsel %vm1631, %v2376, 0.0
    %v2416 = vadd.f32 %v2414, %v2415
    %v2417 = vsel %vm1631, %v2377, 0.0
    %v2418 = vadd.f32 %v2416, %v2417
    %v2419 = vsel %vm1631, %v2378, 0.0
    %v2420 = vadd.f32 %v2418, %v2419
    %v2421 = vsel %vm1631, %v2379, 0.0
    %v2422 = vadd.f32 %v2420, %v2421
    %v2423 = vsel %vm1631, %v2380, 0.0
    %v2424 = vadd.f32 %v2422, %v2423
    %v2425 = vsel %vm1631, %v2381, 0.0
    %v2426 = vadd.f32 %v2424, %v2425
    %v2427 = vsel %vm1631, %v2382, 0.0
    %v2428 = vadd.f32 %v2426, %v2427
    %v2429 = vsel %vm1631, %v2383, 0.0
    %v2430 = vadd.f32 %v2428, %v2429
    %v2431 = vsel %vm1631, %v2384, 0.0
    %v2432 = vadd.f32 %v2430, %v2431
    %v2433 = vsel %vm1631, %v2385, 0.0
    %v2434 = vadd.f32 %v2432, %v2433
    %v2435 = vsel %vm1631, %v2386, 0.0
    %v2436 = vadd.f32 %v2434, %v2435
    %v2437 = vsel %vm1631, %v2387, 0.0
    %v2438 = vadd.f32 %v2436, %v2437
    %v2439 = vsel %vm1631, %v2388, 0.0
    %v2440 = vadd.f32 %v2438, %v2439
    %v2441 = vsel %vm1631, %v2389, 0.0
    %v2442 = vadd.f32 %v2440, %v2441
    %v2443 = vsel %vm1631, %v2390, 0.0
    %v2444 = vadd.f32 %v2442, %v2443
    %v2445 = vsel %vm1631, %v2391, 0.0
    %v2446 = vadd.f32 %v2444, %v2445
    %v2447 = vsel %vm1631, %v2392, 0.0
    %v2448 = vadd.f32 %v2446, %v2447
    %v2449 = vsel %vm1631, %v2393, 0.0
    %v2450 = vadd.f32 %v2448, %v2449
    %v2451 = vsel %vm1631, %v2394, 0.0
    %v2452 = vadd.f32 %v2450, %v2451
    %v2453 = vsel %vm1631, %v2395, 0.0
    %v2454 = vadd.f32 %v2452, %v2453
    %v2455 = vsel %vm1631, %v2396, 0.0
    %v2456 = vadd.f32 %v2454, %v2455
    %v2457 = vsel %vm1631, %v2397, 0.0
    %v2458 = vadd.f32 %v2456, %v2457
    %v2459 = vsel %vm1631, %v2398, 0.0
    %v2460 = vadd.f32 %v2458, %v2459
    %v2461 = vsel %vm1631, %v2399, 0.0
    %v2462 = vadd.f32 %v2460, %v2461
    %2463 = vadd.xlane.f32.xlu0 %v2462
    %v2464 = vpop.xlane.xlu0 %2463
    %v2465 = vrot.slane %v2464, 4
    %v2466 = vadd.f32 %v2464, %v2465
    %v2467 = vrot.slane %v2466, 2
    %v2468 = vadd.f32 %v2466, %v2467
    %v2469 = vrot.slane %v2468, 1
    %v2470 = vadd.f32 %v2468, %v2469
    %s2471 = vtos %v2470
    %v2472 = vsel %vm1631, %v2304, 0.0
    %v2473 = vsel %vm1631, %v2305, 0.0
    %v2474 = vadd.f32 %v2472, %v2473
    %v2475 = vsel %vm1631, %v2306, 0.0
    %v2476 = vadd.f32 %v2474, %v2475
    %v2477 = vsel %vm1631, %v2307, 0.0
    %v2478 = vadd.f32 %v2476, %v2477
    %v2479 = vsel %vm1631, %v2308, 0.0
    %v2480 = vadd.f32 %v2478, %v2479
    %v2481 = vsel %vm1631, %v2309, 0.0
    %v2482 = vadd.f32 %v2480, %v2481
    %v2483 = vsel %vm1631, %v2310, 0.0
    %v2484 = vadd.f32 %v2482, %v2483
    %v2485 = vsel %vm1631, %v2311, 0.0
    %v2486 = vadd.f32 %v2484, %v2485
    %v2487 = vsel %vm1631, %v2312, 0.0
    %v2488 = vadd.f32 %v2486, %v2487
    %v2489 = vsel %vm1631, %v2313, 0.0
    %v2490 = vadd.f32 %v2488, %v2489
    %v2491 = vsel %vm1631, %v2314, 0.0
    %v2492 = vadd.f32 %v2490, %v2491
    %v2493 = vsel %vm1631, %v2315, 0.0
    %v2494 = vadd.f32 %v2492, %v2493
    %v2495 = vsel %vm1631, %v2316, 0.0
    %v2496 = vadd.f32 %v2494, %v2495
    %v2497 = vsel %vm1631, %v2317, 0.0
    %v2498 = vadd.f32 %v2496, %v2497
    %v2499 = vsel %vm1631, %v2318, 0.0
    %v2500 = vadd.f32 %v2498, %v2499
    %v2501 = vsel %vm1631, %v2319, 0.0
    %v2502 = vadd.f32 %v2500, %v2501
    %v2503 = vsel %vm1631, %v2320, 0.0
    %v2504 = vadd.f32 %v2502, %v2503
    %v2505 = vsel %vm1631, %v2321, 0.0
    %v2506 = vadd.f32 %v2504, %v2505
    %v2507 = vsel %vm1631, %v2322, 0.0
    %v2508 = vadd.f32 %v2506, %v2507
    %v2509 = vsel %vm1631, %v2323, 0.0
    %v2510 = vadd.f32 %v2508, %v2509
    %v2511 = vsel %vm1631, %v2324, 0.0
    %v2512 = vadd.f32 %v2510, %v2511
    %v2513 = vsel %vm1631, %v2325, 0.0
    %v2514 = vadd.f32 %v2512, %v2513
    %v2515 = vsel %vm1631, %v2326, 0.0
    %v2516 = vadd.f32 %v2514, %v2515
    %v2517 = vsel %vm1631, %v2327, 0.0
    %v2518 = vadd.f32 %v2516, %v2517
    %v2519 = vsel %vm1631, %v2328, 0.0
    %v2520 = vadd.f32 %v2518, %v2519
    %v2521 = vsel %vm1631, %v2329, 0.0
    %v2522 = vadd.f32 %v2520, %v2521
    %v2523 = vsel %vm1631, %v2330, 0.0
    %v2524 = vadd.f32 %v2522, %v2523
    %v2525 = vsel %vm1631, %v2331, 0.0
    %v2526 = vadd.f32 %v2524, %v2525
    %v2527 = vsel %vm1631, %v2332, 0.0
    %v2528 = vadd.f32 %v2526, %v2527
    %v2529 = vsel %vm1631, %v2333, 0.0
    %v2530 = vadd.f32 %v2528, %v2529
    %v2531 = vsel %vm1631, %v2334, 0.0
    %v2532 = vadd.f32 %v2530, %v2531
    %v2533 = vsel %vm1631, %v2335, 0.0
    %v2534 = vadd.f32 %v2532, %v2533
    %2535 = vadd.xlane.f32.xlu0 %v2534
    %v2536 = vpop.xlane.xlu0 %2535
    %v2537 = vrot.slane %v2536, 4
    %v2538 = vadd.f32 %v2536, %v2537
    %v2539 = vrot.slane %v2538, 2
    %v2540 = vadd.f32 %v2538, %v2539
    %v2541 = vrot.slane %v2540, 1
    %v2542 = vadd.f32 %v2540, %v2541
    %s2543 = vtos %v2542
    %v2544 = vlaneseq
    %v2545 = vshrl.u32 %v2544, 7
    %vm2546 = vcmp.eq.s32.totalorder %v2545, 0
    %vm2547 = vcmp.eq.s32.totalorder %v1021, 0
    %vm2548 = vmand %vm2546, %vm2547
    %vm2549 = vcmp.eq.s32.totalorder %v1021, 1
    %vm2550 = vmand %vm2546, %vm2549
    %v2551 = vstv %s2543
    %v2552 = vsel %vm2550, %v2551, 0.0
    %v2553 = vstv %s2471
    %v2554 = vsel %vm2548, %v2553, %v2552
    %2555 = vst [vmem:[#allocation2] sm:$0xff] %v2554
    // Predicated region
    $region34: #{tpu_custom_call.1} parent=1 // pred_check
      _
    $region35: #{tpu_custom_call.1} parent=1 // pred_check_branch
      %2557 = sbr.rel (0) target = $region37
    $region36: #{tpu_custom_call.1} parent=1 // pred_region
      _
    $region37: #{tpu_custom_call.1} parent=1 // pred_fallthru
      _
    // Predicated region
    $region38: #{tpu_custom_call.1} parent=1 // pred_check
      _
    $region39: #{tpu_custom_call.1} parent=1 // pred_check_branch
      %2559 = sbr.rel (0) target = $region41
    $region40: #{tpu_custom_call.1} parent=1 // pred_region
      %s2561 = ssub.s32 128, 128
      %2562 = vsyncadd [#allocation3], %s2561
      %s2564 = sshll.u32 [#allocation2], 4
      %s2565 = int_to_ptr.vmem [resolvable:$true] %s2564
      %2567 = dma.vmem_to_hbm [thread:$0]  %s2565, 128, %s9, [#allocation3]
    $region41: #{tpu_custom_call.1} parent=1 // pred_fallthru
      _
    // Predicated region
    $region42: #{tpu_custom_call.1} parent=1 // pred_check
      _
    $region43: #{tpu_custom_call.1} parent=1 // pred_check_branch
      %2569 = sbr.rel (0) target = $region45
    $region44: #{tpu_custom_call.1} parent=1 // pred_region
      _
    $region45: #{tpu_custom_call.1} parent=1 // pred_fallthru
      _
    // Predicated region
    $region46: #{tpu_custom_call.1} parent=1 // pred_check
      _
    $region47: #{tpu_custom_call.1} parent=1 // pred_check_branch
      %2571 = sbr.rel (0) target = $region49
    $region48: #{tpu_custom_call.1} parent=1 // pred_region
      %2572 = dma.done [#allocation3], 128
    $region49: #{tpu_custom_call.1} parent=1 // pred_fallthru
      _
    %2573 = vsyncpa [#allocation3], 1

// kernel: tpu_custom_call.1
$region0: #{tpu_custom_call.1}
  #allocation0 [shape = 'u32[]', space=smem, size = 0x4, offset = 0x4, fixed_abs, tag = 'smem constant byte address 0x4 - core index']
  #allocation1 [shape = 'u32[144,128]{1,0:T(1,128)}', space=vmem, size = 0x12000, scoped, tag = 'internal scratch']
  %s0 = inlined_call_operand.vmem [shape: bf16[256,32], index: 0, kind: input, shape index: {}]
  %s1 = inlined_call_operand.vmem [shape: bf16[256,16], index: 1, kind: input, shape index: {}]
  %s2 = inlined_call_operand.vmem [shape: s32[256,1], index: 2, kind: input, shape index: {}]
  %s3 = inlined_call_operand.vmem [shape: bf16[32,32], index: 3, kind: input, shape index: {}]
  %s4 = inlined_call_operand.vmem [shape: f32[1,32], index: 4, kind: input, shape index: {}]
  %s5 = inlined_call_operand.vmem [shape: bf16[32,128], index: 5, kind: input, shape index: {}]
  %s6 = inlined_call_operand.vmem [shape: bf16[16,128], index: 6, kind: input, shape index: {}]
  %s7 = inlined_call_operand.vmem [shape: f32[1,128], index: 7, kind: input, shape index: {}]
  %s8 = inlined_call_operand.vmem [shape: s32[256,1], index: 8, kind: output, shape index: {0}]
  %s9 = inlined_call_operand.hbm [shape: f32[8,128], index: 9, kind: output, shape index: {1}]
  %10 = xla_tuple %s8, %s9
  %s11 = sld [smem:[#allocation0]]
  $region50: #{tpu_custom_call.1} parent=0
    _
  %s13 = ssub.s32 1, %s11
  %s14 = scalar_select 0, %s13, %s11
  $region1: #{tpu_custom_call.1} parent=0
    #allocation2 [shape = 'u8[4096]{0}', space=vmem, size = 0x1000, scoped, tag = 'output window, operand 1, single buffered']
    #allocation3 [shape = 's32[1]{0}', space=sflag, size = 0x4, scoped, tag = 'scoped memory for tpu_custom_call.1']
    %15 = vsyncpa [#allocation3], 0
    // Predicated region
    $region2: #{tpu_custom_call.1} parent=1 // pred_check
      _
    $region3: #{tpu_custom_call.1} parent=1 // pred_check_branch
      %17 = sbr.rel (0) target = $region5
    $region4: #{tpu_custom_call.1} parent=1 // pred_region
      _
    $region5: #{tpu_custom_call.1} parent=1 // pred_fallthru
      _
    // Predicated region
    $region6: #{tpu_custom_call.1} parent=1 // pred_check
      _
    $region7: #{tpu_custom_call.1} parent=1 // pred_check_branch
      %19 = sbr.rel (0) target = $region9
    $region8: #{tpu_custom_call.1} parent=1 // pred_region
      _
    $region9: #{tpu_custom_call.1} parent=1 // pred_fallthru
      _
    // Predicated region
    $region10: #{tpu_custom_call.1} parent=1 // pred_check
      _
    $region11: #{tpu_custom_call.1} parent=1 // pred_check_branch
      %21 = sbr.rel (0) target = $region13
    $region12: #{tpu_custom_call.1} parent=1 // pred_region
      _
    $region13: #{tpu_custom_call.1} parent=1 // pred_fallthru
      _
    // Predicated region
    $region14: #{tpu_custom_call.1} parent=1 // pred_check
      _
    $region15: #{tpu_custom_call.1} parent=1 // pred_check_branch
      %23 = sbr.rel (0) target = $region17
    $region16: #{tpu_custom_call.1} parent=1 // pred_region
      _
    $region17: #{tpu_custom_call.1} parent=1 // pred_fallthru
      _
    // Predicated region
    $region18: #{tpu_custom_call.1} parent=1 // pred_check
      _
    $region19: #{tpu_custom_call.1} parent=1 // pred_check_branch
      %25 = sbr.rel (0) target = $region21
    $region20: #{tpu_custom_call.1} parent=1 // pred_region
      _
    $region21: #{tpu_custom_call.1} parent=1 // pred_fallthru
      _
    // Predicated region
    $region22: #{tpu_custom_call.1} parent=1 // pred_check
      _
    $region23: #{tpu_custom_call.1} parent=1 // pred_check_branch
      %27 = sbr.rel (0) target = $region25
    $region24: #{tpu_custom_call.1} parent=1 // pred_region
      _
    $region25: #{tpu_custom_call.1} parent=1 // pred_fallthru
      _
    // Predicated region
    $region26: #{tpu_custom_call.1} parent=1 // pred_check
      _
    $region27: #{tpu_custom_call.1} parent=1 // pred_check_branch
      %29 = sbr.rel (0) target = $region29
    $region28: #{tpu_custom_call.1} parent=1 // pred_region
      _
    $region29: #{tpu_custom_call.1} parent=1 // pred_fallthru
      _
    // Predicated region
    $region30: #{tpu_custom_call.1} parent=1 // pred_check
      _
    $region31: #{tpu_custom_call.1} parent=1 // pred_check_branch
      %31 = sbr.rel (0) target = $region33
    $region32: #{tpu_custom_call.1} parent=1 // pred_region
      _
    $region33: #{tpu_custom_call.1} parent=1 // pred_fallthru
      _
    %v33 = vld [vmem:[%s0] sm:$0xf]
    %v34 = vld [vmem:[%s0 + $0x4] sm:$0xf]
    %v35 = vld [vmem:[%s0 + $0x8] sm:$0xf]
    %v36 = vld [vmem:[%s0 + $0xc] sm:$0xf]
    %v37 = vld [vmem:[%s0 + $0x10] sm:$0xf]
    %v38 = vld [vmem:[%s0 + $0x14] sm:$0xf]
    %v39 = vld [vmem:[%s0 + $0x18] sm:$0xf]
    %v40 = vld [vmem:[%s0 + $0x1c] sm:$0xf]
    %v41 = vld [vmem:[%s0 + $0x20] sm:$0xf]
    %v42 = vld [vmem:[%s0 + $0x24] sm:$0xf]
    %v43 = vld [vmem:[%s0 + $0x28] sm:$0xf]
    %v44 = vld [vmem:[%s0 + $0x2c] sm:$0xf]
    %v45 = vld [vmem:[%s0 + $0x30] sm:$0xf]
    %v46 = vld [vmem:[%s0 + $0x34] sm:$0xf]
    %v47 = vld [vmem:[%s0 + $0x38] sm:$0xf]
    %v48 = vld [vmem:[%s0 + $0x3c] sm:$0xf]
    %v49 = vld [vmem:[%s0 + $0x40] sm:$0xf]
    %v50 = vld [vmem:[%s0 + $0x44] sm:$0xf]
    %v51 = vld [vmem:[%s0 + $0x48] sm:$0xf]
    %v52 = vld [vmem:[%s0 + $0x4c] sm:$0xf]
    %v53 = vld [vmem:[%s0 + $0x50] sm:$0xf]
    %v54 = vld [vmem:[%s0 + $0x54] sm:$0xf]
    %v55 = vld [vmem:[%s0 + $0x58] sm:$0xf]
    %v56 = vld [vmem:[%s0 + $0x5c] sm:$0xf]
    %v57 = vld [vmem:[%s0 + $0x60] sm:$0xf]
    %v58 = vld [vmem:[%s0 + $0x64] sm:$0xf]
    %v59 = vld [vmem:[%s0 + $0x68] sm:$0xf]
    %v60 = vld [vmem:[%s0 + $0x6c] sm:$0xf]
    %v61 = vld [vmem:[%s0 + $0x70] sm:$0xf]
    %v62 = vld [vmem:[%s0 + $0x74] sm:$0xf]
    %v63 = vld [vmem:[%s0 + $0x78] sm:$0xf]
    %v64 = vld [vmem:[%s0 + $0x7c] sm:$0xf]
    %v65 = vld [vmem:[%s3] sm:$0xf]
    %v66 = vld [vmem:[%s3 + $0x4] sm:$0xf]
    %v67 = vld [vmem:[%s3 + $0x8] sm:$0xf]
    %v68 = vld [vmem:[%s3 + $0xc] sm:$0xf]
    %v69 = vld [vmem:[%s4] sm:$0x1]
    %v71 = vlaneseq
    %v72 = vshrl.u32 %v71, 7
    %v73 = vsub.s32 0, %v72
    %v74 = vrot.slane %v69, %v73
    %v108 = vunpack.c.l.b16 %v33
    %v109 = vunpack.c.l.b16 %v34
    %v110 = vunpack.c.l.b16 %v35
    %v111 = vunpack.c.l.b16 %v36
    %v112 = vunpack.c.l.b16 %v37
    %v113 = vunpack.c.l.b16 %v38
    %v114 = vunpack.c.l.b16 %v39
    %v115 = vunpack.c.l.b16 %v40
    %v116 = vunpack.c.l.b16 %v41
    %v117 = vunpack.c.l.b16 %v42
    %v118 = vunpack.c.l.b16 %v43
    %v119 = vunpack.c.l.b16 %v44
    %v120 = vunpack.c.l.b16 %v45
    %v121 = vunpack.c.l.b16 %v46
    %v122 = vunpack.c.l.b16 %v47
    %v123 = vunpack.c.l.b16 %v48
    %v124 = vunpack.c.l.b16 %v49
    %v125 = vunpack.c.l.b16 %v50
    %v126 = vunpack.c.l.b16 %v51
    %v127 = vunpack.c.l.b16 %v52
    %v128 = vunpack.c.l.b16 %v53
    %v129 = vunpack.c.l.b16 %v54
    %v130 = vunpack.c.l.b16 %v55
    %v131 = vunpack.c.l.b16 %v56
    %v132 = vunpack.c.l.b16 %v57
    %v133 = vunpack.c.l.b16 %v58
    %v134 = vunpack.c.l.b16 %v59
    %v135 = vunpack.c.l.b16 %v60
    %v136 = vunpack.c.l.b16 %v61
    %v137 = vunpack.c.l.b16 %v62
    %v138 = vunpack.c.l.b16 %v63
    %v139 = vunpack.c.l.b16 %v64
    %v140 = vpack.c.b16 %v109, %v108
    %v141 = vpack.c.b16 %v111, %v110
    %v142 = vpack.c.b16 %v113, %v112
    %v143 = vpack.c.b16 %v115, %v114
    %v144 = vpack.c.b16 %v117, %v116
    %v145 = vpack.c.b16 %v119, %v118
    %v146 = vpack.c.b16 %v121, %v120
    %v147 = vpack.c.b16 %v123, %v122
    %v148 = vpack.c.b16 %v125, %v124
    %v149 = vpack.c.b16 %v127, %v126
    %v150 = vpack.c.b16 %v129, %v128
    %v151 = vpack.c.b16 %v131, %v130
    %v152 = vpack.c.b16 %v133, %v132
    %v153 = vpack.c.b16 %v135, %v134
    %v154 = vpack.c.b16 %v137, %v136
    %v155 = vpack.c.b16 %v139, %v138
    %v160 = vunpack.c.l.b16 %v65
    %v161 = vunpack.c.l.b16 %v66
    %v162 = vunpack.c.l.b16 %v67
    %v163 = vunpack.c.l.b16 %v68
    %v164 = vpack.c.b16 %v161, %v160
    %v165 = vpack.c.b16 %v163, %v162
    %vm168 = vcmask 261120
    %v170 = vsel %vm168, %v140, 0
    %v173 = vsel %vm168, %v141, 0
    %v176 = vsel %vm168, %v142, 0
    %v179 = vsel %vm168, %v143, 0
    %v182 = vsel %vm168, %v144, 0
    %v185 = vsel %vm168, %v145, 0
    %v188 = vsel %vm168, %v146, 0
    %v191 = vsel %vm168, %v147, 0
    %v194 = vsel %vm168, %v148, 0
    %v197 = vsel %vm168, %v149, 0
    %v200 = vsel %vm168, %v150, 0
    %v203 = vsel %vm168, %v151, 0
    %v206 = vsel %vm168, %v152, 0
    %v209 = vsel %vm168, %v153, 0
    %v212 = vsel %vm168, %v154, 0
    %v215 = vsel %vm168, %v155, 0
    %217 = vmatprep.subr.bf16.mxu0 0
    %218 = vmatpush1.bf16.msra.mxu0 %v164
    %219 = vmatprep.subr.bf16.mxu0 0
    %220 = vmatpush1.bf16.msra.mxu0 %v165
    %221 = vmatprep.subr.bf16.mxu0 0
    %222 = vmatpush1.bf16.msra.mxu0 0
    %223 = vmatprep.subr.bf16.mxu0 0
    %224 = vmatpush1.bf16.msra.mxu0 0
    %225 = vmatprep.subr.bf16.mxu0 0
    %226 = vmatpush1.bf16.msra.mxu0 0
    %227 = vmatprep.subr.bf16.mxu0 0
    %228 = vmatpush1.bf16.msra.mxu0 0
    %229 = vmatprep.subr.bf16.mxu0 0
    %230 = vmatpush1.bf16.msra.mxu0 0
    %231 = vmatprep.subr.bf16.mxu0 0
    %232 = vmatpush1.bf16.msra.mxu0 0
    %233 = vmatprep.subr.bf16.mxu0 0
    %234 = vmatpush1.bf16.msra.mxu0 0
    %235 = vmatprep.subr.bf16.mxu0 0
    %236 = vmatpush1.bf16.msra.mxu0 0
    %237 = vmatprep.subr.bf16.mxu0 0
    %238 = vmatpush1.bf16.msra.mxu0 0
    %239 = vmatprep.subr.bf16.mxu0 0
    %240 = vmatpush1.bf16.msra.mxu0 0
    %241 = vmatprep.subr.bf16.mxu0 0
    %242 = vmatpush1.bf16.msra.mxu0 0
    %243 = vmatprep.subr.bf16.mxu0 0
    %244 = vmatpush1.bf16.msra.mxu0 0
    %245 = vmatprep.subr.bf16.mxu0 0
    %246 = vmatpush1.bf16.msra.mxu0 0
    %247 = vmatprep.subr.bf16.mxu0 0
    %248 = vmatpush1.bf16.msra.mxu0 0
    %249 = vmatprep.mubr.bf16.mxu0 0
    %250 = vmatmul.mubr.bf16.gmra.mrb[0].mxu0 %v170
    %v251 = vpop.f32.mrb[0].mxu0
    %v252 = vadd.f32 %v74, %v251
    %v253 = vpop.f32.mrb[0].mxu0
    %v254 = vpop.f32.mrb[0].mxu0
    %v255 = vadd.f32 %v74, %v254
    %v256 = vpop.f32.mrb[0].mxu0
    %257 = vmatprep.mubr.bf16.mxu0 0
    %258 = vmatmul.mubr.bf16.gmra.mrb[0].mxu0 %v173
    %v259 = vpop.f32.mrb[0].mxu0
    %v260 = vadd.f32 %v74, %v259
    %v261 = vpop.f32.mrb[0].mxu0
    %v262 = vpop.f32.mrb[0].mxu0
    %v263 = vadd.f32 %v74, %v262
    %v264 = vpop.f32.mrb[0].mxu0
    %265 = vmatprep.mubr.bf16.mxu0 0
    %266 = vmatmul.mubr.bf16.gmra.mrb[0].mxu0 %v176
    %v267 = vpop.f32.mrb[0].mxu0
    %v268 = vadd.f32 %v74, %v267
    %v269 = vpop.f32.mrb[0].mxu0
    %v270 = vpop.f32.mrb[0].mxu0
    %v271 = vadd.f32 %v74, %v270
    %v272 = vpop.f32.mrb[0].mxu0
    %273 = vmatprep.mubr.bf16.mxu0 0
    %274 = vmatmul.mubr.bf16.gmra.mrb[0].mxu0 %v179
    %v275 = vpop.f32.mrb[0].mxu0
    %v276 = vadd.f32 %v74, %v275
    %v277 = vpop.f32.mrb[0].mxu0
    %v278 = vpop.f32.mrb[0].mxu0
    %v279 = vadd.f32 %v74, %v278
    %v280 = vpop.f32.mrb[0].mxu0
    %281 = vmatprep.mubr.bf16.mxu0 0
    %282 = vmatmul.mubr.bf16.gmra.mrb[0].mxu0 %v182
    %v283 = vpop.f32.mrb[0].mxu0
    %v284 = vadd.f32 %v74, %v283
    %v285 = vpop.f32.mrb[0].mxu0
    %v286 = vpop.f32.mrb[0].mxu0
    %v287 = vadd.f32 %v74, %v286
    %v288 = vpop.f32.mrb[0].mxu0
    %289 = vmatprep.mubr.bf16.mxu0 0
    %290 = vmatmul.mubr.bf16.gmra.mrb[0].mxu0 %v185
    %v291 = vpop.f32.mrb[0].mxu0
    %v292 = vadd.f32 %v74, %v291
    %v293 = vpop.f32.mrb[0].mxu0
    %v294 = vpop.f32.mrb[0].mxu0
    %v295 = vadd.f32 %v74, %v294
    %v296 = vpop.f32.mrb[0].mxu0
    %297 = vmatprep.mubr.bf16.mxu0 0
    %298 = vmatmul.mubr.bf16.gmra.mrb[0].mxu0 %v188
    %v299 = vpop.f32.mrb[0].mxu0
    %v300 = vadd.f32 %v74, %v299
    %v301 = vpop.f32.mrb[0].mxu0
    %v302 = vpop.f32.mrb[0].mxu0
    %v303 = vadd.f32 %v74, %v302
    %v304 = vpop.f32.mrb[0].mxu0
    %305 = vmatprep.mubr.bf16.mxu0 0
    %306 = vmatmul.mubr.bf16.gmra.mrb[0].mxu0 %v191
    %v307 = vpop.f32.mrb[0].mxu0
    %v308 = vadd.f32 %v74, %v307
    %v309 = vpop.f32.mrb[0].mxu0
    %v310 = vpop.f32.mrb[0].mxu0
    %v311 = vadd.f32 %v74, %v310
    %v312 = vpop.f32.mrb[0].mxu0
    %313 = vmatprep.mubr.bf16.mxu0 0
    %314 = vmatmul.mubr.bf16.gmra.mrb[0].mxu0 %v194
    %v315 = vpop.f32.mrb[0].mxu0
    %v316 = vadd.f32 %v74, %v315
    %v317 = vpop.f32.mrb[0].mxu0
    %v318 = vpop.f32.mrb[0].mxu0
    %v319 = vadd.f32 %v74, %v318
    %v320 = vpop.f32.mrb[0].mxu0
    %321 = vmatprep.mubr.bf16.mxu0 0
    %322 = vmatmul.mubr.bf16.gmra.mrb[0].mxu0 %v197
    %v323 = vpop.f32.mrb[0].mxu0
    %v324 = vadd.f32 %v74, %v323
    %v325 = vpop.f32.mrb[0].mxu0
    %v326 = vpop.f32.mrb[0].mxu0
    %v327 = vadd.f32 %v74, %v326
    %v328 = vpop.f32.mrb[0].mxu0
    %329 = vmatprep.mubr.bf16.mxu0 0
    %330 = vmatmul.mubr.bf16.gmra.mrb[0].mxu0 %v200
    %v331 = vpop.f32.mrb[0].mxu0
    %v332 = vadd.f32 %v74, %v331
    %v333 = vpop.f32.mrb[0].mxu0
    %v334 = vpop.f32.mrb[0].mxu0
    %v335 = vadd.f32 %v74, %v334
    %v336 = vpop.f32.mrb[0].mxu0
    %337 = vmatprep.mubr.bf16.mxu0 0
    %338 = vmatmul.mubr.bf16.gmra.mrb[0].mxu0 %v203
    %v339 = vpop.f32.mrb[0].mxu0
    %v340 = vadd.f32 %v74, %v339
    %v341 = vpop.f32.mrb[0].mxu0
    %v342 = vpop.f32.mrb[0].mxu0
    %v343 = vadd.f32 %v74, %v342
    %v344 = vpop.f32.mrb[0].mxu0
    %345 = vmatprep.mubr.bf16.mxu0 0
    %346 = vmatmul.mubr.bf16.gmra.mrb[0].mxu0 %v206
    %v347 = vpop.f32.mrb[0].mxu0
    %v348 = vadd.f32 %v74, %v347
    %v349 = vpop.f32.mrb[0].mxu0
    %v350 = vpop.f32.mrb[0].mxu0
    %v351 = vadd.f32 %v74, %v350
    %v352 = vpop.f32.mrb[0].mxu0
    %353 = vmatprep.mubr.bf16.mxu0 0
    %354 = vmatmul.mubr.bf16.gmra.mrb[0].mxu0 %v209
    %v355 = vpop.f32.mrb[0].mxu0
    %v356 = vadd.f32 %v74, %v355
    %v357 = vpop.f32.mrb[0].mxu0
    %v358 = vpop.f32.mrb[0].mxu0
    %v359 = vadd.f32 %v74, %v358
    %v360 = vpop.f32.mrb[0].mxu0
    %361 = vmatprep.mubr.bf16.mxu0 0
    %362 = vmatmul.mubr.bf16.gmra.mrb[0].mxu0 %v212
    %v363 = vpop.f32.mrb[0].mxu0
    %v364 = vadd.f32 %v74, %v363
    %v365 = vpop.f32.mrb[0].mxu0
    %v366 = vpop.f32.mrb[0].mxu0
    %v367 = vadd.f32 %v74, %v366
    %v368 = vpop.f32.mrb[0].mxu0
    %369 = vmatprep.mubr.bf16.mxu0 0
    %370 = vmatmul.mubr.bf16.gmra.mrb[0].mxu0 %v215
    %v371 = vpop.f32.mrb[0].mxu0
    %v372 = vadd.f32 %v74, %v371
    %v373 = vpop.f32.mrb[0].mxu0
    %v374 = vpop.f32.mrb[0].mxu0
    %v375 = vadd.f32 %v74, %v374
    %v376 = vpop.f32.mrb[0].mxu0
    %377 = vdwg.mxu0
    %v378 = vmax.f32 %v252, 0.0
    %v379 = vmax.f32 %v255, 0.0
    %v380 = vmax.f32 %v260, 0.0
    %v381 = vmax.f32 %v263, 0.0
    %v382 = vmax.f32 %v268, 0.0
    %v383 = vmax.f32 %v271, 0.0
    %v384 = vmax.f32 %v276, 0.0
    %v385 = vmax.f32 %v279, 0.0
    %v386 = vmax.f32 %v284, 0.0
    %v387 = vmax.f32 %v287, 0.0
    %v388 = vmax.f32 %v292, 0.0
    %v389 = vmax.f32 %v295, 0.0
    %v390 = vmax.f32 %v300, 0.0
    %v391 = vmax.f32 %v303, 0.0
    %v392 = vmax.f32 %v308, 0.0
    %v393 = vmax.f32 %v311, 0.0
    %v394 = vmax.f32 %v316, 0.0
    %v395 = vmax.f32 %v319, 0.0
    %v396 = vmax.f32 %v324, 0.0
    %v397 = vmax.f32 %v327, 0.0
    %v398 = vmax.f32 %v332, 0.0
    %v399 = vmax.f32 %v335, 0.0
    %v400 = vmax.f32 %v340, 0.0
    %v401 = vmax.f32 %v343, 0.0
    %v402 = vmax.f32 %v348, 0.0
    %v403 = vmax.f32 %v351, 0.0
    %v404 = vmax.f32 %v356, 0.0
    %v405 = vmax.f32 %v359, 0.0
    %v406 = vmax.f32 %v364, 0.0
    %v407 = vmax.f32 %v367, 0.0
    %v408 = vmax.f32 %v372, 0.0
    %v409 = vmax.f32 %v375, 0.0
    %v410 = vpack.c.bf16 %v379, %v378
    %v411 = vpack.c.bf16 %v381, %v380
    %v412 = vpack.c.bf16 %v383, %v382
    %v413 = vpack.c.bf16 %v385, %v384
    %v414 = vpack.c.bf16 %v387, %v386
    %v415 = vpack.c.bf16 %v389, %v388
    %v416 = vpack.c.bf16 %v391, %v390
    %v417 = vpack.c.bf16 %v393, %v392
    %v418 = vpack.c.bf16 %v395, %v394
    %v419 = vpack.c.bf16 %v397, %v396
    %v420 = vpack.c.bf16 %v399, %v398
    %v421 = vpack.c.bf16 %v401, %v400
    %v422 = vpack.c.bf16 %v403, %v402
    %v423 = vpack.c.bf16 %v405, %v404
    %v424 = vpack.c.bf16 %v407, %v406
    %v425 = vpack.c.bf16 %v409, %v408
    %v426 = vld [vmem:[%s5] sm:$0xf]
    %v427 = vld [vmem:[%s5 + $0x4] sm:$0xf]
    %v428 = vld [vmem:[%s5 + $0x8] sm:$0xf]
    %v429 = vld [vmem:[%s5 + $0xc] sm:$0xf]
    %v430 = vld [vmem:[%s1] sm:$0xf]
    %v431 = vld [vmem:[%s1 + $0x4] sm:$0xf]
    %v432 = vld [vmem:[%s1 + $0x8] sm:$0xf]
    %v433 = vld [vmem:[%s1 + $0xc] sm:$0xf]
    %v434 = vld [vmem:[%s1 + $0x10] sm:$0xf]
    %v435 = vld [vmem:[%s1 + $0x14] sm:$0xf]
    %v436 = vld [vmem:[%s1 + $0x18] sm:$0xf]
    %v437 = vld [vmem:[%s1 + $0x1c] sm:$0xf]
    %v438 = vld [vmem:[%s1 + $0x20] sm:$0xf]
    %v439 = vld [vmem:[%s1 + $0x24] sm:$0xf]
    %v440 = vld [vmem:[%s1 + $0x28] sm:$0xf]
    %v441 = vld [vmem:[%s1 + $0x2c] sm:$0xf]
    %v442 = vld [vmem:[%s1 + $0x30] sm:$0xf]
    %v443 = vld [vmem:[%s1 + $0x34] sm:$0xf]
    %v444 = vld [vmem:[%s1 + $0x38] sm:$0xf]
    %v445 = vld [vmem:[%s1 + $0x3c] sm:$0xf]
    %v446 = vld [vmem:[%s1 + $0x40] sm:$0xf]
    %v447 = vld [vmem:[%s1 + $0x44] sm:$0xf]
    %v448 = vld [vmem:[%s1 + $0x48] sm:$0xf]
    %v449 = vld [vmem:[%s1 + $0x4c] sm:$0xf]
    %v450 = vld [vmem:[%s1 + $0x50] sm:$0xf]
    %v451 = vld [vmem:[%s1 + $0x54] sm:$0xf]
    %v452 = vld [vmem:[%s1 + $0x58] sm:$0xf]
    %v453 = vld [vmem:[%s1 + $0x5c] sm:$0xf]
    %v454 = vld [vmem:[%s1 + $0x60] sm:$0xf]
    %v455 = vld [vmem:[%s1 + $0x64] sm:$0xf]
    %v456 = vld [vmem:[%s1 + $0x68] sm:$0xf]
    %v457 = vld [vmem:[%s1 + $0x6c] sm:$0xf]
    %v458 = vld [vmem:[%s1 + $0x70] sm:$0xf]
    %v459 = vld [vmem:[%s1 + $0x74] sm:$0xf]
    %v460 = vld [vmem:[%s1 + $0x78] sm:$0xf]
    %v461 = vld [vmem:[%s1 + $0x7c] sm:$0xf]
    %v462 = vld [vmem:[%s6] sm:$0xf]
    %v463 = vld [vmem:[%s6 + $0x4] sm:$0xf]
    %v496 = vunpack.c.l.b16 %v430
    %v497 = vunpack.c.l.b16 %v431
    %v498 = vunpack.c.l.b16 %v432
    %v499 = vunpack.c.l.b16 %v433
    %v500 = vunpack.c.l.b16 %v434
    %v501 = vunpack.c.l.b16 %v435
    %v502 = vunpack.c.l.b16 %v436
    %v503 = vunpack.c.l.b16 %v437
    %v504 = vunpack.c.l.b16 %v438
    %v505 = vunpack.c.l.b16 %v439
    %v506 = vunpack.c.l.b16 %v440
    %v507 = vunpack.c.l.b16 %v441
    %v508 = vunpack.c.l.b16 %v442
    %v509 = vunpack.c.l.b16 %v443
    %v510 = vunpack.c.l.b16 %v444
    %v511 = vunpack.c.l.b16 %v445
    %v512 = vunpack.c.l.b16 %v446
    %v513 = vunpack.c.l.b16 %v447
    %v514 = vunpack.c.l.b16 %v448
    %v515 = vunpack.c.l.b16 %v449
    %v516 = vunpack.c.l.b16 %v450
    %v517 = vunpack.c.l.b16 %v451
    %v518 = vunpack.c.l.b16 %v452
    %v519 = vunpack.c.l.b16 %v453
    %v520 = vunpack.c.l.b16 %v454
    %v521 = vunpack.c.l.b16 %v455
    %v522 = vunpack.c.l.b16 %v456
    %v523 = vunpack.c.l.b16 %v457
    %v524 = vunpack.c.l.b16 %v458
    %v525 = vunpack.c.l.b16 %v459
    %v526 = vunpack.c.l.b16 %v460
    %v527 = vunpack.c.l.b16 %v461
    %v528 = vpack.c.b16 %v497, %v496
    %v529 = vpack.c.b16 %v499, %v498
    %v530 = vpack.c.b16 %v501, %v500
    %v531 = vpack.c.b16 %v503, %v502
    %v532 = vpack.c.b16 %v505, %v504
    %v533 = vpack.c.b16 %v507, %v506
    %v534 = vpack.c.b16 %v509, %v508
    %v535 = vpack.c.b16 %v511, %v510
    %v536 = vpack.c.b16 %v513, %v512
    %v537 = vpack.c.b16 %v515, %v514
    %v538 = vpack.c.b16 %v517, %v516
    %v539 = vpack.c.b16 %v519, %v518
    %v540 = vpack.c.b16 %v521, %v520
    %v541 = vpack.c.b16 %v523, %v522
    %v542 = vpack.c.b16 %v525, %v524
    %v543 = vpack.c.b16 %v527, %v526
    %v546 = vunpack.c.l.b16 %v462
    %v547 = vunpack.c.l.b16 %v463
    %v548 = vpack.c.b16 %v547, %v546
    %vm550 = vcmask 130048
    %v552 = vsel %vm550, %v528, 0
    %v555 = vsel %vm550, %v529, 0
    %v558 = vsel %vm550, %v530, 0
    %v561 = vsel %vm550, %v531, 0
    %v564 = vsel %vm550, %v532, 0
    %v567 = vsel %vm550, %v533, 0
    %v570 = vsel %vm550, %v534, 0
    %v573 = vsel %vm550, %v535, 0
    %v576 = vsel %vm550, %v536, 0
    %v579 = vsel %vm550, %v537, 0
    %v582 = vsel %vm550, %v538, 0
    %v585 = vsel %vm550, %v539, 0
    %v588 = vsel %vm550, %v540, 0
    %v591 = vsel %vm550, %v541, 0
    %v594 = vsel %vm550, %v542, 0
    %v597 = vsel %vm550, %v543, 0
    %599 = vmatprep.subr.bf16.mxu0 0
    %600 = vmatpush1.bf16.msra.mxu0 %v548
    %601 = vmatprep.subr.bf16.mxu0 0
    %602 = vmatpush1.bf16.msra.mxu0 0
    %603 = vmatprep.subr.bf16.mxu0 0
    %604 = vmatpush1.bf16.msra.mxu0 0
    %605 = vmatprep.subr.bf16.mxu0 0
    %606 = vmatpush1.bf16.msra.mxu0 0
    %607 = vmatprep.subr.bf16.mxu0 0
    %608 = vmatpush1.bf16.msra.mxu0 0
    %609 = vmatprep.subr.bf16.mxu0 0
    %610 = vmatpush1.bf16.msra.mxu0 0
    %611 = vmatprep.subr.bf16.mxu0 0
    %612 = vmatpush1.bf16.msra.mxu0 0
    %613 = vmatprep.subr.bf16.mxu0 0
    %614 = vmatpush1.bf16.msra.mxu0 0
    %615 = vmatprep.subr.bf16.mxu0 0
    %616 = vmatpush1.bf16.msra.mxu0 0
    %617 = vmatprep.subr.bf16.mxu0 0
    %618 = vmatpush1.bf16.msra.mxu0 0
    %619 = vmatprep.subr.bf16.mxu0 0
    %620 = vmatpush1.bf16.msra.mxu0 0
    %621 = vmatprep.subr.bf16.mxu0 0
    %622 = vmatpush1.bf16.msra.mxu0 0
    %623 = vmatprep.subr.bf16.mxu0 0
    %624 = vmatpush1.bf16.msra.mxu0 0
    %625 = vmatprep.subr.bf16.mxu0 0
    %626 = vmatpush1.bf16.msra.mxu0 0
    %627 = vmatprep.subr.bf16.mxu0 0
    %628 = vmatpush1.bf16.msra.mxu0 0
    %629 = vmatprep.subr.bf16.mxu0 0
    %630 = vmatpush1.bf16.msra.mxu0 0
    %631 = vmatprep.mubr.bf16.mxu0 0
    %632 = vmatmul.mubr.bf16.gmra.mrb[0].mxu0 %v552
    %v633 = vpop.f32.mrb[0].mxu0
    %v634 = vadd.f32 0.0, %v633
    %v635 = vpop.f32.mrb[0].mxu0
    %v636 = vpop.f32.mrb[0].mxu0
    %v637 = vadd.f32 0.0, %v636
    %v638 = vpop.f32.mrb[0].mxu0
    %639 = vmatprep.mubr.bf16.mxu0 0
    %640 = vmatmul.mubr.bf16.gmra.mrb[0].mxu0 %v555
    %v641 = vpop.f32.mrb[0].mxu0
    %v642 = vadd.f32 0.0, %v641
    %v643 = vpop.f32.mrb[0].mxu0
    %v644 = vpop.f32.mrb[0].mxu0
    %v645 = vadd.f32 0.0, %v644
    %v646 = vpop.f32.mrb[0].mxu0
    %647 = vmatprep.mubr.bf16.mxu0 0
    %648 = vmatmul.mubr.bf16.gmra.mrb[0].mxu0 %v558
    %v649 = vpop.f32.mrb[0].mxu0
    %v650 = vadd.f32 0.0, %v649
    %v651 = vpop.f32.mrb[0].mxu0
    %v652 = vpop.f32.mrb[0].mxu0
    %v653 = vadd.f32 0.0, %v652
    %v654 = vpop.f32.mrb[0].mxu0
    %655 = vmatprep.mubr.bf16.mxu0 0
    %656 = vmatmul.mubr.bf16.gmra.mrb[0].mxu0 %v561
    %v657 = vpop.f32.mrb[0].mxu0
    %v658 = vadd.f32 0.0, %v657
    %v659 = vpop.f32.mrb[0].mxu0
    %v660 = vpop.f32.mrb[0].mxu0
    %v661 = vadd.f32 0.0, %v660
    %v662 = vpop.f32.mrb[0].mxu0
    %663 = vmatprep.mubr.bf16.mxu0 0
    %664 = vmatmul.mubr.bf16.gmra.mrb[0].mxu0 %v564
    %v665 = vpop.f32.mrb[0].mxu0
    %v666 = vadd.f32 0.0, %v665
    %v667 = vpop.f32.mrb[0].mxu0
    %v668 = vpop.f32.mrb[0].mxu0
    %v669 = vadd.f32 0.0, %v668
    %v670 = vpop.f32.mrb[0].mxu0
    %671 = vmatprep.mubr.bf16.mxu0 0
    %672 = vmatmul.mubr.bf16.gmra.mrb[0].mxu0 %v567
    %v673 = vpop.f32.mrb[0].mxu0
    %v674 = vadd.f32 0.0, %v673
    %v675 = vpop.f32.mrb[0].mxu0
    %v676 = vpop.f32.mrb[0].mxu0
    %v677 = vadd.f32 0.0, %v676
    %v678 = vpop.f32.mrb[0].mxu0
    %679 = vmatprep.mubr.bf16.mxu0 0
    %680 = vmatmul.mubr.bf16.gmra.mrb[0].mxu0 %v570
    %v681 = vpop.f32.mrb[0].mxu0
    %v682 = vadd.f32 0.0, %v681
    %v683 = vpop.f32.mrb[0].mxu0
    %v684 = vpop.f32.mrb[0].mxu0
    %v685 = vadd.f32 0.0, %v684
    %v686 = vpop.f32.mrb[0].mxu0
    %687 = vmatprep.mubr.bf16.mxu0 0
    %688 = vmatmul.mubr.bf16.gmra.mrb[0].mxu0 %v573
    %v689 = vpop.f32.mrb[0].mxu0
    %v690 = vadd.f32 0.0, %v689
    %v691 = vpop.f32.mrb[0].mxu0
    %v692 = vpop.f32.mrb[0].mxu0
    %v693 = vadd.f32 0.0, %v692
    %v694 = vpop.f32.mrb[0].mxu0
    %695 = vmatprep.mubr.bf16.mxu0 0
    %696 = vmatmul.mubr.bf16.gmra.mrb[0].mxu0 %v576
    %v697 = vpop.f32.mrb[0].mxu0
    %v698 = vadd.f32 0.0, %v697
    %v699 = vpop.f32.mrb[0].mxu0
    %v700 = vpop.f32.mrb[0].mxu0
    %v701 = vadd.f32 0.0, %v700
    %v702 = vpop.f32.mrb[0].mxu0
    %703 = vmatprep.mubr.bf16.mxu0 0
    %704 = vmatmul.mubr.bf16.gmra.mrb[0].mxu0 %v579
    %v705 = vpop.f32.mrb[0].mxu0
    %v706 = vadd.f32 0.0, %v705
    %v707 = vpop.f32.mrb[0].mxu0
    %v708 = vpop.f32.mrb[0].mxu0
    %v709 = vadd.f32 0.0, %v708
    %v710 = vpop.f32.mrb[0].mxu0
    %711 = vmatprep.mubr.bf16.mxu0 0
    %712 = vmatmul.mubr.bf16.gmra.mrb[0].mxu0 %v582
    %v713 = vpop.f32.mrb[0].mxu0
    %v714 = vadd.f32 0.0, %v713
    %v715 = vpop.f32.mrb[0].mxu0
    %v716 = vpop.f32.mrb[0].mxu0
    %v717 = vadd.f32 0.0, %v716
    %v718 = vpop.f32.mrb[0].mxu0
    %719 = vmatprep.mubr.bf16.mxu0 0
    %720 = vmatmul.mubr.bf16.gmra.mrb[0].mxu0 %v585
    %v721 = vpop.f32.mrb[0].mxu0
    %v722 = vadd.f32 0.0, %v721
    %v723 = vpop.f32.mrb[0].mxu0
    %v724 = vpop.f32.mrb[0].mxu0
    %v725 = vadd.f32 0.0, %v724
    %v726 = vpop.f32.mrb[0].mxu0
    %727 = vmatprep.mubr.bf16.mxu0 0
    %728 = vmatmul.mubr.bf16.gmra.mrb[0].mxu0 %v588
    %v729 = vpop.f32.mrb[0].mxu0
    %v730 = vadd.f32 0.0, %v729
    %v731 = vpop.f32.mrb[0].mxu0
    %v732 = vpop.f32.mrb[0].mxu0
    %v733 = vadd.f32 0.0, %v732
    %v734 = vpop.f32.mrb[0].mxu0
    %735 = vmatprep.mubr.bf16.mxu0 0
    %736 = vmatmul.mubr.bf16.gmra.mrb[0].mxu0 %v591
    %v737 = vpop.f32.mrb[0].mxu0
    %v738 = vadd.f32 0.0, %v737
    %v739 = vpop.f32.mrb[0].mxu0
    %v740 = vpop.f32.mrb[0].mxu0
    %v741 = vadd.f32 0.0, %v740
    %v742 = vpop.f32.mrb[0].mxu0
    %743 = vmatprep.mubr.bf16.mxu0 0
    %744 = vmatmul.mubr.bf16.gmra.mrb[0].mxu0 %v594
    %v745 = vpop.f32.mrb[0].mxu0
    %v746 = vadd.f32 0.0, %v745
    %v747 = vpop.f32.mrb[0].mxu0
    %v748 = vpop.f32.mrb[0].mxu0
    %v749 = vadd.f32 0.0, %v748
    %v750 = vpop.f32.mrb[0].mxu0
    %751 = vmatprep.mubr.bf16.mxu0 0
    %752 = vmatmul.mubr.bf16.gmra.mrb[0].mxu0 %v597
    %v753 = vpop.f32.mrb[0].mxu0
    %v754 = vadd.f32 0.0, %v753
    %v755 = vpop.f32.mrb[0].mxu0
    %v756 = vpop.f32.mrb[0].mxu0
    %v757 = vadd.f32 0.0, %v756
    %v758 = vpop.f32.mrb[0].mxu0
    %759 = vdwg.mxu0
    %v764 = vunpack.c.l.b16 %v426
    %v765 = vunpack.c.l.b16 %v427
    %v766 = vunpack.c.l.b16 %v428
    %v767 = vunpack.c.l.b16 %v429
    %v768 = vpack.c.b16 %v765, %v764
    %v769 = vpack.c.b16 %v767, %v766
    %v773 = vsel %vm168, %v410, 0
    %v776 = vsel %vm168, %v411, 0
    %v779 = vsel %vm168, %v412, 0
    %v782 = vsel %vm168, %v413, 0
    %v785 = vsel %vm168, %v414, 0
    %v788 = vsel %vm168, %v415, 0
    %v791 = vsel %vm168, %v416, 0
    %v794 = vsel %vm168, %v417, 0
    %v797 = vsel %vm168, %v418, 0
    %v800 = vsel %vm168, %v419, 0
    %v803 = vsel %vm168, %v420, 0
    %v806 = vsel %vm168, %v421, 0
    %v809 = vsel %vm168, %v422, 0
    %v812 = vsel %vm168, %v423, 0
    %v815 = vsel %vm168, %v424, 0
    %v818 = vsel %vm168, %v425, 0
    %820 = vmatprep.subr.bf16.mxu0 0
    %821 = vmatpush1.bf16.msra.mxu0 %v768
    %822 = vmatprep.subr.bf16.mxu0 0
    %823 = vmatpush1.bf16.msra.mxu0 %v769
    %824 = vmatprep.subr.bf16.mxu0 0
    %825 = vmatpush1.bf16.msra.mxu0 0
    %826 = vmatprep.subr.bf16.mxu0 0
    %827 = vmatpush1.bf16.msra.mxu0 0
    %828 = vmatprep.subr.bf16.mxu0 0
    %829 = vmatpush1.bf16.msra.mxu0 0
    %830 = vmatprep.subr.bf16.mxu0 0
    %831 = vmatpush1.bf16.msra.mxu0 0
    %832 = vmatprep.subr.bf16.mxu0 0
    %833 = vmatpush1.bf16.msra.mxu0 0
    %834 = vmatprep.subr.bf16.mxu0 0
    %835 = vmatpush1.bf16.msra.mxu0 0
    %836 = vmatprep.subr.bf16.mxu0 0
    %837 = vmatpush1.bf16.msra.mxu0 0
    %838 = vmatprep.subr.bf16.mxu0 0
    %839 = vmatpush1.bf16.msra.mxu0 0
    %840 = vmatprep.subr.bf16.mxu0 0
    %841 = vmatpush1.bf16.msra.mxu0 0
    %842 = vmatprep.subr.bf16.mxu0 0
    %843 = vmatpush1.bf16.msra.mxu0 0
    %844 = vmatprep.subr.bf16.mxu0 0
    %845 = vmatpush1.bf16.msra.mxu0 0
    %846 = vmatprep.subr.bf16.mxu0 0
    %847 = vmatpush1.bf16.msra.mxu0 0
    %848 = vmatprep.subr.bf16.mxu0 0
    %849 = vmatpush1.bf16.msra.mxu0 0
    %850 = vmatprep.subr.bf16.mxu0 0
    %851 = vmatpush1.bf16.msra.mxu0 0
    %852 = vmatprep.mubr.bf16.mxu0 0
    %853 = vmatmul.mubr.bf16.gmra.mrb[0].mxu0 %v773
    %v854 = vpop.f32.mrb[0].mxu0
    %v855 = vadd.f32 %v634, %v854
    %v856 = vpop.f32.mrb[0].mxu0
    %v857 = vpop.f32.mrb[0].mxu0
    %v858 = vadd.f32 %v637, %v857
    %v859 = vpop.f32.mrb[0].mxu0
    %860 = vmatprep.mubr.bf16.mxu0 0
    %861 = vmatmul.mubr.bf16.gmra.mrb[0].mxu0 %v776
    %v862 = vpop.f32.mrb[0].mxu0
    %v863 = vadd.f32 %v642, %v862
    %v864 = vpop.f32.mrb[0].mxu0
    %v865 = vpop.f32.mrb[0].mxu0
    %v866 = vadd.f32 %v645, %v865
    %v867 = vpop.f32.mrb[0].mxu0
    %868 = vmatprep.mubr.bf16.mxu0 0
    %869 = vmatmul.mubr.bf16.gmra.mrb[0].mxu0 %v779
    %v870 = vpop.f32.mrb[0].mxu0
    %v871 = vadd.f32 %v650, %v870
    %v872 = vpop.f32.mrb[0].mxu0
    %v873 = vpop.f32.mrb[0].mxu0
    %v874 = vadd.f32 %v653, %v873
    %v875 = vpop.f32.mrb[0].mxu0
    %876 = vmatprep.mubr.bf16.mxu0 0
    %877 = vmatmul.mubr.bf16.gmra.mrb[0].mxu0 %v782
    %v878 = vpop.f32.mrb[0].mxu0
    %v879 = vadd.f32 %v658, %v878
    %v880 = vpop.f32.mrb[0].mxu0
    %v881 = vpop.f32.mrb[0].mxu0
    %v882 = vadd.f32 %v661, %v881
    %v883 = vpop.f32.mrb[0].mxu0
    %884 = vmatprep.mubr.bf16.mxu0 0
    %885 = vmatmul.mubr.bf16.gmra.mrb[0].mxu0 %v785
    %v886 = vpop.f32.mrb[0].mxu0
    %v887 = vadd.f32 %v666, %v886
    %v888 = vpop.f32.mrb[0].mxu0
    %v889 = vpop.f32.mrb[0].mxu0
    %v890 = vadd.f32 %v669, %v889
    %v891 = vpop.f32.mrb[0].mxu0
    %892 = vmatprep.mubr.bf16.mxu0 0
    %893 = vmatmul.mubr.bf16.gmra.mrb[0].mxu0 %v788
    %v894 = vpop.f32.mrb[0].mxu0
    %v895 = vadd.f32 %v674, %v894
    %v896 = vpop.f32.mrb[0].mxu0
    %v897 = vpop.f32.mrb[0].mxu0
    %v898 = vadd.f32 %v677, %v897
    %v899 = vpop.f32.mrb[0].mxu0
    %900 = vmatprep.mubr.bf16.mxu0 0
    %901 = vmatmul.mubr.bf16.gmra.mrb[0].mxu0 %v791
    %v902 = vpop.f32.mrb[0].mxu0
    %v903 = vadd.f32 %v682, %v902
    %v904 = vpop.f32.mrb[0].mxu0
    %v905 = vpop.f32.mrb[0].mxu0
    %v906 = vadd.f32 %v685, %v905
    %v907 = vpop.f32.mrb[0].mxu0
    %908 = vmatprep.mubr.bf16.mxu0 0
    %909 = vmatmul.mubr.bf16.gmra.mrb[0].mxu0 %v794
    %v910 = vpop.f32.mrb[0].mxu0
    %v911 = vadd.f32 %v690, %v910
    %v912 = vpop.f32.mrb[0].mxu0
    %v913 = vpop.f32.mrb[0].mxu0
    %v914 = vadd.f32 %v693, %v913
    %v915 = vpop.f32.mrb[0].mxu0
    %916 = vmatprep.mubr.bf16.mxu0 0
    %917 = vmatmul.mubr.bf16.gmra.mrb[0].mxu0 %v797
    %v918 = vpop.f32.mrb[0].mxu0
    %v919 = vadd.f32 %v698, %v918
    %v920 = vpop.f32.mrb[0].mxu0
    %v921 = vpop.f32.mrb[0].mxu0
    %v922 = vadd.f32 %v701, %v921
    %v923 = vpop.f32.mrb[0].mxu0
    %924 = vmatprep.mubr.bf16.mxu0 0
    %925 = vmatmul.mubr.bf16.gmra.mrb[0].mxu0 %v800
    %v926 = vpop.f32.mrb[0].mxu0
    %v927 = vadd.f32 %v706, %v926
    %v928 = vpop.f32.mrb[0].mxu0
    %v929 = vpop.f32.mrb[0].mxu0
    %v930 = vadd.f32 %v709, %v929
    %v931 = vpop.f32.mrb[0].mxu0
    %932 = vmatprep.mubr.bf16.mxu0 0
    %933 = vmatmul.mubr.bf16.gmra.mrb[0].mxu0 %v803
    %v934 = vpop.f32.mrb[0].mxu0
    %v935 = vadd.f32 %v714, %v934
    %v936 = vpop.f32.mrb[0].mxu0
    %v937 = vpop.f32.mrb[0].mxu0
    %v938 = vadd.f32 %v717, %v937
    %v939 = vpop.f32.mrb[0].mxu0
    %940 = vmatprep.mubr.bf16.mxu0 0
    %941 = vmatmul.mubr.bf16.gmra.mrb[0].mxu0 %v806
    %v942 = vpop.f32.mrb[0].mxu0
    %v943 = vadd.f32 %v722, %v942
    %v944 = vpop.f32.mrb[0].mxu0
    %v945 = vpop.f32.mrb[0].mxu0
    %v946 = vadd.f32 %v725, %v945
    %v947 = vpop.f32.mrb[0].mxu0
    %948 = vmatprep.mubr.bf16.mxu0 0
    %949 = vmatmul.mubr.bf16.gmra.mrb[0].mxu0 %v809
    %v950 = vpop.f32.mrb[0].mxu0
    %v951 = vadd.f32 %v730, %v950
    %v952 = vpop.f32.mrb[0].mxu0
    %v953 = vpop.f32.mrb[0].mxu0
    %v954 = vadd.f32 %v733, %v953
    %v955 = vpop.f32.mrb[0].mxu0
    %956 = vmatprep.mubr.bf16.mxu0 0
    %957 = vmatmul.mubr.bf16.gmra.mrb[0].mxu0 %v812
    %v958 = vpop.f32.mrb[0].mxu0
    %v959 = vadd.f32 %v738, %v958
    %v960 = vpop.f32.mrb[0].mxu0
    %v961 = vpop.f32.mrb[0].mxu0
    %v962 = vadd.f32 %v741, %v961
    %v963 = vpop.f32.mrb[0].mxu0
    %964 = vmatprep.mubr.bf16.mxu0 0
    %965 = vmatmul.mubr.bf16.gmra.mrb[0].mxu0 %v815
    %v966 = vpop.f32.mrb[0].mxu0
    %v967 = vadd.f32 %v746, %v966
    %v968 = vpop.f32.mrb[0].mxu0
    %v969 = vpop.f32.mrb[0].mxu0
    %v970 = vadd.f32 %v749, %v969
    %v971 = vpop.f32.mrb[0].mxu0
    %972 = vmatprep.mubr.bf16.mxu0 0
    %973 = vmatmul.mubr.bf16.gmra.mrb[0].mxu0 %v818
    %v974 = vpop.f32.mrb[0].mxu0
    %v975 = vadd.f32 %v754, %v974
    %v976 = vpop.f32.mrb[0].mxu0
    %v977 = vpop.f32.mrb[0].mxu0
    %v978 = vadd.f32 %v757, %v977
    %v979 = vpop.f32.mrb[0].mxu0
    %980 = vdwg.mxu0
    %v981 = vld [vmem:[%s7] sm:$0x1]
    %v983 = vlaneseq
    %v984 = vshrl.u32 %v983, 7
    %v985 = vsub.s32 0, %v984
    %v986 = vrot.slane %v981, %v985
    %v988 = vadd.f32 %v855, %v986
    %v989 = vadd.f32 %v858, %v986
    %v990 = vadd.f32 %v863, %v986
    %v991 = vadd.f32 %v866, %v986
    %v992 = vadd.f32 %v871, %v986
    %v993 = vadd.f32 %v874, %v986
    %v994 = vadd.f32 %v879, %v986
    %v995 = vadd.f32 %v882, %v986
    %v996 = vadd.f32 %v887, %v986
    %v997 = vadd.f32 %v890, %v986
    %v998 = vadd.f32 %v895, %v986
    %v999 = vadd.f32 %v898, %v986
    %v1000 = vadd.f32 %v903, %v986
    %v1001 = vadd.f32 %v906, %v986
    %v1002 = vadd.f32 %v911, %v986
    %v1003 = vadd.f32 %v914, %v986
    %v1004 = vadd.f32 %v919, %v986
    %v1005 = vadd.f32 %v922, %v986
    %v1006 = vadd.f32 %v927, %v986
    %v1007 = vadd.f32 %v930, %v986
    %v1008 = vadd.f32 %v935, %v986
    %v1009 = vadd.f32 %v938, %v986
    %v1010 = vadd.f32 %v943, %v986
    %v1011 = vadd.f32 %v946, %v986
    %v1012 = vadd.f32 %v951, %v986
    %v1013 = vadd.f32 %v954, %v986
    %v1014 = vadd.f32 %v959, %v986
    %v1015 = vadd.f32 %v962, %v986
    %v1016 = vadd.f32 %v967, %v986
    %v1017 = vadd.f32 %v970, %v986
    %v1018 = vadd.f32 %v975, %v986
    %v1019 = vadd.f32 %v978, %v986
    %v1020 = vlaneseq
    %v1021 = vand.u32 %v1020, 127
    %vm1022 = vcmp.lt.s32.totalorder %v1021, 8
    %v1023 = vsel %vm1022, %v988, -inf
    %v1024 = vsel %vm1022, %v989, -inf
    %v1025 = vsel %vm1022, %v990, -inf
    %v1026 = vsel %vm1022, %v991, -inf
    %v1027 = vsel %vm1022, %v992, -inf
    %v1028 = vsel %vm1022, %v993, -inf
    %v1029 = vsel %vm1022, %v994, -inf
    %v1030 = vsel %vm1022, %v995, -inf
    %v1031 = vsel %vm1022, %v996, -inf
    %v1032 = vsel %vm1022, %v997, -inf
    %v1033 = vsel %vm1022, %v998, -inf
    %v1034 = vsel %vm1022, %v999, -inf
    %v1035 = vsel %vm1022, %v1000, -inf
    %v1036 = vsel %vm1022, %v1001, -inf
    %v1037 = vsel %vm1022, %v1002, -inf
    %v1038 = vsel %vm1022, %v1003, -inf
    %v1039 = vsel %vm1022, %v1004, -inf
    %v1040 = vsel %vm1022, %v1005, -inf
    %v1041 = vsel %vm1022, %v1006, -inf
    %v1042 = vsel %vm1022, %v1007, -inf
    %v1043 = vsel %vm1022, %v1008, -inf
    %v1044 = vsel %vm1022, %v1009, -inf
    %v1045 = vsel %vm1022, %v1010, -inf
    %v1046 = vsel %vm1022, %v1011, -inf
    %v1047 = vsel %vm1022, %v1012, -inf
    %v1048 = vsel %vm1022, %v1013, -inf
    %v1049 = vsel %vm1022, %v1014, -inf
    %v1050 = vsel %vm1022, %v1015, -inf
    %v1051 = vsel %vm1022, %v1016, -inf
    %v1052 = vsel %vm1022, %v1017, -inf
    %v1053 = vsel %vm1022, %v1018, -inf
    %v1054 = vsel %vm1022, %v1019, -inf
    %1055 = vmax.xlane.f32.xlu0 %v1023
    %v1056 = vpop.xlane.xlu0 %1055
    %1057 = vmax.xlane.f32.xlu0 %v1024
    %v1058 = vpop.xlane.xlu0 %1057
    %1059 = vmax.xlane.f32.xlu0 %v1025
    %v1060 = vpop.xlane.xlu0 %1059
    %1061 = vmax.xlane.f32.xlu0 %v1026
    %v1062 = vpop.xlane.xlu0 %1061
    %1063 = vmax.xlane.f32.xlu0 %v1027
    %v1064 = vpop.xlane.xlu0 %1063
    %1065 = vmax.xlane.f32.xlu0 %v1028
    %v1066 = vpop.xlane.xlu0 %1065
    %1067 = vmax.xlane.f32.xlu0 %v1029
    %v1068 = vpop.xlane.xlu0 %1067
    %1069 = vmax.xlane.f32.xlu0 %v1030
    %v1070 = vpop.xlane.xlu0 %1069
    %1071 = vmax.xlane.f32.xlu0 %v1031
    %v1072 = vpop.xlane.xlu0 %1071
    %1073 = vmax.xlane.f32.xlu0 %v1032
    %v1074 = vpop.xlane.xlu0 %1073
    %1075 = vmax.xlane.f32.xlu0 %v1033
    %v1076 = vpop.xlane.xlu0 %1075
    %1077 = vmax.xlane.f32.xlu0 %v1034
    %v1078 = vpop.xlane.xlu0 %1077
    %1079 = vmax.xlane.f32.xlu0 %v1035
    %v1080 = vpop.xlane.xlu0 %1079
    %1081 = vmax.xlane.f32.xlu0 %v1036
    %v1082 = vpop.xlane.xlu0 %1081
    %1083 = vmax.xlane.f32.xlu0 %v1037
    %v1084 = vpop.xlane.xlu0 %1083
    %1085 = vmax.xlane.f32.xlu0 %v1038
    %v1086 = vpop.xlane.xlu0 %1085
    %1087 = vmax.xlane.f32.xlu0 %v1039
    %v1088 = vpop.xlane.xlu0 %1087
    %1089 = vmax.xlane.f32.xlu0 %v1040
    %v1090 = vpop.xlane.xlu0 %1089
    %1091 = vmax.xlane.f32.xlu0 %v1041
    %v1092 = vpop.xlane.xlu0 %1091
    %1093 = vmax.xlane.f32.xlu0 %v1042
    %v1094 = vpop.xlane.xlu0 %1093
    %1095 = vmax.xlane.f32.xlu0 %v1043
    %v1096 = vpop.xlane.xlu0 %1095
    %1097 = vmax.xlane.f32.xlu0 %v1044
    %v1098 = vpop.xlane.xlu0 %1097
    %1099 = vmax.xlane.f32.xlu0 %v1045
    %v1100 = vpop.xlane.xlu0 %1099
    %1101 = vmax.xlane.f32.xlu0 %v1046
    %v1102 = vpop.xlane.xlu0 %1101
    %1103 = vmax.xlane.f32.xlu0 %v1047
    %v1104 = vpop.xlane.xlu0 %1103
    %1105 = vmax.xlane.f32.xlu0 %v1048
    %v1106 = vpop.xlane.xlu0 %1105
    %1107 = vmax.xlane.f32.xlu0 %v1049
    %v1108 = vpop.xlane.xlu0 %1107
    %1109 = vmax.xlane.f32.xlu0 %v1050
    %v1110 = vpop.xlane.xlu0 %1109
    %1111 = vmax.xlane.f32.xlu0 %v1051
    %v1112 = vpop.xlane.xlu0 %1111
    %1113 = vmax.xlane.f32.xlu0 %v1052
    %v1114 = vpop.xlane.xlu0 %1113
    %1115 = vmax.xlane.f32.xlu0 %v1053
    %v1116 = vpop.xlane.xlu0 %1115
    %1117 = vmax.xlane.f32.xlu0 %v1054
    %v1118 = vpop.xlane.xlu0 %1117
    %vm1119 = vcmp.eq.f32.partialorder %v1023, %v1056
    %vm1120 = vcmp.eq.f32.partialorder %v1024, %v1058
    %vm1121 = vcmp.eq.f32.partialorder %v1025, %v1060
    %vm1122 = vcmp.eq.f32.partialorder %v1026, %v1062
    %vm1123 = vcmp.eq.f32.partialorder %v1027, %v1064
    %vm1124 = vcmp.eq.f32.partialorder %v1028, %v1066
    %vm1125 = vcmp.eq.f32.partialorder %v1029, %v1068
    %vm1126 = vcmp.eq.f32.partialorder %v1030, %v1070
    %vm1127 = vcmp.eq.f32.partialorder %v1031, %v1072
    %vm1128 = vcmp.eq.f32.partialorder %v1032, %v1074
    %vm1129 = vcmp.eq.f32.partialorder %v1033, %v1076
    %vm1130 = vcmp.eq.f32.partialorder %v1034, %v1078
    %vm1131 = vcmp.eq.f32.partialorder %v1035, %v1080
    %vm1132 = vcmp.eq.f32.partialorder %v1036, %v1082
    %vm1133 = vcmp.eq.f32.partialorder %v1037, %v1084
    %vm1134 = vcmp.eq.f32.partialorder %v1038, %v1086
    %vm1135 = vcmp.eq.f32.partialorder %v1039, %v1088
    %vm1136 = vcmp.eq.f32.partialorder %v1040, %v1090
    %vm1137 = vcmp.eq.f32.partialorder %v1041, %v1092
    %vm1138 = vcmp.eq.f32.partialorder %v1042, %v1094
    %vm1139 = vcmp.eq.f32.partialorder %v1043, %v1096
    %vm1140 = vcmp.eq.f32.partialorder %v1044, %v1098
    %vm1141 = vcmp.eq.f32.partialorder %v1045, %v1100
    %vm1142 = vcmp.eq.f32.partialorder %v1046, %v1102
    %vm1143 = vcmp.eq.f32.partialorder %v1047, %v1104
    %vm1144 = vcmp.eq.f32.partialorder %v1048, %v1106
    %vm1145 = vcmp.eq.f32.partialorder %v1049, %v1108
    %vm1146 = vcmp.eq.f32.partialorder %v1050, %v1110
    %vm1147 = vcmp.eq.f32.partialorder %v1051, %v1112
    %vm1148 = vcmp.eq.f32.partialorder %v1052, %v1114
    %vm1149 = vcmp.eq.f32.partialorder %v1053, %v1116
    %vm1150 = vcmp.eq.f32.partialorder %v1054, %v1118
    %v1151 = vsel %vm1119, %v1021, 128
    %v1152 = vsel %vm1120, %v1021, 128
    %v1153 = vsel %vm1121, %v1021, 128
    %v1154 = vsel %vm1122, %v1021, 128
    %v1155 = vsel %vm1123, %v1021, 128
    %v1156 = vsel %vm1124, %v1021, 128
    %v1157 = vsel %vm1125, %v1021, 128
    %v1158 = vsel %vm1126, %v1021, 128
    %v1159 = vsel %vm1127, %v1021, 128
    %v1160 = vsel %vm1128, %v1021, 128
    %v1161 = vsel %vm1129, %v1021, 128
    %v1162 = vsel %vm1130, %v1021, 128
    %v1163 = vsel %vm1131, %v1021, 128
    %v1164 = vsel %vm1132, %v1021, 128
    %v1165 = vsel %vm1133, %v1021, 128
    %v1166 = vsel %vm1134, %v1021, 128
    %v1167 = vsel %vm1135, %v1021, 128
    %v1168 = vsel %vm1136, %v1021, 128
    %v1169 = vsel %vm1137, %v1021, 128
    %v1170 = vsel %vm1138, %v1021, 128
    %v1171 = vsel %vm1139, %v1021, 128
    %v1172 = vsel %vm1140, %v1021, 128
    %v1173 = vsel %vm1141, %v1021, 128
    %v1174 = vsel %vm1142, %v1021, 128
    %v1175 = vsel %vm1143, %v1021, 128
    %v1176 = vsel %vm1144, %v1021, 128
    %v1177 = vsel %vm1145, %v1021, 128
    %v1178 = vsel %vm1146, %v1021, 128
    %v1179 = vsel %vm1147, %v1021, 128
    %v1180 = vsel %vm1148, %v1021, 128
    %v1181 = vsel %vm1149, %v1021, 128
    %v1182 = vsel %vm1150, %v1021, 128
    %v1183 = vand.u32 %v1151, 65535
    %v1184 = vshra.s32 %v1151, 16
    %v1185 = vcvt.s32.f32 %v1183
    %v1186 = vcvt.s32.f32 %v1184
    %1187 = vmin.xlane.f32.xlu0 %v1186
    %v1188 = vpop.xlane.xlu0 %1187
    %vm1189 = vcmp.eq.f32.partialorder %v1186, %v1188
    %v1190 = vsel %vm1189, %v1185, inf
    %1191 = vmin.xlane.f32.xlu0 %v1190
    %v1192 = vpop.xlane.xlu0 %1191
    %v1193 = vcvt.f32.s32 %v1192
    %v1194 = vcvt.f32.s32 %v1188
    %v1195 = vshll.u32 %v1194, 16
    %v1196 = vadd.s32 %v1195, %v1193
    %v1197 = vand.u32 %v1152, 65535
    %v1198 = vshra.s32 %v1152, 16
    %v1199 = vcvt.s32.f32 %v1197
    %v1200 = vcvt.s32.f32 %v1198
    %1201 = vmin.xlane.f32.xlu0 %v1200
    %v1202 = vpop.xlane.xlu0 %1201
    %vm1203 = vcmp.eq.f32.partialorder %v1200, %v1202
    %v1204 = vsel %vm1203, %v1199, inf
    %1205 = vmin.xlane.f32.xlu0 %v1204
    %v1206 = vpop.xlane.xlu0 %1205
    %v1207 = vcvt.f32.s32 %v1206
    %v1208 = vcvt.f32.s32 %v1202
    %v1209 = vshll.u32 %v1208, 16
    %v1210 = vadd.s32 %v1209, %v1207
    %v1211 = vand.u32 %v1153, 65535
    %v1212 = vshra.s32 %v1153, 16
    %v1213 = vcvt.s32.f32 %v1211
    %v1214 = vcvt.s32.f32 %v1212
    %1215 = vmin.xlane.f32.xlu0 %v1214
    %v1216 = vpop.xlane.xlu0 %1215
    %vm1217 = vcmp.eq.f32.partialorder %v1214, %v1216
    %v1218 = vsel %vm1217, %v1213, inf
    %1219 = vmin.xlane.f32.xlu0 %v1218
    %v1220 = vpop.xlane.xlu0 %1219
    %v1221 = vcvt.f32.s32 %v1220
    %v1222 = vcvt.f32.s32 %v1216
    %v1223 = vshll.u32 %v1222, 16
    %v1224 = vadd.s32 %v1223, %v1221
    %v1225 = vand.u32 %v1154, 65535
    %v1226 = vshra.s32 %v1154, 16
    %v1227 = vcvt.s32.f32 %v1225
    %v1228 = vcvt.s32.f32 %v1226
    %1229 = vmin.xlane.f32.xlu0 %v1228
    %v1230 = vpop.xlane.xlu0 %1229
    %vm1231 = vcmp.eq.f32.partialorder %v1228, %v1230
    %v1232 = vsel %vm1231, %v1227, inf
    %1233 = vmin.xlane.f32.xlu0 %v1232
    %v1234 = vpop.xlane.xlu0 %1233
    %v1235 = vcvt.f32.s32 %v1234
    %v1236 = vcvt.f32.s32 %v1230
    %v1237 = vshll.u32 %v1236, 16
    %v1238 = vadd.s32 %v1237, %v1235
    %v1239 = vand.u32 %v1155, 65535
    %v1240 = vshra.s32 %v1155, 16
    %v1241 = vcvt.s32.f32 %v1239
    %v1242 = vcvt.s32.f32 %v1240
    %1243 = vmin.xlane.f32.xlu0 %v1242
    %v1244 = vpop.xlane.xlu0 %1243
    %vm1245 = vcmp.eq.f32.partialorder %v1242, %v1244
    %v1246 = vsel %vm1245, %v1241, inf
    %1247 = vmin.xlane.f32.xlu0 %v1246
    %v1248 = vpop.xlane.xlu0 %1247
    %v1249 = vcvt.f32.s32 %v1248
    %v1250 = vcvt.f32.s32 %v1244
    %v1251 = vshll.u32 %v1250, 16
    %v1252 = vadd.s32 %v1251, %v1249
    %v1253 = vand.u32 %v1156, 65535
    %v1254 = vshra.s32 %v1156, 16
    %v1255 = vcvt.s32.f32 %v1253
    %v1256 = vcvt.s32.f32 %v1254
    %1257 = vmin.xlane.f32.xlu0 %v1256
    %v1258 = vpop.xlane.xlu0 %1257
    %vm1259 = vcmp.eq.f32.partialorder %v1256, %v1258
    %v1260 = vsel %vm1259, %v1255, inf
    %1261 = vmin.xlane.f32.xlu0 %v1260
    %v1262 = vpop.xlane.xlu0 %1261
    %v1263 = vcvt.f32.s32 %v1262
    %v1264 = vcvt.f32.s32 %v1258
    %v1265 = vshll.u32 %v1264, 16
    %v1266 = vadd.s32 %v1265, %v1263
    %v1267 = vand.u32 %v1157, 65535
    %v1268 = vshra.s32 %v1157, 16
    %v1269 = vcvt.s32.f32 %v1267
    %v1270 = vcvt.s32.f32 %v1268
    %1271 = vmin.xlane.f32.xlu0 %v1270
    %v1272 = vpop.xlane.xlu0 %1271
    %vm1273 = vcmp.eq.f32.partialorder %v1270, %v1272
    %v1274 = vsel %vm1273, %v1269, inf
    %1275 = vmin.xlane.f32.xlu0 %v1274
    %v1276 = vpop.xlane.xlu0 %1275
    %v1277 = vcvt.f32.s32 %v1276
    %v1278 = vcvt.f32.s32 %v1272
    %v1279 = vshll.u32 %v1278, 16
    %v1280 = vadd.s32 %v1279, %v1277
    %v1281 = vand.u32 %v1158, 65535
    %v1282 = vshra.s32 %v1158, 16
    %v1283 = vcvt.s32.f32 %v1281
    %v1284 = vcvt.s32.f32 %v1282
    %1285 = vmin.xlane.f32.xlu0 %v1284
    %v1286 = vpop.xlane.xlu0 %1285
    %vm1287 = vcmp.eq.f32.partialorder %v1284, %v1286
    %v1288 = vsel %vm1287, %v1283, inf
    %1289 = vmin.xlane.f32.xlu0 %v1288
    %v1290 = vpop.xlane.xlu0 %1289
    %v1291 = vcvt.f32.s32 %v1290
    %v1292 = vcvt.f32.s32 %v1286
    %v1293 = vshll.u32 %v1292, 16
    %v1294 = vadd.s32 %v1293, %v1291
    %v1295 = vand.u32 %v1159, 65535
    %v1296 = vshra.s32 %v1159, 16
    %v1297 = vcvt.s32.f32 %v1295
    %v1298 = vcvt.s32.f32 %v1296
    %1299 = vmin.xlane.f32.xlu0 %v1298
    %v1300 = vpop.xlane.xlu0 %1299
    %vm1301 = vcmp.eq.f32.partialorder %v1298, %v1300
    %v1302 = vsel %vm1301, %v1297, inf
    %1303 = vmin.xlane.f32.xlu0 %v1302
    %v1304 = vpop.xlane.xlu0 %1303
    %v1305 = vcvt.f32.s32 %v1304
    %v1306 = vcvt.f32.s32 %v1300
    %v1307 = vshll.u32 %v1306, 16
    %v1308 = vadd.s32 %v1307, %v1305
    %v1309 = vand.u32 %v1160, 65535
    %v1310 = vshra.s32 %v1160, 16
    %v1311 = vcvt.s32.f32 %v1309
    %v1312 = vcvt.s32.f32 %v1310
    %1313 = vmin.xlane.f32.xlu0 %v1312
    %v1314 = vpop.xlane.xlu0 %1313
    %vm1315 = vcmp.eq.f32.partialorder %v1312, %v1314
    %v1316 = vsel %vm1315, %v1311, inf
    %1317 = vmin.xlane.f32.xlu0 %v1316
    %v1318 = vpop.xlane.xlu0 %1317
    %v1319 = vcvt.f32.s32 %v1318
    %v1320 = vcvt.f32.s32 %v1314
    %v1321 = vshll.u32 %v1320, 16
    %v1322 = vadd.s32 %v1321, %v1319
    %v1323 = vand.u32 %v1161, 65535
    %v1324 = vshra.s32 %v1161, 16
    %v1325 = vcvt.s32.f32 %v1323
    %v1326 = vcvt.s32.f32 %v1324
    %1327 = vmin.xlane.f32.xlu0 %v1326
    %v1328 = vpop.xlane.xlu0 %1327
    %vm1329 = vcmp.eq.f32.partialorder %v1326, %v1328
    %v1330 = vsel %vm1329, %v1325, inf
    %1331 = vmin.xlane.f32.xlu0 %v1330
    %v1332 = vpop.xlane.xlu0 %1331
    %v1333 = vcvt.f32.s32 %v1332
    %v1334 = vcvt.f32.s32 %v1328
    %v1335 = vshll.u32 %v1334, 16
    %v1336 = vadd.s32 %v1335, %v1333
    %v1337 = vand.u32 %v1162, 65535
    %v1338 = vshra.s32 %v1162, 16
    %v1339 = vcvt.s32.f32 %v1337
    %v1340 = vcvt.s32.f32 %v1338
    %1341 = vmin.xlane.f32.xlu0 %v1340
    %v1342 = vpop.xlane.xlu0 %1341
    %vm1343 = vcmp.eq.f32.partialorder %v1340, %v1342
    %v1344 = vsel %vm1343, %v1339, inf
    %1345 = vmin.xlane.f32.xlu0 %v1344
    %v1346 = vpop.xlane.xlu0 %1345
    %v1347 = vcvt.f32.s32 %v1346
    %v1348 = vcvt.f32.s32 %v1342
    %v1349 = vshll.u32 %v1348, 16
    %v1350 = vadd.s32 %v1349, %v1347
    %v1351 = vand.u32 %v1163, 65535
    %v1352 = vshra.s32 %v1163, 16
    %v1353 = vcvt.s32.f32 %v1351
    %v1354 = vcvt.s32.f32 %v1352
    %1355 = vmin.xlane.f32.xlu0 %v1354
    %v1356 = vpop.xlane.xlu0 %1355
    %vm1357 = vcmp.eq.f32.partialorder %v1354, %v1356
    %v1358 = vsel %vm1357, %v1353, inf
    %1359 = vmin.xlane.f32.xlu0 %v1358
    %v1360 = vpop.xlane.xlu0 %1359
    %v1361 = vcvt.f32.s32 %v1360
    %v1362 = vcvt.f32.s32 %v1356
    %v1363 = vshll.u32 %v1362, 16
    %v1364 = vadd.s32 %v1363, %v1361
    %v1365 = vand.u32 %v1164, 65535
    %v1366 = vshra.s32 %v1164, 16
    %v1367 = vcvt.s32.f32 %v1365
    %v1368 = vcvt.s32.f32 %v1366
    %1369 = vmin.xlane.f32.xlu0 %v1368
    %v1370 = vpop.xlane.xlu0 %1369
    %vm1371 = vcmp.eq.f32.partialorder %v1368, %v1370
    %v1372 = vsel %vm1371, %v1367, inf
    %1373 = vmin.xlane.f32.xlu0 %v1372
    %v1374 = vpop.xlane.xlu0 %1373
    %v1375 = vcvt.f32.s32 %v1374
    %v1376 = vcvt.f32.s32 %v1370
    %v1377 = vshll.u32 %v1376, 16
    %v1378 = vadd.s32 %v1377, %v1375
    %v1379 = vand.u32 %v1165, 65535
    %v1380 = vshra.s32 %v1165, 16
    %v1381 = vcvt.s32.f32 %v1379
    %v1382 = vcvt.s32.f32 %v1380
    %1383 = vmin.xlane.f32.xlu0 %v1382
    %v1384 = vpop.xlane.xlu0 %1383
    %vm1385 = vcmp.eq.f32.partialorder %v1382, %v1384
    %v1386 = vsel %vm1385, %v1381, inf
    %1387 = vmin.xlane.f32.xlu0 %v1386
    %v1388 = vpop.xlane.xlu0 %1387
    %v1389 = vcvt.f32.s32 %v1388
    %v1390 = vcvt.f32.s32 %v1384
    %v1391 = vshll.u32 %v1390, 16
    %v1392 = vadd.s32 %v1391, %v1389
    %v1393 = vand.u32 %v1166, 65535
    %v1394 = vshra.s32 %v1166, 16
    %v1395 = vcvt.s32.f32 %v1393
    %v1396 = vcvt.s32.f32 %v1394
    %1397 = vmin.xlane.f32.xlu0 %v1396
    %v1398 = vpop.xlane.xlu0 %1397
    %vm1399 = vcmp.eq.f32.partialorder %v1396, %v1398
    %v1400 = vsel %vm1399, %v1395, inf
    %1401 = vmin.xlane.f32.xlu0 %v1400
    %v1402 = vpop.xlane.xlu0 %1401
    %v1403 = vcvt.f32.s32 %v1402
    %v1404 = vcvt.f32.s32 %v1398
    %v1405 = vshll.u32 %v1404, 16
    %v1406 = vadd.s32 %v1405, %v1403
    %v1407 = vand.u32 %v1167, 65535
    %v1408 = vshra.s32 %v1167, 16
    %v1409 = vcvt.s32.f32 %v1407
    %v1410 = vcvt.s32.f32 %v1408
    %1411 = vmin.xlane.f32.xlu0 %v1410
    %v1412 = vpop.xlane.xlu0 %1411
    %vm1413 = vcmp.eq.f32.partialorder %v1410, %v1412
    %v1414 = vsel %vm1413, %v1409, inf
    %1415 = vmin.xlane.f32.xlu0 %v1414
    %v1416 = vpop.xlane.xlu0 %1415
    %v1417 = vcvt.f32.s32 %v1416
    %v1418 = vcvt.f32.s32 %v1412
    %v1419 = vshll.u32 %v1418, 16
    %v1420 = vadd.s32 %v1419, %v1417
    %v1421 = vand.u32 %v1168, 65535
    %v1422 = vshra.s32 %v1168, 16
    %v1423 = vcvt.s32.f32 %v1421
    %v1424 = vcvt.s32.f32 %v1422
    %1425 = vmin.xlane.f32.xlu0 %v1424
    %v1426 = vpop.xlane.xlu0 %1425
    %vm1427 = vcmp.eq.f32.partialorder %v1424, %v1426
    %v1428 = vsel %vm1427, %v1423, inf
    %1429 = vmin.xlane.f32.xlu0 %v1428
    %v1430 = vpop.xlane.xlu0 %1429
    %v1431 = vcvt.f32.s32 %v1430
    %v1432 = vcvt.f32.s32 %v1426
    %v1433 = vshll.u32 %v1432, 16
    %v1434 = vadd.s32 %v1433, %v1431
    %v1435 = vand.u32 %v1169, 65535
    %v1436 = vshra.s32 %v1169, 16
    %v1437 = vcvt.s32.f32 %v1435
    %v1438 = vcvt.s32.f32 %v1436
    %1439 = vmin.xlane.f32.xlu0 %v1438
    %v1440 = vpop.xlane.xlu0 %1439
    %vm1441 = vcmp.eq.f32.partialorder %v1438, %v1440
    %v1442 = vsel %vm1441, %v1437, inf
    %1443 = vmin.xlane.f32.xlu0 %v1442
    %v1444 = vpop.xlane.xlu0 %1443
    %v1445 = vcvt.f32.s32 %v1444
    %v1446 = vcvt.f32.s32 %v1440
    %v1447 = vshll.u32 %v1446, 16
    %v1448 = vadd.s32 %v1447, %v1445
    %v1449 = vand.u32 %v1170, 65535
    %v1450 = vshra.s32 %v1170, 16
    %v1451 = vcvt.s32.f32 %v1449
    %v1452 = vcvt.s32.f32 %v1450
    %1453 = vmin.xlane.f32.xlu0 %v1452
    %v1454 = vpop.xlane.xlu0 %1453
    %vm1455 = vcmp.eq.f32.partialorder %v1452, %v1454
    %v1456 = vsel %vm1455, %v1451, inf
    %1457 = vmin.xlane.f32.xlu0 %v1456
    %v1458 = vpop.xlane.xlu0 %1457
    %v1459 = vcvt.f32.s32 %v1458
    %v1460 = vcvt.f32.s32 %v1454
    %v1461 = vshll.u32 %v1460, 16
    %v1462 = vadd.s32 %v1461, %v1459
    %v1463 = vand.u32 %v1171, 65535
    %v1464 = vshra.s32 %v1171, 16
    %v1465 = vcvt.s32.f32 %v1463
    %v1466 = vcvt.s32.f32 %v1464
    %1467 = vmin.xlane.f32.xlu0 %v1466
    %v1468 = vpop.xlane.xlu0 %1467
    %vm1469 = vcmp.eq.f32.partialorder %v1466, %v1468
    %v1470 = vsel %vm1469, %v1465, inf
    %1471 = vmin.xlane.f32.xlu0 %v1470
    %v1472 = vpop.xlane.xlu0 %1471
    %v1473 = vcvt.f32.s32 %v1472
    %v1474 = vcvt.f32.s32 %v1468
    %v1475 = vshll.u32 %v1474, 16
    %v1476 = vadd.s32 %v1475, %v1473
    %v1477 = vand.u32 %v1172, 65535
    %v1478 = vshra.s32 %v1172, 16
    %v1479 = vcvt.s32.f32 %v1477
    %v1480 = vcvt.s32.f32 %v1478
    %1481 = vmin.xlane.f32.xlu0 %v1480
    %v1482 = vpop.xlane.xlu0 %1481
    %vm1483 = vcmp.eq.f32.partialorder %v1480, %v1482
    %v1484 = vsel %vm1483, %v1479, inf
    %1485 = vmin.xlane.f32.xlu0 %v1484
    %v1486 = vpop.xlane.xlu0 %1485
    %v1487 = vcvt.f32.s32 %v1486
    %v1488 = vcvt.f32.s32 %v1482
    %v1489 = vshll.u32 %v1488, 16
    %v1490 = vadd.s32 %v1489, %v1487
    %v1491 = vand.u32 %v1173, 65535
    %v1492 = vshra.s32 %v1173, 16
    %v1493 = vcvt.s32.f32 %v1491
    %v1494 = vcvt.s32.f32 %v1492
    %1495 = vmin.xlane.f32.xlu0 %v1494
    %v1496 = vpop.xlane.xlu0 %1495
    %vm1497 = vcmp.eq.f32.partialorder %v1494, %v1496
    %v1498 = vsel %vm1497, %v1493, inf
    %1499 = vmin.xlane.f32.xlu0 %v1498
    %v1500 = vpop.xlane.xlu0 %1499
    %v1501 = vcvt.f32.s32 %v1500
    %v1502 = vcvt.f32.s32 %v1496
    %v1503 = vshll.u32 %v1502, 16
    %v1504 = vadd.s32 %v1503, %v1501
    %v1505 = vand.u32 %v1174, 65535
    %v1506 = vshra.s32 %v1174, 16
    %v1507 = vcvt.s32.f32 %v1505
    %v1508 = vcvt.s32.f32 %v1506
    %1509 = vmin.xlane.f32.xlu0 %v1508
    %v1510 = vpop.xlane.xlu0 %1509
    %vm1511 = vcmp.eq.f32.partialorder %v1508, %v1510
    %v1512 = vsel %vm1511, %v1507, inf
    %1513 = vmin.xlane.f32.xlu0 %v1512
    %v1514 = vpop.xlane.xlu0 %1513
    %v1515 = vcvt.f32.s32 %v1514
    %v1516 = vcvt.f32.s32 %v1510
    %v1517 = vshll.u32 %v1516, 16
    %v1518 = vadd.s32 %v1517, %v1515
    %v1519 = vand.u32 %v1175, 65535
    %v1520 = vshra.s32 %v1175, 16
    %v1521 = vcvt.s32.f32 %v1519
    %v1522 = vcvt.s32.f32 %v1520
    %1523 = vmin.xlane.f32.xlu0 %v1522
    %v1524 = vpop.xlane.xlu0 %1523
    %vm1525 = vcmp.eq.f32.partialorder %v1522, %v1524
    %v1526 = vsel %vm1525, %v1521, inf
    %1527 = vmin.xlane.f32.xlu0 %v1526
    %v1528 = vpop.xlane.xlu0 %1527
    %v1529 = vcvt.f32.s32 %v1528
    %v1530 = vcvt.f32.s32 %v1524
    %v1531 = vshll.u32 %v1530, 16
    %v1532 = vadd.s32 %v1531, %v1529
    %v1533 = vand.u32 %v1176, 65535
    %v1534 = vshra.s32 %v1176, 16
    %v1535 = vcvt.s32.f32 %v1533
    %v1536 = vcvt.s32.f32 %v1534
    %1537 = vmin.xlane.f32.xlu0 %v1536
    %v1538 = vpop.xlane.xlu0 %1537
    %vm1539 = vcmp.eq.f32.partialorder %v1536, %v1538
    %v1540 = vsel %vm1539, %v1535, inf
    %1541 = vmin.xlane.f32.xlu0 %v1540
    %v1542 = vpop.xlane.xlu0 %1541
    %v1543 = vcvt.f32.s32 %v1542
    %v1544 = vcvt.f32.s32 %v1538
    %v1545 = vshll.u32 %v1544, 16
    %v1546 = vadd.s32 %v1545, %v1543
    %v1547 = vand.u32 %v1177, 65535
    %v1548 = vshra.s32 %v1177, 16
    %v1549 = vcvt.s32.f32 %v1547
    %v1550 = vcvt.s32.f32 %v1548
    %1551 = vmin.xlane.f32.xlu0 %v1550
    %v1552 = vpop.xlane.xlu0 %1551
    %vm1553 = vcmp.eq.f32.partialorder %v1550, %v1552
    %v1554 = vsel %vm1553, %v1549, inf
    %1555 = vmin.xlane.f32.xlu0 %v1554
    %v1556 = vpop.xlane.xlu0 %1555
    %v1557 = vcvt.f32.s32 %v1556
    %v1558 = vcvt.f32.s32 %v1552
    %v1559 = vshll.u32 %v1558, 16
    %v1560 = vadd.s32 %v1559, %v1557
    %v1561 = vand.u32 %v1178, 65535
    %v1562 = vshra.s32 %v1178, 16
    %v1563 = vcvt.s32.f32 %v1561
    %v1564 = vcvt.s32.f32 %v1562
    %1565 = vmin.xlane.f32.xlu0 %v1564
    %v1566 = vpop.xlane.xlu0 %1565
    %vm1567 = vcmp.eq.f32.partialorder %v1564, %v1566
    %v1568 = vsel %vm1567, %v1563, inf
    %1569 = vmin.xlane.f32.xlu0 %v1568
    %v1570 = vpop.xlane.xlu0 %1569
    %v1571 = vcvt.f32.s32 %v1570
    %v1572 = vcvt.f32.s32 %v1566
    %v1573 = vshll.u32 %v1572, 16
    %v1574 = vadd.s32 %v1573, %v1571
    %v1575 = vand.u32 %v1179, 65535
    %v1576 = vshra.s32 %v1179, 16
    %v1577 = vcvt.s32.f32 %v1575
    %v1578 = vcvt.s32.f32 %v1576
    %1579 = vmin.xlane.f32.xlu0 %v1578
    %v1580 = vpop.xlane.xlu0 %1579
    %vm1581 = vcmp.eq.f32.partialorder %v1578, %v1580
    %v1582 = vsel %vm1581, %v1577, inf
    %1583 = vmin.xlane.f32.xlu0 %v1582
    %v1584 = vpop.xlane.xlu0 %1583
    %v1585 = vcvt.f32.s32 %v1584
    %v1586 = vcvt.f32.s32 %v1580
    %v1587 = vshll.u32 %v1586, 16
    %v1588 = vadd.s32 %v1587, %v1585
    %v1589 = vand.u32 %v1180, 65535
    %v1590 = vshra.s32 %v1180, 16
    %v1591 = vcvt.s32.f32 %v1589
    %v1592 = vcvt.s32.f32 %v1590
    %1593 = vmin.xlane.f32.xlu0 %v1592
    %v1594 = vpop.xlane.xlu0 %1593
    %vm1595 = vcmp.eq.f32.partialorder %v1592, %v1594
    %v1596 = vsel %vm1595, %v1591, inf
    %1597 = vmin.xlane.f32.xlu0 %v1596
    %v1598 = vpop.xlane.xlu0 %1597
    %v1599 = vcvt.f32.s32 %v1598
    %v1600 = vcvt.f32.s32 %v1594
    %v1601 = vshll.u32 %v1600, 16
    %v1602 = vadd.s32 %v1601, %v1599
    %v1603 = vand.u32 %v1181, 65535
    %v1604 = vshra.s32 %v1181, 16
    %v1605 = vcvt.s32.f32 %v1603
    %v1606 = vcvt.s32.f32 %v1604
    %1607 = vmin.xlane.f32.xlu0 %v1606
    %v1608 = vpop.xlane.xlu0 %1607
    %vm1609 = vcmp.eq.f32.partialorder %v1606, %v1608
    %v1610 = vsel %vm1609, %v1605, inf
    %1611 = vmin.xlane.f32.xlu0 %v1610
    %v1612 = vpop.xlane.xlu0 %1611
    %v1613 = vcvt.f32.s32 %v1612
    %v1614 = vcvt.f32.s32 %v1608
    %v1615 = vshll.u32 %v1614, 16
    %v1616 = vadd.s32 %v1615, %v1613
    %v1617 = vand.u32 %v1182, 65535
    %v1618 = vshra.s32 %v1182, 16
    %v1619 = vcvt.s32.f32 %v1617
    %v1620 = vcvt.s32.f32 %v1618
    %1621 = vmin.xlane.f32.xlu0 %v1620
    %v1622 = vpop.xlane.xlu0 %1621
    %vm1623 = vcmp.eq.f32.partialorder %v1620, %v1622
    %v1624 = vsel %vm1623, %v1619, inf
    %1625 = vmin.xlane.f32.xlu0 %v1624
    %v1626 = vpop.xlane.xlu0 %1625
    %v1627 = vcvt.f32.s32 %v1626
    %v1628 = vcvt.f32.s32 %v1622
    %v1629 = vshll.u32 %v1628, 16
    %v1630 = vadd.s32 %v1629, %v1627
    %vm1631 = vcmask 7168
    %1632 = vst.msk [vmem:[%s8] sm:$0xff] %vm1631, %v1196
    %1633 = vst.msk [vmem:[%s8 + $0x8] sm:$0xff] %vm1631, %v1210
    %1634 = vst.msk [vmem:[%s8 + $0x10] sm:$0xff] %vm1631, %v1224
    %1635 = vst.msk [vmem:[%s8 + $0x18] sm:$0xff] %vm1631, %v1238
    %1636 = vst.msk [vmem:[%s8 + $0x20] sm:$0xff] %vm1631, %v1252
    %1637 = vst.msk [vmem:[%s8 + $0x28] sm:$0xff] %vm1631, %v1266
    %1638 = vst.msk [vmem:[%s8 + $0x30] sm:$0xff] %vm1631, %v1280
    %1639 = vst.msk [vmem:[%s8 + $0x38] sm:$0xff] %vm1631, %v1294
    %1640 = vst.msk [vmem:[%s8 + $0x40] sm:$0xff] %vm1631, %v1308
    %1641 = vst.msk [vmem:[%s8 + $0x48] sm:$0xff] %vm1631, %v1322
    %1642 = vst.msk [vmem:[%s8 + $0x50] sm:$0xff] %vm1631, %v1336
    %1643 = vst.msk [vmem:[%s8 + $0x58] sm:$0xff] %vm1631, %v1350
    %1644 = vst.msk [vmem:[%s8 + $0x60] sm:$0xff] %vm1631, %v1364
    %1645 = vst.msk [vmem:[%s8 + $0x68] sm:$0xff] %vm1631, %v1378
    %1646 = vst.msk [vmem:[%s8 + $0x70] sm:$0xff] %vm1631, %v1392
    %1647 = vst.msk [vmem:[%s8 + $0x78] sm:$0xff] %vm1631, %v1406
    %1648 = vst.msk [vmem:[%s8 + $0x80] sm:$0xff] %vm1631, %v1420
    %1649 = vst.msk [vmem:[%s8 + $0x88] sm:$0xff] %vm1631, %v1434
    %1650 = vst.msk [vmem:[%s8 + $0x90] sm:$0xff] %vm1631, %v1448
    %1651 = vst.msk [vmem:[%s8 + $0x98] sm:$0xff] %vm1631, %v1462
    %1652 = vst.msk [vmem:[%s8 + $0xa0] sm:$0xff] %vm1631, %v1476
    %1653 = vst.msk [vmem:[%s8 + $0xa8] sm:$0xff] %vm1631, %v1490
    %1654 = vst.msk [vmem:[%s8 + $0xb0] sm:$0xff] %vm1631, %v1504
    %1655 = vst.msk [vmem:[%s8 + $0xb8] sm:$0xff] %vm1631, %v1518
    %1656 = vst.msk [vmem:[%s8 + $0xc0] sm:$0xff] %vm1631, %v1532
    %1657 = vst.msk [vmem:[%s8 + $0xc8] sm:$0xff] %vm1631, %v1546
    %1658 = vst.msk [vmem:[%s8 + $0xd0] sm:$0xff] %vm1631, %v1560
    %1659 = vst.msk [vmem:[%s8 + $0xd8] sm:$0xff] %vm1631, %v1574
    %1660 = vst.msk [vmem:[%s8 + $0xe0] sm:$0xff] %vm1631, %v1588
    %1661 = vst.msk [vmem:[%s8 + $0xe8] sm:$0xff] %vm1631, %v1602
    %1662 = vst.msk [vmem:[%s8 + $0xf0] sm:$0xff] %vm1631, %v1616
    %1663 = vst.msk [vmem:[%s8 + $0xf8] sm:$0xff] %vm1631, %v1630
    %v1664 = vsub.f32 %v1023, %v1056
    %v1665 = vsub.f32 %v1024, %v1058
    %v1666 = vsub.f32 %v1025, %v1060
    %v1667 = vsub.f32 %v1026, %v1062
    %v1668 = vsub.f32 %v1027, %v1064
    %v1669 = vsub.f32 %v1028, %v1066
    %v1670 = vsub.f32 %v1029, %v1068
    %v1671 = vsub.f32 %v1030, %v1070
    %v1672 = vsub.f32 %v1031, %v1072
    %v1673 = vsub.f32 %v1032, %v1074
    %v1674 = vsub.f32 %v1033, %v1076
    %v1675 = vsub.f32 %v1034, %v1078
    %v1676 = vsub.f32 %v1035, %v1080
    %v1677 = vsub.f32 %v1036, %v1082
    %v1678 = vsub.f32 %v1037, %v1084
    %v1679 = vsub.f32 %v1038, %v1086
    %v1680 = vsub.f32 %v1039, %v1088
    %v1681 = vsub.f32 %v1040, %v1090
    %v1682 = vsub.f32 %v1041, %v1092
    %v1683 = vsub.f32 %v1042, %v1094
    %v1684 = vsub.f32 %v1043, %v1096
    %v1685 = vsub.f32 %v1044, %v1098
    %v1686 = vsub.f32 %v1045, %v1100
    %v1687 = vsub.f32 %v1046, %v1102
    %v1688 = vsub.f32 %v1047, %v1104
    %v1689 = vsub.f32 %v1048, %v1106
    %v1690 = vsub.f32 %v1049, %v1108
    %v1691 = vsub.f32 %v1050, %v1110
    %v1692 = vsub.f32 %v1051, %v1112
    %v1693 = vsub.f32 %v1052, %v1114
    %v1694 = vsub.f32 %v1053, %v1116
    %v1695 = vsub.f32 %v1054, %v1118
    %v1696 = vmul.f32 %v1664, 1.442695
    %v1697 = vpow.pop %v1696
    %v1698 = vmul.f32 %v1665, 1.442695
    %v1699 = vpow.pop %v1698
    %v1700 = vmul.f32 %v1666, 1.442695
    %v1701 = vpow.pop %v1700
    %v1702 = vmul.f32 %v1667, 1.442695
    %v1703 = vpow.pop %v1702
    %v1704 = vmul.f32 %v1668, 1.442695
    %v1705 = vpow.pop %v1704
    %v1706 = vmul.f32 %v1669, 1.442695
    %v1707 = vpow.pop %v1706
    %v1708 = vmul.f32 %v1670, 1.442695
    %v1709 = vpow.pop %v1708
    %v1710 = vmul.f32 %v1671, 1.442695
    %v1711 = vpow.pop %v1710
    %v1712 = vmul.f32 %v1672, 1.442695
    %v1713 = vpow.pop %v1712
    %v1714 = vmul.f32 %v1673, 1.442695
    %v1715 = vpow.pop %v1714
    %v1716 = vmul.f32 %v1674, 1.442695
    %v1717 = vpow.pop %v1716
    %v1718 = vmul.f32 %v1675, 1.442695
    %v1719 = vpow.pop %v1718
    %v1720 = vmul.f32 %v1676, 1.442695
    %v1721 = vpow.pop %v1720
    %v1722 = vmul.f32 %v1677, 1.442695
    %v1723 = vpow.pop %v1722
    %v1724 = vmul.f32 %v1678, 1.442695
    %v1725 = vpow.pop %v1724
    %v1726 = vmul.f32 %v1679, 1.442695
    %v1727 = vpow.pop %v1726
    %v1728 = vmul.f32 %v1680, 1.442695
    %v1729 = vpow.pop %v1728
    %v1730 = vmul.f32 %v1681, 1.442695
    %v1731 = vpow.pop %v1730
    %v1732 = vmul.f32 %v1682, 1.442695
    %v1733 = vpow.pop %v1732
    %v1734 = vmul.f32 %v1683, 1.442695
    %v1735 = vpow.pop %v1734
    %v1736 = vmul.f32 %v1684, 1.442695
    %v1737 = vpow.pop %v1736
    %v1738 = vmul.f32 %v1685, 1.442695
    %v1739 = vpow.pop %v1738
    %v1740 = vmul.f32 %v1686, 1.442695
    %v1741 = vpow.pop %v1740
    %v1742 = vmul.f32 %v1687, 1.442695
    %v1743 = vpow.pop %v1742
    %v1744 = vmul.f32 %v1688, 1.442695
    %v1745 = vpow.pop %v1744
    %v1746 = vmul.f32 %v1689, 1.442695
    %v1747 = vpow.pop %v1746
    %v1748 = vmul.f32 %v1690, 1.442695
    %v1749 = vpow.pop %v1748
    %v1750 = vmul.f32 %v1691, 1.442695
    %v1751 = vpow.pop %v1750
    %v1752 = vmul.f32 %v1692, 1.442695
    %v1753 = vpow.pop %v1752
    %v1754 = vmul.f32 %v1693, 1.442695
    %v1755 = vpow.pop %v1754
    %v1756 = vmul.f32 %v1694, 1.442695
    %v1757 = vpow.pop %v1756
    %v1758 = vmul.f32 %v1695, 1.442695
    %v1759 = vpow.pop %v1758
    %1760 = vadd.xlane.f32.xlu0 %v1697
    %v1761 = vpop.xlane.xlu0 %1760
    %1762 = vadd.xlane.f32.xlu0 %v1699
    %v1763 = vpop.xlane.xlu0 %1762
    %1764 = vadd.xlane.f32.xlu0 %v1701
    %v1765 = vpop.xlane.xlu0 %1764
    %1766 = vadd.xlane.f32.xlu0 %v1703
    %v1767 = vpop.xlane.xlu0 %1766
    %1768 = vadd.xlane.f32.xlu0 %v1705
    %v1769 = vpop.xlane.xlu0 %1768
    %1770 = vadd.xlane.f32.xlu0 %v1707
    %v1771 = vpop.xlane.xlu0 %1770
    %1772 = vadd.xlane.f32.xlu0 %v1709
    %v1773 = vpop.xlane.xlu0 %1772
    %1774 = vadd.xlane.f32.xlu0 %v1711
    %v1775 = vpop.xlane.xlu0 %1774
    %1776 = vadd.xlane.f32.xlu0 %v1713
    %v1777 = vpop.xlane.xlu0 %1776
    %1778 = vadd.xlane.f32.xlu0 %v1715
    %v1779 = vpop.xlane.xlu0 %1778
    %1780 = vadd.xlane.f32.xlu0 %v1717
    %v1781 = vpop.xlane.xlu0 %1780
    %1782 = vadd.xlane.f32.xlu0 %v1719
    %v1783 = vpop.xlane.xlu0 %1782
    %1784 = vadd.xlane.f32.xlu0 %v1721
    %v1785 = vpop.xlane.xlu0 %1784
    %1786 = vadd.xlane.f32.xlu0 %v1723
    %v1787 = vpop.xlane.xlu0 %1786
    %1788 = vadd.xlane.f32.xlu0 %v1725
    %v1789 = vpop.xlane.xlu0 %1788
    %1790 = vadd.xlane.f32.xlu0 %v1727
    %v1791 = vpop.xlane.xlu0 %1790
    %1792 = vadd.xlane.f32.xlu0 %v1729
    %v1793 = vpop.xlane.xlu0 %1792
    %1794 = vadd.xlane.f32.xlu0 %v1731
    %v1795 = vpop.xlane.xlu0 %1794
    %1796 = vadd.xlane.f32.xlu0 %v1733
    %v1797 = vpop.xlane.xlu0 %1796
    %1798 = vadd.xlane.f32.xlu0 %v1735
    %v1799 = vpop.xlane.xlu0 %1798
    %1800 = vadd.xlane.f32.xlu0 %v1737
    %v1801 = vpop.xlane.xlu0 %1800
    %1802 = vadd.xlane.f32.xlu0 %v1739
    %v1803 = vpop.xlane.xlu0 %1802
    %1804 = vadd.xlane.f32.xlu0 %v1741
    %v1805 = vpop.xlane.xlu0 %1804
    %1806 = vadd.xlane.f32.xlu0 %v1743
    %v1807 = vpop.xlane.xlu0 %1806
    %1808 = vadd.xlane.f32.xlu0 %v1745
    %v1809 = vpop.xlane.xlu0 %1808
    %1810 = vadd.xlane.f32.xlu0 %v1747
    %v1811 = vpop.xlane.xlu0 %1810
    %1812 = vadd.xlane.f32.xlu0 %v1749
    %v1813 = vpop.xlane.xlu0 %1812
    %1814 = vadd.xlane.f32.xlu0 %v1751
    %v1815 = vpop.xlane.xlu0 %1814
    %1816 = vadd.xlane.f32.xlu0 %v1753
    %v1817 = vpop.xlane.xlu0 %1816
    %1818 = vadd.xlane.f32.xlu0 %v1755
    %v1819 = vpop.xlane.xlu0 %1818
    %1820 = vadd.xlane.f32.xlu0 %v1757
    %v1821 = vpop.xlane.xlu0 %1820
    %1822 = vadd.xlane.f32.xlu0 %v1759
    %v1823 = vpop.xlane.xlu0 %1822
    %v1824 = vlog2.pop %v1761
    %v1825 = vmul.f32 %v1824, 0.6931472
    %v1826 = vlog2.pop %v1763
    %v1827 = vmul.f32 %v1826, 0.6931472
    %v1828 = vlog2.pop %v1765
    %v1829 = vmul.f32 %v1828, 0.6931472
    %v1830 = vlog2.pop %v1767
    %v1831 = vmul.f32 %v1830, 0.6931472
    %v1832 = vlog2.pop %v1769
    %v1833 = vmul.f32 %v1832, 0.6931472
    %v1834 = vlog2.pop %v1771
    %v1835 = vmul.f32 %v1834, 0.6931472
    %v1836 = vlog2.pop %v1773
    %v1837 = vmul.f32 %v1836, 0.6931472
    %v1838 = vlog2.pop %v1775
    %v1839 = vmul.f32 %v1838, 0.6931472
    %v1840 = vlog2.pop %v1777
    %v1841 = vmul.f32 %v1840, 0.6931472
    %v1842 = vlog2.pop %v1779
    %v1843 = vmul.f32 %v1842, 0.6931472
    %v1844 = vlog2.pop %v1781
    %v1845 = vmul.f32 %v1844, 0.6931472
    %v1846 = vlog2.pop %v1783
    %v1847 = vmul.f32 %v1846, 0.6931472
    %v1848 = vlog2.pop %v1785
    %v1849 = vmul.f32 %v1848, 0.6931472
    %v1850 = vlog2.pop %v1787
    %v1851 = vmul.f32 %v1850, 0.6931472
    %v1852 = vlog2.pop %v1789
    %v1853 = vmul.f32 %v1852, 0.6931472
    %v1854 = vlog2.pop %v1791
    %v1855 = vmul.f32 %v1854, 0.6931472
    %v1856 = vlog2.pop %v1793
    %v1857 = vmul.f32 %v1856, 0.6931472
    %v1858 = vlog2.pop %v1795
    %v1859 = vmul.f32 %v1858, 0.6931472
    %v1860 = vlog2.pop %v1797
    %v1861 = vmul.f32 %v1860, 0.6931472
    %v1862 = vlog2.pop %v1799
    %v1863 = vmul.f32 %v1862, 0.6931472
    %v1864 = vlog2.pop %v1801
    %v1865 = vmul.f32 %v1864, 0.6931472
    %v1866 = vlog2.pop %v1803
    %v1867 = vmul.f32 %v1866, 0.6931472
    %v1868 = vlog2.pop %v1805
    %v1869 = vmul.f32 %v1868, 0.6931472
    %v1870 = vlog2.pop %v1807
    %v1871 = vmul.f32 %v1870, 0.6931472
    %v1872 = vlog2.pop %v1809
    %v1873 = vmul.f32 %v1872, 0.6931472
    %v1874 = vlog2.pop %v1811
    %v1875 = vmul.f32 %v1874, 0.6931472
    %v1876 = vlog2.pop %v1813
    %v1877 = vmul.f32 %v1876, 0.6931472
    %v1878 = vlog2.pop %v1815
    %v1879 = vmul.f32 %v1878, 0.6931472
    %v1880 = vlog2.pop %v1817
    %v1881 = vmul.f32 %v1880, 0.6931472
    %v1882 = vlog2.pop %v1819
    %v1883 = vmul.f32 %v1882, 0.6931472
    %v1884 = vlog2.pop %v1821
    %v1885 = vmul.f32 %v1884, 0.6931472
    %v1886 = vlog2.pop %v1823
    %v1887 = vmul.f32 %v1886, 0.6931472
    %v1888 = vadd.f32 %v1056, %v1825
    %v1889 = vadd.f32 %v1058, %v1827
    %v1890 = vadd.f32 %v1060, %v1829
    %v1891 = vadd.f32 %v1062, %v1831
    %v1892 = vadd.f32 %v1064, %v1833
    %v1893 = vadd.f32 %v1066, %v1835
    %v1894 = vadd.f32 %v1068, %v1837
    %v1895 = vadd.f32 %v1070, %v1839
    %v1896 = vadd.f32 %v1072, %v1841
    %v1897 = vadd.f32 %v1074, %v1843
    %v1898 = vadd.f32 %v1076, %v1845
    %v1899 = vadd.f32 %v1078, %v1847
    %v1900 = vadd.f32 %v1080, %v1849
    %v1901 = vadd.f32 %v1082, %v1851
    %v1902 = vadd.f32 %v1084, %v1853
    %v1903 = vadd.f32 %v1086, %v1855
    %v1904 = vadd.f32 %v1088, %v1857
    %v1905 = vadd.f32 %v1090, %v1859
    %v1906 = vadd.f32 %v1092, %v1861
    %v1907 = vadd.f32 %v1094, %v1863
    %v1908 = vadd.f32 %v1096, %v1865
    %v1909 = vadd.f32 %v1098, %v1867
    %v1910 = vadd.f32 %v1100, %v1869
    %v1911 = vadd.f32 %v1102, %v1871
    %v1912 = vadd.f32 %v1104, %v1873
    %v1913 = vadd.f32 %v1106, %v1875
    %v1914 = vadd.f32 %v1108, %v1877
    %v1915 = vadd.f32 %v1110, %v1879
    %v1916 = vadd.f32 %v1112, %v1881
    %v1917 = vadd.f32 %v1114, %v1883
    %v1918 = vadd.f32 %v1116, %v1885
    %v1919 = vadd.f32 %v1118, %v1887
    %v1920 = vld [vmem:[%s2] sm:$0xff]
    %v1921 = vld [vmem:[%s2 + $0x8] sm:$0xff]
    %v1922 = vld [vmem:[%s2 + $0x10] sm:$0xff]
    %v1923 = vld [vmem:[%s2 + $0x18] sm:$0xff]
    %v1924 = vld [vmem:[%s2 + $0x20] sm:$0xff]
    %v1925 = vld [vmem:[%s2 + $0x28] sm:$0xff]
    %v1926 = vld [vmem:[%s2 + $0x30] sm:$0xff]
    %v1927 = vld [vmem:[%s2 + $0x38] sm:$0xff]
    %v1928 = vld [vmem:[%s2 + $0x40] sm:$0xff]
    %v1929 = vld [vmem:[%s2 + $0x48] sm:$0xff]
    %v1930 = vld [vmem:[%s2 + $0x50] sm:$0xff]
    %v1931 = vld [vmem:[%s2 + $0x58] sm:$0xff]
    %v1932 = vld [vmem:[%s2 + $0x60] sm:$0xff]
    %v1933 = vld [vmem:[%s2 + $0x68] sm:$0xff]
    %v1934 = vld [vmem:[%s2 + $0x70] sm:$0xff]
    %v1935 = vld [vmem:[%s2 + $0x78] sm:$0xff]
    %v1936 = vld [vmem:[%s2 + $0x80] sm:$0xff]
    %v1937 = vld [vmem:[%s2 + $0x88] sm:$0xff]
    %v1938 = vld [vmem:[%s2 + $0x90] sm:$0xff]
    %v1939 = vld [vmem:[%s2 + $0x98] sm:$0xff]
    %v1940 = vld [vmem:[%s2 + $0xa0] sm:$0xff]
    %v1941 = vld [vmem:[%s2 + $0xa8] sm:$0xff]
    %v1942 = vld [vmem:[%s2 + $0xb0] sm:$0xff]
    %v1943 = vld [vmem:[%s2 + $0xb8] sm:$0xff]
    %v1944 = vld [vmem:[%s2 + $0xc0] sm:$0xff]
    %v1945 = vld [vmem:[%s2 + $0xc8] sm:$0xff]
    %v1946 = vld [vmem:[%s2 + $0xd0] sm:$0xff]
    %v1947 = vld [vmem:[%s2 + $0xd8] sm:$0xff]
    %v1948 = vld [vmem:[%s2 + $0xe0] sm:$0xff]
    %v1949 = vld [vmem:[%s2 + $0xe8] sm:$0xff]
    %v1950 = vld [vmem:[%s2 + $0xf0] sm:$0xff]
    %v1951 = vld [vmem:[%s2 + $0xf8] sm:$0xff]
    %1952 = vset.pattern.permute.xlu0 0
    %1953 = vperm.xlu0 %1952, %v1920
    %v1954 = vpop.permute.xlu0 %1953
    %1955 = vset.pattern.permute.xlu0 0
    %1956 = vperm.xlu0 %1955, %v1921
    %v1957 = vpop.permute.xlu0 %1956
    %1958 = vset.pattern.permute.xlu0 0
    %1959 = vperm.xlu0 %1958, %v1922
    %v1960 = vpop.permute.xlu0 %1959
    %1961 = vset.pattern.permute.xlu0 0
    %1962 = vperm.xlu0 %1961, %v1923
    %v1963 = vpop.permute.xlu0 %1962
    %1964 = vset.pattern.permute.xlu0 0
    %1965 = vperm.xlu0 %1964, %v1924
    %v1966 = vpop.permute.xlu0 %1965
    %1967 = vset.pattern.permute.xlu0 0
    %1968 = vperm.xlu0 %1967, %v1925
    %v1969 = vpop.permute.xlu0 %1968
    %1970 = vset.pattern.permute.xlu0 0
    %1971 = vperm.xlu0 %1970, %v1926
    %v1972 = vpop.permute.xlu0 %1971
    %1973 = vset.pattern.permute.xlu0 0
    %1974 = vperm.xlu0 %1973, %v1927
    %v1975 = vpop.permute.xlu0 %1974
    %1976 = vset.pattern.permute.xlu0 0
    %1977 = vperm.xlu0 %1976, %v1928
    %v1978 = vpop.permute.xlu0 %1977
    %1979 = vset.pattern.permute.xlu0 0
    %1980 = vperm.xlu0 %1979, %v1929
    %v1981 = vpop.permute.xlu0 %1980
    %1982 = vset.pattern.permute.xlu0 0
    %1983 = vperm.xlu0 %1982, %v1930
    %v1984 = vpop.permute.xlu0 %1983
    %1985 = vset.pattern.permute.xlu0 0
    %1986 = vperm.xlu0 %1985, %v1931
    %v1987 = vpop.permute.xlu0 %1986
    %1988 = vset.pattern.permute.xlu0 0
    %1989 = vperm.xlu0 %1988, %v1932
    %v1990 = vpop.permute.xlu0 %1989
    %1991 = vset.pattern.permute.xlu0 0
    %1992 = vperm.xlu0 %1991, %v1933
    %v1993 = vpop.permute.xlu0 %1992
    %1994 = vset.pattern.permute.xlu0 0
    %1995 = vperm.xlu0 %1994, %v1934
    %v1996 = vpop.permute.xlu0 %1995
    %1997 = vset.pattern.permute.xlu0 0
    %1998 = vperm.xlu0 %1997, %v1935
    %v1999 = vpop.permute.xlu0 %1998
    %2000 = vset.pattern.permute.xlu0 0
    %2001 = vperm.xlu0 %2000, %v1936
    %v2002 = vpop.permute.xlu0 %2001
    %2003 = vset.pattern.permute.xlu0 0
    %2004 = vperm.xlu0 %2003, %v1937
    %v2005 = vpop.permute.xlu0 %2004
    %2006 = vset.pattern.permute.xlu0 0
    %2007 = vperm.xlu0 %2006, %v1938
    %v2008 = vpop.permute.xlu0 %2007
    %2009 = vset.pattern.permute.xlu0 0
    %2010 = vperm.xlu0 %2009, %v1939
    %v2011 = vpop.permute.xlu0 %2010
    %2012 = vset.pattern.permute.xlu0 0
    %2013 = vperm.xlu0 %2012, %v1940
    %v2014 = vpop.permute.xlu0 %2013
    %2015 = vset.pattern.permute.xlu0 0
    %2016 = vperm.xlu0 %2015, %v1941
    %v2017 = vpop.permute.xlu0 %2016
    %2018 = vset.pattern.permute.xlu0 0
    %2019 = vperm.xlu0 %2018, %v1942
    %v2020 = vpop.permute.xlu0 %2019
    %2021 = vset.pattern.permute.xlu0 0
    %2022 = vperm.xlu0 %2021, %v1943
    %v2023 = vpop.permute.xlu0 %2022
    %2024 = vset.pattern.permute.xlu0 0
    %2025 = vperm.xlu0 %2024, %v1944
    %v2026 = vpop.permute.xlu0 %2025
    %2027 = vset.pattern.permute.xlu0 0
    %2028 = vperm.xlu0 %2027, %v1945
    %v2029 = vpop.permute.xlu0 %2028
    %2030 = vset.pattern.permute.xlu0 0
    %2031 = vperm.xlu0 %2030, %v1946
    %v2032 = vpop.permute.xlu0 %2031
    %2033 = vset.pattern.permute.xlu0 0
    %2034 = vperm.xlu0 %2033, %v1947
    %v2035 = vpop.permute.xlu0 %2034
    %2036 = vset.pattern.permute.xlu0 0
    %2037 = vperm.xlu0 %2036, %v1948
    %v2038 = vpop.permute.xlu0 %2037
    %2039 = vset.pattern.permute.xlu0 0
    %2040 = vperm.xlu0 %2039, %v1949
    %v2041 = vpop.permute.xlu0 %2040
    %2042 = vset.pattern.permute.xlu0 0
    %2043 = vperm.xlu0 %2042, %v1950
    %v2044 = vpop.permute.xlu0 %2043
    %2045 = vset.pattern.permute.xlu0 0
    %2046 = vperm.xlu0 %2045, %v1951
    %v2047 = vpop.permute.xlu0 %2046
    %vm2048 = vcmp.eq.s32.totalorder %v1021, %v1954
    %vm2049 = vcmp.eq.s32.totalorder %v1021, %v1957
    %vm2050 = vcmp.eq.s32.totalorder %v1021, %v1960
    %vm2051 = vcmp.eq.s32.totalorder %v1021, %v1963
    %vm2052 = vcmp.eq.s32.totalorder %v1021, %v1966
    %vm2053 = vcmp.eq.s32.totalorder %v1021, %v1969
    %vm2054 = vcmp.eq.s32.totalorder %v1021, %v1972
    %vm2055 = vcmp.eq.s32.totalorder %v1021, %v1975
    %vm2056 = vcmp.eq.s32.totalorder %v1021, %v1978
    %vm2057 = vcmp.eq.s32.totalorder %v1021, %v1981
    %vm2058 = vcmp.eq.s32.totalorder %v1021, %v1984
    %vm2059 = vcmp.eq.s32.totalorder %v1021, %v1987
    %vm2060 = vcmp.eq.s32.totalorder %v1021, %v1990
    %vm2061 = vcmp.eq.s32.totalorder %v1021, %v1993
    %vm2062 = vcmp.eq.s32.totalorder %v1021, %v1996
    %vm2063 = vcmp.eq.s32.totalorder %v1021, %v1999
    %vm2064 = vcmp.eq.s32.totalorder %v1021, %v2002
    %vm2065 = vcmp.eq.s32.totalorder %v1021, %v2005
    %vm2066 = vcmp.eq.s32.totalorder %v1021, %v2008
    %vm2067 = vcmp.eq.s32.totalorder %v1021, %v2011
    %vm2068 = vcmp.eq.s32.totalorder %v1021, %v2014
    %vm2069 = vcmp.eq.s32.totalorder %v1021, %v2017
    %vm2070 = vcmp.eq.s32.totalorder %v1021, %v2020
    %vm2071 = vcmp.eq.s32.totalorder %v1021, %v2023
    %vm2072 = vcmp.eq.s32.totalorder %v1021, %v2026
    %vm2073 = vcmp.eq.s32.totalorder %v1021, %v2029
    %vm2074 = vcmp.eq.s32.totalorder %v1021, %v2032
    %vm2075 = vcmp.eq.s32.totalorder %v1021, %v2035
    %vm2076 = vcmp.eq.s32.totalorder %v1021, %v2038
    %vm2077 = vcmp.eq.s32.totalorder %v1021, %v2041
    %vm2078 = vcmp.eq.s32.totalorder %v1021, %v2044
    %vm2079 = vcmp.eq.s32.totalorder %v1021, %v2047
    %v2080 = vsel %vm2048, 1, 0
    %v2081 = vsel %vm2049, 1, 0
    %v2082 = vsel %vm2050, 1, 0
    %v2083 = vsel %vm2051, 1, 0
    %v2084 = vsel %vm2052, 1, 0
    %v2085 = vsel %vm2053, 1, 0
    %v2086 = vsel %vm2054, 1, 0
    %v2087 = vsel %vm2055, 1, 0
    %v2088 = vsel %vm2056, 1, 0
    %v2089 = vsel %vm2057, 1, 0
    %v2090 = vsel %vm2058, 1, 0
    %v2091 = vsel %vm2059, 1, 0
    %v2092 = vsel %vm2060, 1, 0
    %v2093 = vsel %vm2061, 1, 0
    %v2094 = vsel %vm2062, 1, 0
    %v2095 = vsel %vm2063, 1, 0
    %v2096 = vsel %vm2064, 1, 0
    %v2097 = vsel %vm2065, 1, 0
    %v2098 = vsel %vm2066, 1, 0
    %v2099 = vsel %vm2067, 1, 0
    %v2100 = vsel %vm2068, 1, 0
    %v2101 = vsel %vm2069, 1, 0
    %v2102 = vsel %vm2070, 1, 0
    %v2103 = vsel %vm2071, 1, 0
    %v2104 = vsel %vm2072, 1, 0
    %v2105 = vsel %vm2073, 1, 0
    %v2106 = vsel %vm2074, 1, 0
    %v2107 = vsel %vm2075, 1, 0
    %v2108 = vsel %vm2076, 1, 0
    %v2109 = vsel %vm2077, 1, 0
    %v2110 = vsel %vm2078, 1, 0
    %v2111 = vsel %vm2079, 1, 0
    %v2112 = vcvt.s32.f32 %v2080
    %v2113 = vcvt.s32.f32 %v2081
    %v2114 = vcvt.s32.f32 %v2082
    %v2115 = vcvt.s32.f32 %v2083
    %v2116 = vcvt.s32.f32 %v2084
    %v2117 = vcvt.s32.f32 %v2085
    %v2118 = vcvt.s32.f32 %v2086
    %v2119 = vcvt.s32.f32 %v2087
    %v2120 = vcvt.s32.f32 %v2088
    %v2121 = vcvt.s32.f32 %v2089
    %v2122 = vcvt.s32.f32 %v2090
    %v2123 = vcvt.s32.f32 %v2091
    %v2124 = vcvt.s32.f32 %v2092
    %v2125 = vcvt.s32.f32 %v2093
    %v2126 = vcvt.s32.f32 %v2094
    %v2127 = vcvt.s32.f32 %v2095
    %v2128 = vcvt.s32.f32 %v2096
    %v2129 = vcvt.s32.f32 %v2097
    %v2130 = vcvt.s32.f32 %v2098
    %v2131 = vcvt.s32.f32 %v2099
    %v2132 = vcvt.s32.f32 %v2100
    %v2133 = vcvt.s32.f32 %v2101
    %v2134 = vcvt.s32.f32 %v2102
    %v2135 = vcvt.s32.f32 %v2103
    %v2136 = vcvt.s32.f32 %v2104
    %v2137 = vcvt.s32.f32 %v2105
    %v2138 = vcvt.s32.f32 %v2106
    %v2139 = vcvt.s32.f32 %v2107
    %v2140 = vcvt.s32.f32 %v2108
    %v2141 = vcvt.s32.f32 %v2109
    %v2142 = vcvt.s32.f32 %v2110
    %v2143 = vcvt.s32.f32 %v2111
    %v2144 = vmul.f32 %v988, %v2112
    %v2145 = vmul.f32 %v989, %v2113
    %v2146 = vmul.f32 %v990, %v2114
    %v2147 = vmul.f32 %v991, %v2115
    %v2148 = vmul.f32 %v992, %v2116
    %v2149 = vmul.f32 %v993, %v2117
    %v2150 = vmul.f32 %v994, %v2118
    %v2151 = vmul.f32 %v995, %v2119
    %v2152 = vmul.f32 %v996, %v2120
    %v2153 = vmul.f32 %v997, %v2121
    %v2154 = vmul.f32 %v998, %v2122
    %v2155 = vmul.f32 %v999, %v2123
    %v2156 = vmul.f32 %v1000, %v2124
    %v2157 = vmul.f32 %v1001, %v2125
    %v2158 = vmul.f32 %v1002, %v2126
    %v2159 = vmul.f32 %v1003, %v2127
    %v2160 = vmul.f32 %v1004, %v2128
    %v2161 = vmul.f32 %v1005, %v2129
    %v2162 = vmul.f32 %v1006, %v2130
    %v2163 = vmul.f32 %v1007, %v2131
    %v2164 = vmul.f32 %v1008, %v2132
    %v2165 = vmul.f32 %v1009, %v2133
    %v2166 = vmul.f32 %v1010, %v2134
    %v2167 = vmul.f32 %v1011, %v2135
    %v2168 = vmul.f32 %v1012, %v2136
    %v2169 = vmul.f32 %v1013, %v2137
    %v2170 = vmul.f32 %v1014, %v2138
    %v2171 = vmul.f32 %v1015, %v2139
    %v2172 = vmul.f32 %v1016, %v2140
    %v2173 = vmul.f32 %v1017, %v2141
    %v2174 = vmul.f32 %v1018, %v2142
    %v2175 = vmul.f32 %v1019, %v2143
    %2176 = vadd.xlane.f32.xlu0 %v2144
    %v2177 = vpop.xlane.xlu0 %2176
    %2178 = vadd.xlane.f32.xlu0 %v2145
    %v2179 = vpop.xlane.xlu0 %2178
    %2180 = vadd.xlane.f32.xlu0 %v2146
    %v2181 = vpop.xlane.xlu0 %2180
    %2182 = vadd.xlane.f32.xlu0 %v2147
    %v2183 = vpop.xlane.xlu0 %2182
    %2184 = vadd.xlane.f32.xlu0 %v2148
    %v2185 = vpop.xlane.xlu0 %2184
    %2186 = vadd.xlane.f32.xlu0 %v2149
    %v2187 = vpop.xlane.xlu0 %2186
    %2188 = vadd.xlane.f32.xlu0 %v2150
    %v2189 = vpop.xlane.xlu0 %2188
    %2190 = vadd.xlane.f32.xlu0 %v2151
    %v2191 = vpop.xlane.xlu0 %2190
    %2192 = vadd.xlane.f32.xlu0 %v2152
    %v2193 = vpop.xlane.xlu0 %2192
    %2194 = vadd.xlane.f32.xlu0 %v2153
    %v2195 = vpop.xlane.xlu0 %2194
    %2196 = vadd.xlane.f32.xlu0 %v2154
    %v2197 = vpop.xlane.xlu0 %2196
    %2198 = vadd.xlane.f32.xlu0 %v2155
    %v2199 = vpop.xlane.xlu0 %2198
    %2200 = vadd.xlane.f32.xlu0 %v2156
    %v2201 = vpop.xlane.xlu0 %2200
    %2202 = vadd.xlane.f32.xlu0 %v2157
    %v2203 = vpop.xlane.xlu0 %2202
    %2204 = vadd.xlane.f32.xlu0 %v2158
    %v2205 = vpop.xlane.xlu0 %2204
    %2206 = vadd.xlane.f32.xlu0 %v2159
    %v2207 = vpop.xlane.xlu0 %2206
    %2208 = vadd.xlane.f32.xlu0 %v2160
    %v2209 = vpop.xlane.xlu0 %2208
    %2210 = vadd.xlane.f32.xlu0 %v2161
    %v2211 = vpop.xlane.xlu0 %2210
    %2212 = vadd.xlane.f32.xlu0 %v2162
    %v2213 = vpop.xlane.xlu0 %2212
    %2214 = vadd.xlane.f32.xlu0 %v2163
    %v2215 = vpop.xlane.xlu0 %2214
    %2216 = vadd.xlane.f32.xlu0 %v2164
    %v2217 = vpop.xlane.xlu0 %2216
    %2218 = vadd.xlane.f32.xlu0 %v2165
    %v2219 = vpop.xlane.xlu0 %2218
    %2220 = vadd.xlane.f32.xlu0 %v2166
    %v2221 = vpop.xlane.xlu0 %2220
    %2222 = vadd.xlane.f32.xlu0 %v2167
    %v2223 = vpop.xlane.xlu0 %2222
    %2224 = vadd.xlane.f32.xlu0 %v2168
    %v2225 = vpop.xlane.xlu0 %2224
    %2226 = vadd.xlane.f32.xlu0 %v2169
    %v2227 = vpop.xlane.xlu0 %2226
    %2228 = vadd.xlane.f32.xlu0 %v2170
    %v2229 = vpop.xlane.xlu0 %2228
    %2230 = vadd.xlane.f32.xlu0 %v2171
    %v2231 = vpop.xlane.xlu0 %2230
    %2232 = vadd.xlane.f32.xlu0 %v2172
    %v2233 = vpop.xlane.xlu0 %2232
    %2234 = vadd.xlane.f32.xlu0 %v2173
    %v2235 = vpop.xlane.xlu0 %2234
    %2236 = vadd.xlane.f32.xlu0 %v2174
    %v2237 = vpop.xlane.xlu0 %2236
    %2238 = vadd.xlane.f32.xlu0 %v2175
    %v2239 = vpop.xlane.xlu0 %2238
    %vm2240 = vcmp.ne.s32.totalorder %v1920, 4294967295
    %vm2241 = vcmp.ne.s32.totalorder %v1921, 4294967295
    %vm2242 = vcmp.ne.s32.totalorder %v1922, 4294967295
    %vm2243 = vcmp.ne.s32.totalorder %v1923, 4294967295
    %vm2244 = vcmp.ne.s32.totalorder %v1924, 4294967295
    %vm2245 = vcmp.ne.s32.totalorder %v1925, 4294967295
    %vm2246 = vcmp.ne.s32.totalorder %v1926, 4294967295
    %vm2247 = vcmp.ne.s32.totalorder %v1927, 4294967295
    %vm2248 = vcmp.ne.s32.totalorder %v1928, 4294967295
    %vm2249 = vcmp.ne.s32.totalorder %v1929, 4294967295
    %vm2250 = vcmp.ne.s32.totalorder %v1930, 4294967295
    %vm2251 = vcmp.ne.s32.totalorder %v1931, 4294967295
    %vm2252 = vcmp.ne.s32.totalorder %v1932, 4294967295
    %vm2253 = vcmp.ne.s32.totalorder %v1933, 4294967295
    %vm2254 = vcmp.ne.s32.totalorder %v1934, 4294967295
    %vm2255 = vcmp.ne.s32.totalorder %v1935, 4294967295
    %vm2256 = vcmp.ne.s32.totalorder %v1936, 4294967295
    %vm2257 = vcmp.ne.s32.totalorder %v1937, 4294967295
    %vm2258 = vcmp.ne.s32.totalorder %v1938, 4294967295
    %vm2259 = vcmp.ne.s32.totalorder %v1939, 4294967295
    %vm2260 = vcmp.ne.s32.totalorder %v1940, 4294967295
    %vm2261 = vcmp.ne.s32.totalorder %v1941, 4294967295
    %vm2262 = vcmp.ne.s32.totalorder %v1942, 4294967295
    %vm2263 = vcmp.ne.s32.totalorder %v1943, 4294967295
    %vm2264 = vcmp.ne.s32.totalorder %v1944, 4294967295
    %vm2265 = vcmp.ne.s32.totalorder %v1945, 4294967295
    %vm2266 = vcmp.ne.s32.totalorder %v1946, 4294967295
    %vm2267 = vcmp.ne.s32.totalorder %v1947, 4294967295
    %vm2268 = vcmp.ne.s32.totalorder %v1948, 4294967295
    %vm2269 = vcmp.ne.s32.totalorder %v1949, 4294967295
    %vm2270 = vcmp.ne.s32.totalorder %v1950, 4294967295
    %vm2271 = vcmp.ne.s32.totalorder %v1951, 4294967295
    %v2272 = vsel %vm2240, 1, 0
    %v2273 = vsel %vm2241, 1, 0
    %v2274 = vsel %vm2242, 1, 0
    %v2275 = vsel %vm2243, 1, 0
    %v2276 = vsel %vm2244, 1, 0
    %v2277 = vsel %vm2245, 1, 0
    %v2278 = vsel %vm2246, 1, 0
    %v2279 = vsel %vm2247, 1, 0
    %v2280 = vsel %vm2248, 1, 0
    %v2281 = vsel %vm2249, 1, 0
    %v2282 = vsel %vm2250, 1, 0
    %v2283 = vsel %vm2251, 1, 0
    %v2284 = vsel %vm2252, 1, 0
    %v2285 = vsel %vm2253, 1, 0
    %v2286 = vsel %vm2254, 1, 0
    %v2287 = vsel %vm2255, 1, 0
    %v2288 = vsel %vm2256, 1, 0
    %v2289 = vsel %vm2257, 1, 0
    %v2290 = vsel %vm2258, 1, 0
    %v2291 = vsel %vm2259, 1, 0
    %v2292 = vsel %vm2260, 1, 0
    %v2293 = vsel %vm2261, 1, 0
    %v2294 = vsel %vm2262, 1, 0
    %v2295 = vsel %vm2263, 1, 0
    %v2296 = vsel %vm2264, 1, 0
    %v2297 = vsel %vm2265, 1, 0
    %v2298 = vsel %vm2266, 1, 0
    %v2299 = vsel %vm2267, 1, 0
    %v2300 = vsel %vm2268, 1, 0
    %v2301 = vsel %vm2269, 1, 0
    %v2302 = vsel %vm2270, 1, 0
    %v2303 = vsel %vm2271, 1, 0
    %v2304 = vcvt.s32.f32 %v2272
    %v2305 = vcvt.s32.f32 %v2273
    %v2306 = vcvt.s32.f32 %v2274
    %v2307 = vcvt.s32.f32 %v2275
    %v2308 = vcvt.s32.f32 %v2276
    %v2309 = vcvt.s32.f32 %v2277
    %v2310 = vcvt.s32.f32 %v2278
    %v2311 = vcvt.s32.f32 %v2279
    %v2312 = vcvt.s32.f32 %v2280
    %v2313 = vcvt.s32.f32 %v2281
    %v2314 = vcvt.s32.f32 %v2282
    %v2315 = vcvt.s32.f32 %v2283
    %v2316 = vcvt.s32.f32 %v2284
    %v2317 = vcvt.s32.f32 %v2285
    %v2318 = vcvt.s32.f32 %v2286
    %v2319 = vcvt.s32.f32 %v2287
    %v2320 = vcvt.s32.f32 %v2288
    %v2321 = vcvt.s32.f32 %v2289
    %v2322 = vcvt.s32.f32 %v2290
    %v2323 = vcvt.s32.f32 %v2291
    %v2324 = vcvt.s32.f32 %v2292
    %v2325 = vcvt.s32.f32 %v2293
    %v2326 = vcvt.s32.f32 %v2294
    %v2327 = vcvt.s32.f32 %v2295
    %v2328 = vcvt.s32.f32 %v2296
    %v2329 = vcvt.s32.f32 %v2297
    %v2330 = vcvt.s32.f32 %v2298
    %v2331 = vcvt.s32.f32 %v2299
    %v2332 = vcvt.s32.f32 %v2300
    %v2333 = vcvt.s32.f32 %v2301
    %v2334 = vcvt.s32.f32 %v2302
    %v2335 = vcvt.s32.f32 %v2303
    %v2336 = vsub.f32 %v1888, %v2177
    %v2337 = vsub.f32 %v1889, %v2179
    %v2338 = vsub.f32 %v1890, %v2181
    %v2339 = vsub.f32 %v1891, %v2183
    %v2340 = vsub.f32 %v1892, %v2185
    %v2341 = vsub.f32 %v1893, %v2187
    %v2342 = vsub.f32 %v1894, %v2189
    %v2343 = vsub.f32 %v1895, %v2191
    %v2344 = vsub.f32 %v1896, %v2193
    %v2345 = vsub.f32 %v1897, %v2195
    %v2346 = vsub.f32 %v1898, %v2197
    %v2347 = vsub.f32 %v1899, %v2199
    %v2348 = vsub.f32 %v1900, %v2201
    %v2349 = vsub.f32 %v1901, %v2203
    %v2350 = vsub.f32 %v1902, %v2205
    %v2351 = vsub.f32 %v1903, %v2207
    %v2352 = vsub.f32 %v1904, %v2209
    %v2353 = vsub.f32 %v1905, %v2211
    %v2354 = vsub.f32 %v1906, %v2213
    %v2355 = vsub.f32 %v1907, %v2215
    %v2356 = vsub.f32 %v1908, %v2217
    %v2357 = vsub.f32 %v1909, %v2219
    %v2358 = vsub.f32 %v1910, %v2221
    %v2359 = vsub.f32 %v1911, %v2223
    %v2360 = vsub.f32 %v1912, %v2225
    %v2361 = vsub.f32 %v1913, %v2227
    %v2362 = vsub.f32 %v1914, %v2229
    %v2363 = vsub.f32 %v1915, %v2231
    %v2364 = vsub.f32 %v1916, %v2233
    %v2365 = vsub.f32 %v1917, %v2235
    %v2366 = vsub.f32 %v1918, %v2237
    %v2367 = vsub.f32 %v1919, %v2239
    %v2368 = vmul.f32 %v2336, %v2304
    %v2369 = vmul.f32 %v2337, %v2305
    %v2370 = vmul.f32 %v2338, %v2306
    %v2371 = vmul.f32 %v2339, %v2307
    %v2372 = vmul.f32 %v2340, %v2308
    %v2373 = vmul.f32 %v2341, %v2309
    %v2374 = vmul.f32 %v2342, %v2310
    %v2375 = vmul.f32 %v2343, %v2311
    %v2376 = vmul.f32 %v2344, %v2312
    %v2377 = vmul.f32 %v2345, %v2313
    %v2378 = vmul.f32 %v2346, %v2314
    %v2379 = vmul.f32 %v2347, %v2315
    %v2380 = vmul.f32 %v2348, %v2316
    %v2381 = vmul.f32 %v2349, %v2317
    %v2382 = vmul.f32 %v2350, %v2318
    %v2383 = vmul.f32 %v2351, %v2319
    %v2384 = vmul.f32 %v2352, %v2320
    %v2385 = vmul.f32 %v2353, %v2321
    %v2386 = vmul.f32 %v2354, %v2322
    %v2387 = vmul.f32 %v2355, %v2323
    %v2388 = vmul.f32 %v2356, %v2324
    %v2389 = vmul.f32 %v2357, %v2325
    %v2390 = vmul.f32 %v2358, %v2326
    %v2391 = vmul.f32 %v2359, %v2327
    %v2392 = vmul.f32 %v2360, %v2328
    %v2393 = vmul.f32 %v2361, %v2329
    %v2394 = vmul.f32 %v2362, %v2330
    %v2395 = vmul.f32 %v2363, %v2331
    %v2396 = vmul.f32 %v2364, %v2332
    %v2397 = vmul.f32 %v2365, %v2333
    %v2398 = vmul.f32 %v2366, %v2334
    %v2399 = vmul.f32 %v2367, %v2335
    %v2400 = vsel %vm1631, %v2368, 0.0
    %v2401 = vsel %vm1631, %v2369, 0.0
    %v2402 = vadd.f32 %v2400, %v2401
    %v2403 = vsel %vm1631, %v2370, 0.0
    %v2404 = vadd.f32 %v2402, %v2403
    %v2405 = vsel %vm1631, %v2371, 0.0
    %v2406 = vadd.f32 %v2404, %v2405
    %v2407 = vsel %vm1631, %v2372, 0.0
    %v2408 = vadd.f32 %v2406, %v2407
    %v2409 = vsel %vm1631, %v2373, 0.0
    %v2410 = vadd.f32 %v2408, %v2409
    %v2411 = vsel %vm1631, %v2374, 0.0
    %v2412 = vadd.f32 %v2410, %v2411
    %v2413 = vsel %vm1631, %v2375, 0.0
    %v2414 = vadd.f32 %v2412, %v2413
    %v2415 = vsel %vm1631, %v2376, 0.0
    %v2416 = vadd.f32 %v2414, %v2415
    %v2417 = vsel %vm1631, %v2377, 0.0
    %v2418 = vadd.f32 %v2416, %v2417
    %v2419 = vsel %vm1631, %v2378, 0.0
    %v2420 = vadd.f32 %v2418, %v2419
    %v2421 = vsel %vm1631, %v2379, 0.0
    %v2422 = vadd.f32 %v2420, %v2421
    %v2423 = vsel %vm1631, %v2380, 0.0
    %v2424 = vadd.f32 %v2422, %v2423
    %v2425 = vsel %vm1631, %v2381, 0.0
    %v2426 = vadd.f32 %v2424, %v2425
    %v2427 = vsel %vm1631, %v2382, 0.0
    %v2428 = vadd.f32 %v2426, %v2427
    %v2429 = vsel %vm1631, %v2383, 0.0
    %v2430 = vadd.f32 %v2428, %v2429
    %v2431 = vsel %vm1631, %v2384, 0.0
    %v2432 = vadd.f32 %v2430, %v2431
    %v2433 = vsel %vm1631, %v2385, 0.0
    %v2434 = vadd.f32 %v2432, %v2433
    %v2435 = vsel %vm1631, %v2386, 0.0
    %v2436 = vadd.f32 %v2434, %v2435
    %v2437 = vsel %vm1631, %v2387, 0.0
    %v2438 = vadd.f32 %v2436, %v2437
    %v2439 = vsel %vm1631, %v2388, 0.0
    %v2440 = vadd.f32 %v2438, %v2439
    %v2441 = vsel %vm1631, %v2389, 0.0
    %v2442 = vadd.f32 %v2440, %v2441
    %v2443 = vsel %vm1631, %v2390, 0.0
    %v2444 = vadd.f32 %v2442, %v2443
    %v2445 = vsel %vm1631, %v2391, 0.0
    %v2446 = vadd.f32 %v2444, %v2445
    %v2447 = vsel %vm1631, %v2392, 0.0
    %v2448 = vadd.f32 %v2446, %v2447
    %v2449 = vsel %vm1631, %v2393, 0.0
    %v2450 = vadd.f32 %v2448, %v2449
    %v2451 = vsel %vm1631, %v2394, 0.0
    %v2452 = vadd.f32 %v2450, %v2451
    %v2453 = vsel %vm1631, %v2395, 0.0
    %v2454 = vadd.f32 %v2452, %v2453
    %v2455 = vsel %vm1631, %v2396, 0.0
    %v2456 = vadd.f32 %v2454, %v2455
    %v2457 = vsel %vm1631, %v2397, 0.0
    %v2458 = vadd.f32 %v2456, %v2457
    %v2459 = vsel %vm1631, %v2398, 0.0
    %v2460 = vadd.f32 %v2458, %v2459
    %v2461 = vsel %vm1631, %v2399, 0.0
    %v2462 = vadd.f32 %v2460, %v2461
    %2463 = vadd.xlane.f32.xlu0 %v2462
    %v2464 = vpop.xlane.xlu0 %2463
    %v2465 = vrot.slane %v2464, 4
    %v2466 = vadd.f32 %v2464, %v2465
    %v2467 = vrot.slane %v2466, 2
    %v2468 = vadd.f32 %v2466, %v2467
    %v2469 = vrot.slane %v2468, 1
    %v2470 = vadd.f32 %v2468, %v2469
    %s2471 = vtos %v2470
    %v2472 = vsel %vm1631, %v2304, 0.0
    %v2473 = vsel %vm1631, %v2305, 0.0
    %v2474 = vadd.f32 %v2472, %v2473
    %v2475 = vsel %vm1631, %v2306, 0.0
    %v2476 = vadd.f32 %v2474, %v2475
    %v2477 = vsel %vm1631, %v2307, 0.0
    %v2478 = vadd.f32 %v2476, %v2477
    %v2479 = vsel %vm1631, %v2308, 0.0
    %v2480 = vadd.f32 %v2478, %v2479
    %v2481 = vsel %vm1631, %v2309, 0.0
    %v2482 = vadd.f32 %v2480, %v2481
    %v2483 = vsel %vm1631, %v2310, 0.0
    %v2484 = vadd.f32 %v2482, %v2483
    %v2485 = vsel %vm1631, %v2311, 0.0
    %v2486 = vadd.f32 %v2484, %v2485
    %v2487 = vsel %vm1631, %v2312, 0.0
    %v2488 = vadd.f32 %v2486, %v2487
    %v2489 = vsel %vm1631, %v2313, 0.0
    %v2490 = vadd.f32 %v2488, %v2489
    %v2491 = vsel %vm1631, %v2314, 0.0
    %v2492 = vadd.f32 %v2490, %v2491
    %v2493 = vsel %vm1631, %v2315, 0.0
    %v2494 = vadd.f32 %v2492, %v2493
    %v2495 = vsel %vm1631, %v2316, 0.0
    %v2496 = vadd.f32 %v2494, %v2495
    %v2497 = vsel %vm1631, %v2317, 0.0
    %v2498 = vadd.f32 %v2496, %v2497
    %v2499 = vsel %vm1631, %v2318, 0.0
    %v2500 = vadd.f32 %v2498, %v2499
    %v2501 = vsel %vm1631, %v2319, 0.0
    %v2502 = vadd.f32 %v2500, %v2501
    %v2503 = vsel %vm1631, %v2320, 0.0
    %v2504 = vadd.f32 %v2502, %v2503
    %v2505 = vsel %vm1631, %v2321, 0.0
    %v2506 = vadd.f32 %v2504, %v2505
    %v2507 = vsel %vm1631, %v2322, 0.0
    %v2508 = vadd.f32 %v2506, %v2507
    %v2509 = vsel %vm1631, %v2323, 0.0
    %v2510 = vadd.f32 %v2508, %v2509
    %v2511 = vsel %vm1631, %v2324, 0.0
    %v2512 = vadd.f32 %v2510, %v2511
    %v2513 = vsel %vm1631, %v2325, 0.0
    %v2514 = vadd.f32 %v2512, %v2513
    %v2515 = vsel %vm1631, %v2326, 0.0
    %v2516 = vadd.f32 %v2514, %v2515
    %v2517 = vsel %vm1631, %v2327, 0.0
    %v2518 = vadd.f32 %v2516, %v2517
    %v2519 = vsel %vm1631, %v2328, 0.0
    %v2520 = vadd.f32 %v2518, %v2519
    %v2521 = vsel %vm1631, %v2329, 0.0
    %v2522 = vadd.f32 %v2520, %v2521
    %v2523 = vsel %vm1631, %v2330, 0.0
    %v2524 = vadd.f32 %v2522, %v2523
    %v2525 = vsel %vm1631, %v2331, 0.0
    %v2526 = vadd.f32 %v2524, %v2525
    %v2527 = vsel %vm1631, %v2332, 0.0
    %v2528 = vadd.f32 %v2526, %v2527
    %v2529 = vsel %vm1631, %v2333, 0.0
    %v2530 = vadd.f32 %v2528, %v2529
    %v2531 = vsel %vm1631, %v2334, 0.0
    %v2532 = vadd.f32 %v2530, %v2531
    %v2533 = vsel %vm1631, %v2335, 0.0
    %v2534 = vadd.f32 %v2532, %v2533
    %2535 = vadd.xlane.f32.xlu0 %v2534
    %v2536 = vpop.xlane.xlu0 %2535
    %v2537 = vrot.slane %v2536, 4
    %v2538 = vadd.f32 %v2536, %v2537
    %v2539 = vrot.slane %v2538, 2
    %v2540 = vadd.f32 %v2538, %v2539
    %v2541 = vrot.slane %v2540, 1
    %v2542 = vadd.f32 %v2540, %v2541
    %s2543 = vtos %v2542
    %v2544 = vlaneseq
    %v2545 = vshrl.u32 %v2544, 7
    %vm2546 = vcmp.eq.s32.totalorder %v2545, 0
    %vm2547 = vcmp.eq.s32.totalorder %v1021, 0
    %vm2548 = vmand %vm2546, %vm2547
    %vm2549 = vcmp.eq.s32.totalorder %v1021, 1
    %vm2550 = vmand %vm2546, %vm2549
    %v2551 = vstv %s2543
    %v2552 = vsel %vm2550, %v2551, 0.0
    %v2553 = vstv %s2471
    %v2554 = vsel %vm2548, %v2553, %v2552
    %2555 = vst [vmem:[#allocation2] sm:$0xff] %v2554
    // Predicated region
    $region34: #{tpu_custom_call.1} parent=1 // pred_check
      _
    $region35: #{tpu_custom_call.1} parent=1 // pred_check_branch
      %2557 = sbr.rel (0) target = $region37
    $region36: #{tpu_custom_call.1} parent=1 // pred_region
      _
    $region37: #{tpu_custom_call.1} parent=1 // pred_fallthru
      _
    // Predicated region
    $region38: #{tpu_custom_call.1} parent=1 // pred_check
      _
    $region39: #{tpu_custom_call.1} parent=1 // pred_check_branch
      %2559 = sbr.rel (0) target = $region41
    $region40: #{tpu_custom_call.1} parent=1 // pred_region
      %s2561 = ssub.s32 128, 128
      %2562 = vsyncadd [#allocation3], %s2561
      %s2564 = sshll.u32 [#allocation2], 4
      %s2565 = int_to_ptr.vmem [resolvable:$true] %s2564
      %2567 = dma.vmem_to_hbm [thread:$0]  %s2565, 128, %s9, [#allocation3]
    $region41: #{tpu_custom_call.1} parent=1 // pred_fallthru
      _
    // Predicated region
    $region42: #{tpu_custom_call.1} parent=1 // pred_check
      _
    $region43: #{tpu_custom_call.1} parent=1 // pred_check_branch
      %2569 = sbr.rel (0) target = $region45
    $region44: #{tpu_custom_call.1} parent=1 // pred_region
      _
    $region45: #{tpu_custom_call.1} parent=1 // pred_fallthru
      _
    // Predicated region
    $region46: #{tpu_custom_call.1} parent=1 // pred_check
      _
    $region47: #{tpu_custom_call.1} parent=1 // pred_check_branch
      %2571 = sbr.rel (0) target = $region49
    $region48: #{tpu_custom_call.1} parent=1 // pred_region
      %2572 = dma.done [#allocation3], 128
    $region49: #{tpu_custom_call.1} parent=1 // pred_fallthru
      _
    %2573 = vsyncpa [#allocation3], 1

</llo_original>
